<compile_context>
chip_gen: v7x
topology: tpu7x:2x2x1
jax: 0.10.0
libtpu: 0.0.40
codegen_flags: <defaults>
</compile_context>

<pallas_src>
import functools
import math

import jax
import jax.numpy as jnp
from jax.experimental import pallas as pl
from jax.experimental.pallas import tpu as pltpu


_MM_DTYPE = jnp.bfloat16   # MXU operand dtype (bf16-native on v5e/v6e/v7x)
_LN_EPS = 1e-12
_LANE_PAD = 128            # lane-dense width for the classifier output slab


# ----------------------------- in-kernel helpers -----------------------------

def _mm(a_b16, b_b16):
    # both operands already bf16; f32 accumulation on the MXU
    return jnp.dot(a_b16, b_b16, preferred_element_type=jnp.float32)


def _mm_t(a_b16, b_b16):
    # a @ b.T (contract last dims of both, no explicit transpose)
    return jax.lax.dot_general(a_b16, b_b16, (((1,), (1,)), ((), ())),
                               preferred_element_type=jnp.float32)


def _layernorm(x, g, b, eps=_LN_EPS):
    mu = jnp.mean(x, axis=-1, keepdims=True)
    xc = x - mu
    var = jnp.mean(xc * xc, axis=-1, keepdims=True)
    return xc * jax.lax.rsqrt(var + eps) * g + b


def _gelu(x):
    c = math.sqrt(2.0 / math.pi)
    return 0.5 * x * (1.0 + jnp.tanh(c * (x + 0.044715 * x * x * x)))


# ----------------------------- the fused kernel -----------------------------

def _fused_forward_kernel(x_ref, bias_ref,
                          embg_ref, embb_ref,
                          wqkv_ref, bqkv_ref, wo_ref, bo_ref,
                          ln1g_ref, ln1b_ref, wi_ref, bi_ref,
                          wo2_ref, bo2_ref, ln2g_ref, ln2b_ref,
                          pw_ref, pb_ref, cw_ref, cb_ref,
                          o_ref, *, num_layers, num_heads, scale):
    # one batch row per grid step
    x = x_ref[0]                                   # (S, H) f32 embedding sum (pre-LN)
    S, H = x.shape
    dH = H // num_heads

    # ---- embedding layernorm (fused in, no separate kernel / HBM round trip) ----
    h = _layernorm(x, embg_ref[...], embb_ref[...])

    # ---- mask broadcast hoisted once per step (not per head) ----
    bias2d = jnp.broadcast_to(bias_ref[0], (S, S))          # (S, S) additive bias

    # ---- transformer layers: static unroll, activations stay in VMEM/vregs ----
    for l in range(num_layers):
        wqkv = wqkv_ref[l]                                   # (H, 3H) bf16
        wo = wo_ref[l]                                       # (H, H)  bf16
        wi = wi_ref[l]                                       # (H, I)  bf16
        wo2 = wo2_ref[l]                                     # (I, H)  bf16
        bqkv = bqkv_ref[l]                                   # (1, 3H) f32
        bo, bi, bo2 = bo_ref[l], bi_ref[l], bo2_ref[l]
        ln1g, ln1b = ln1g_ref[l], ln1b_ref[l]
        ln2g, ln2b = ln2g_ref[l], ln2b_ref[l]

        # fused QKV projection: one (S, 3H) matmul
        qkv = _mm(h.astype(_MM_DTYPE), wqkv) + bqkv          # (S, 3H) f32
        qkv_b = qkv.astype(_MM_DTYPE)                        # single cast, reused per head

        # multi-head attention with the output projection accumulated per head
        attn = None
        for hd in range(num_heads):
            lo = hd * dH
            qh = qkv_b[:, lo:lo + dH]
            kh = qkv_b[:, H + lo:H + lo + dH]
            vh = qkv_b[:, 2 * H + lo:2 * H + lo + dH]
            s = _mm_t(qh, kh) * scale + bias2d               # (S, S) f32
            m = jnp.max(s, axis=-1, keepdims=True)
            p = jnp.exp(s - m)
            p = p / jnp.sum(p, axis=-1, keepdims=True)       # exact softmax normalization
            ctx = _mm(p.astype(_MM_DTYPE), vh)               # (S, dH) f32
            contrib = _mm(ctx.astype(_MM_DTYPE), wo[lo:lo + dH, :])   # (S, H) f32
            attn = contrib if attn is None else attn + contrib
        attn = attn + bo

        # residual + LN1
        h1 = _layernorm(attn + h, ln1g, ln1b)

        # FFN (GELU) + residual + LN2
        inter = _gelu(_mm(h1.astype(_MM_DTYPE), wi) + bi)
        ffn = _mm(inter.astype(_MM_DTYPE), wo2) + bo2
        h = _layernorm(ffn + h1, ln2g, ln2b)

    # ---- pooler (tanh on the CLS row) + lane-padded classifier, fused in ----
    pooled = jnp.tanh(_mm(h[0:1, :].astype(_MM_DTYPE), pw_ref[...]) + pb_ref[...])   # (1, H)
    o_ref[0] = _mm(pooled.astype(_MM_DTYPE), cw_ref[...]) + cb_ref[...]              # (1, Np)


# ----------------------------- wrapper -----------------------------

def encoder_model_forward(params, input_ids, attention_mask, *,
                          num_heads, num_layers, num_classes):
    B, S = input_ids.shape
    H = params["word_emb"].shape[1]
    L = num_layers
    I = params["wi"].shape[-1]
    Np = params["cls_w_pad"].shape[-1]
    scale = 1.0 / math.sqrt(H // num_heads)

    # ---- embeddings: gathers/adds are plain-JAX glue; everything else is in-kernel ----
    tok = jnp.take(params["word_emb"], input_ids, axis=0)                # (B, S, H)
    pos = params["pos_emb"][:S][None, :, :]                              # (1, S, H)
    typ = params["type_emb"][0][None, None, :]                           # token_type_ids = 0
    emb = (tok + pos + typ).astype(jnp.float32)                          # (B, S, H)

    # small (B,1,S) additive attention-mask bias; broadcast happens in-kernel
    mask_bias = ((1.0 - attention_mask.astype(jnp.float32)) * -1e9)[:, None, :]

    kern = functools.partial(_fused_forward_kernel, num_layers=L,
                             num_heads=num_heads, scale=scale)

    def full(shape):
        # whole-array block, constant index_map -> the VMEM copy is reused across grid steps
        return pl.BlockSpec(shape, lambda b, _n=len(shape): (0,) * _n)

    logits_pad = pl.pallas_call(
        kern,
        out_shape=jax.ShapeDtypeStruct((B, 1, Np), jnp.float32),
        grid=(B,),
        in_specs=[
            pl.BlockSpec((1, S, H), lambda b: (b, 0, 0)),     # embedding sum, one batch row/step
            pl.BlockSpec((1, 1, S), lambda b: (b, 0, 0)),     # additive mask bias
            full((1, H)), full((1, H)),                       # embedding LN
            full((L, H, 3 * H)), full((L, 1, 3 * H)),         # fused QKV (stacked over layers)
            full((L, H, H)), full((L, 1, H)),                 # attention output proj
            full((L, 1, H)), full((L, 1, H)),                 # LN1
            full((L, H, I)), full((L, 1, I)),                 # FFN in
            full((L, I, H)), full((L, 1, H)),                 # FFN out
            full((L, 1, H)), full((L, 1, H)),                 # LN2
            full((H, H)), full((1, H)),                       # pooler
            full((H, Np)), full((1, Np)),                     # lane-padded classifier
        ],
        out_specs=pl.BlockSpec((1, 1, Np), lambda b: (b, 0, 0)),
        compiler_params=pltpu.CompilerParams(dimension_semantics=("parallel",)),
    )(emb, mask_bias,
      params["emb_ln_g"], params["emb_ln_b"],
      params["wqkv"], params["bqkv"],
      params["wo"], params["bo"],
      params["ln1_g"], params["ln1_b"],
      params["wi"], params["bi"],
      params["wo2"], params["bo2"],
      params["ln2_g"], params["ln2_b"],
      params["pool_w"], params["pool_b"],
      params["cls_w_pad"], params["cls_b_pad"])

    return logits_pad[:, 0, :num_classes]                      # (B, num_classes)


# ----------------------------- parameter init -----------------------------

def init_params(key, *, vocab, max_pos, type_vocab, hidden, num_heads,
                intermediate, layers, num_classes):
    def nrm(k, shape, scale=0.02):
        return scale * jax.random.normal(k, shape, dtype=jnp.float32)

    keys = iter(jax.random.split(key, 16))
    H, I, L = hidden, intermediate, layers
    Np = max(_LANE_PAD, num_classes)

    cls_w = nrm(next(keys), (H, num_classes))
    cls_w_pad = jnp.zeros((H, Np), jnp.float32).at[:, :num_classes].set(cls_w)

    p = {
        "word_emb": nrm(next(keys), (vocab, H)),
        "pos_emb": nrm(next(keys), (max_pos, H)),
        "type_emb": nrm(next(keys), (type_vocab, H)),
        "emb_ln_g": jnp.ones((1, H), jnp.float32),
        "emb_ln_b": jnp.zeros((1, H), jnp.float32),
        # per-layer weights stacked with a leading L axis; matmul weights stored bf16
        "wqkv": nrm(next(keys), (L, H, 3 * H)).astype(_MM_DTYPE),
        "bqkv": jnp.zeros((L, 1, 3 * H), jnp.float32),
        "wo": nrm(next(keys), (L, H, H)).astype(_MM_DTYPE),
        "bo": jnp.zeros((L, 1, H), jnp.float32),
        "ln1_g": jnp.ones((L, 1, H), jnp.float32),
        "ln1_b": jnp.zeros((L, 1, H), jnp.float32),
        "wi": nrm(next(keys), (L, H, I)).astype(_MM_DTYPE),
        "bi": jnp.zeros((L, 1, I), jnp.float32),
        "wo2": nrm(next(keys), (L, I, H)).astype(_MM_DTYPE),
        "bo2": jnp.zeros((L, 1, H), jnp.float32),
        "ln2_g": jnp.ones((L, 1, H), jnp.float32),
        "ln2_b": jnp.zeros((L, 1, H), jnp.float32),
        "pool_w": nrm(next(keys), (H, H)).astype(_MM_DTYPE),
        "pool_b": jnp.zeros((1, H), jnp.float32),
        # classifier padded to a lane-dense 128-wide slab ONCE at init
        "cls_w_pad": cls_w_pad.astype(_MM_DTYPE),
        "cls_b_pad": jnp.zeros((1, Np), jnp.float32),
    }
    return p


# ----------------------------- main -----------------------------

if __name__ == "__main__":
    B, S = 2, 8
    VOCAB, MAX_POS, TYPE_VOCAB = 100, 16, 2
    HIDDEN, NUM_HEADS, INTERMEDIATE, LAYERS = 32, 4, 64, 2
    NUM_CLASSES = 9  # len(CLASS_MAP)

    root = jax.random.PRNGKey(0)
    k_params, k_ids = jax.random.split(root)

    params = init_params(
        k_params, vocab=VOCAB, max_pos=MAX_POS, type_vocab=TYPE_VOCAB,
        hidden=HIDDEN, num_heads=NUM_HEADS, intermediate=INTERMEDIATE,
        layers=LAYERS, num_classes=NUM_CLASSES)

    input_ids = jax.random.randint(k_ids, (B, S), 0, VOCAB, dtype=jnp.int32)
    attention_mask = jnp.array(
        [[1, 1, 1, 1, 1, 1, 1, 1],
         [1, 1, 1, 1, 1, 0, 0, 0]], dtype=jnp.int32)

    forward = jax.jit(functools.partial(
        encoder_model_forward, num_heads=NUM_HEADS, num_layers=LAYERS,
        num_classes=NUM_CLASSES))
    logits = forward(params, input_ids, attention_mask)
    jax.block_until_ready(logits)
    assert logits.shape == (B, NUM_CLASSES) and logits.dtype == jnp.float32
    print("KERNEL_OK")
</pallas_src>

<mosaic_0001>
module attributes {stable_mosaic.version = 11 : i64} {
  func.func @_fused_forward_kernel(%arg0: i32, %arg1: memref<1x8x32xf32, #tpu.memory_space<vmem>>, %arg2: memref<1x1x8xf32, #tpu.memory_space<vmem>>, %arg3: memref<1x32xf32, #tpu.memory_space<vmem>>, %arg4: memref<1x32xf32, #tpu.memory_space<vmem>>, %arg5: memref<2x32x96xbf16, #tpu.memory_space<vmem>>, %arg6: memref<2x1x96xf32, #tpu.memory_space<vmem>>, %arg7: memref<2x32x32xbf16, #tpu.memory_space<vmem>>, %arg8: memref<2x1x32xf32, #tpu.memory_space<vmem>>, %arg9: memref<2x1x32xf32, #tpu.memory_space<vmem>>, %arg10: memref<2x1x32xf32, #tpu.memory_space<vmem>>, %arg11: memref<2x32x64xbf16, #tpu.memory_space<vmem>>, %arg12: memref<2x1x64xf32, #tpu.memory_space<vmem>>, %arg13: memref<2x64x32xbf16, #tpu.memory_space<vmem>>, %arg14: memref<2x1x32xf32, #tpu.memory_space<vmem>>, %arg15: memref<2x1x32xf32, #tpu.memory_space<vmem>>, %arg16: memref<2x1x32xf32, #tpu.memory_space<vmem>>, %arg17: memref<32x32xbf16, #tpu.memory_space<vmem>>, %arg18: memref<1x32xf32, #tpu.memory_space<vmem>>, %arg19: memref<32x128xbf16, #tpu.memory_space<vmem>>, %arg20: memref<1x128xf32, #tpu.memory_space<vmem>>, %arg21: memref<1x1x128xf32, #tpu.memory_space<vmem>>) attributes {dimension_semantics = [#tpu.dimension_semantics<parallel>], iteration_bounds = array<i64: 2>, scalar_prefetch = 0 : i64, scratch_operands = 0 : i64, tpu.core_type = #tpu.core_type<tc>, window_params = [{transform_indices = @transform_0, window_bounds = array<i64: 1, 8, 32>}, {transform_indices = @transform_1, window_bounds = array<i64: 1, 1, 8>}, {pipeline_mode = #tpu.pipeline_mode<synchronous>, transform_indices = @transform_2, window_bounds = array<i64: 1, 32>}, {pipeline_mode = #tpu.pipeline_mode<synchronous>, transform_indices = @transform_3, window_bounds = array<i64: 1, 32>}, {pipeline_mode = #tpu.pipeline_mode<synchronous>, transform_indices = @transform_4, window_bounds = array<i64: 2, 32, 96>}, {pipeline_mode = #tpu.pipeline_mode<synchronous>, transform_indices = @transform_5, window_bounds = array<i64: 2, 1, 96>}, {pipeline_mode = #tpu.pipeline_mode<synchronous>, transform_indices = @transform_6, window_bounds = array<i64: 2, 32, 32>}, {pipeline_mode = #tpu.pipeline_mode<synchronous>, transform_indices = @transform_7, window_bounds = array<i64: 2, 1, 32>}, {pipeline_mode = #tpu.pipeline_mode<synchronous>, transform_indices = @transform_8, window_bounds = array<i64: 2, 1, 32>}, {pipeline_mode = #tpu.pipeline_mode<synchronous>, transform_indices = @transform_9, window_bounds = array<i64: 2, 1, 32>}, {pipeline_mode = #tpu.pipeline_mode<synchronous>, transform_indices = @transform_10, window_bounds = array<i64: 2, 32, 64>}, {pipeline_mode = #tpu.pipeline_mode<synchronous>, transform_indices = @transform_11, window_bounds = array<i64: 2, 1, 64>}, {pipeline_mode = #tpu.pipeline_mode<synchronous>, transform_indices = @transform_12, window_bounds = array<i64: 2, 64, 32>}, {pipeline_mode = #tpu.pipeline_mode<synchronous>, transform_indices = @transform_13, window_bounds = array<i64: 2, 1, 32>}, {pipeline_mode = #tpu.pipeline_mode<synchronous>, transform_indices = @transform_14, window_bounds = array<i64: 2, 1, 32>}, {pipeline_mode = #tpu.pipeline_mode<synchronous>, transform_indices = @transform_15, window_bounds = array<i64: 2, 1, 32>}, {pipeline_mode = #tpu.pipeline_mode<synchronous>, transform_indices = @transform_16, window_bounds = array<i64: 32, 32>}, {pipeline_mode = #tpu.pipeline_mode<synchronous>, transform_indices = @transform_17, window_bounds = array<i64: 1, 32>}, {pipeline_mode = #tpu.pipeline_mode<synchronous>, transform_indices = @transform_18, window_bounds = array<i64: 32, 128>}, {pipeline_mode = #tpu.pipeline_mode<synchronous>, transform_indices = @transform_19, window_bounds = array<i64: 1, 128>}, {transform_indices = @transform_20, window_bounds = array<i64: 1, 1, 128>}]} {
    %c0 = arith.constant 0 : index
    %c0_0 = arith.constant 0 : index
    %c0_1 = arith.constant 0 : index
    %0 = vector.load %arg1[%c0, %c0_0, %c0_1] : memref<1x8x32xf32, #tpu.memory_space<vmem>>, vector<1x8x32xf32>
    %1 = vector.shape_cast %0 : vector<1x8x32xf32> to vector<8x32xf32>
    %c0_2 = arith.constant 0 : index
    %c0_3 = arith.constant 0 : index
    %2 = vector.load %arg3[%c0_2, %c0_3] : memref<1x32xf32, #tpu.memory_space<vmem>>, vector<1x32xf32>
    %c0_4 = arith.constant 0 : index
    %c0_5 = arith.constant 0 : index
    %3 = vector.load %arg4[%c0_4, %c0_5] : memref<1x32xf32, #tpu.memory_space<vmem>>, vector<1x32xf32>
    %cst = arith.constant dense<0.000000e+00> : vector<8xf32>
    %4 = vector.multi_reduction <add>, %1, %cst [1] : vector<8x32xf32> to vector<8xf32>
    %5 = vector.shape_cast %4 : vector<8xf32> to vector<8x1xf32>
    %cst_6 = arith.constant 3.200000e+01 : f32
    %6 = vector.broadcast %cst_6 : f32 to vector<8x1xf32>
    %7 = arith.divf %5, %6 : vector<8x1xf32>
    %8 = vector.broadcast %7 : vector<8x1xf32> to vector<8x32xf32>
    %9 = arith.subf %1, %8 : vector<8x32xf32>
    %10 = arith.mulf %9, %9 : vector<8x32xf32>
    %cst_7 = arith.constant dense<0.000000e+00> : vector<8xf32>
    %11 = vector.multi_reduction <add>, %10, %cst_7 [1] : vector<8x32xf32> to vector<8xf32>
    %12 = vector.shape_cast %11 : vector<8xf32> to vector<8x1xf32>
    %cst_8 = arith.constant 3.200000e+01 : f32
    %13 = vector.broadcast %cst_8 : f32 to vector<8x1xf32>
    %14 = arith.divf %12, %13 : vector<8x1xf32>
    %cst_9 = arith.constant 9.99999996E-13 : f32
    %15 = vector.broadcast %cst_9 : f32 to vector<8x1xf32>
    %16 = arith.addf %14, %15 : vector<8x1xf32>
    %17 = math.rsqrt %16 : vector<8x1xf32>
    %18 = vector.broadcast %17 : vector<8x1xf32> to vector<8x32xf32>
    %19 = arith.mulf %9, %18 : vector<8x32xf32>
    %20 = vector.broadcast %2 : vector<1x32xf32> to vector<8x32xf32>
    %21 = arith.mulf %19, %20 : vector<8x32xf32>
    %22 = vector.broadcast %3 : vector<1x32xf32> to vector<8x32xf32>
    %23 = arith.addf %21, %22 : vector<8x32xf32>
    %c0_10 = arith.constant 0 : index
    %c0_11 = arith.constant 0 : index
    %c0_12 = arith.constant 0 : index
    %24 = vector.load %arg2[%c0_10, %c0_11, %c0_12] : memref<1x1x8xf32, #tpu.memory_space<vmem>>, vector<1x1x8xf32>
    %25 = vector.shape_cast %24 : vector<1x1x8xf32> to vector<1x8xf32>
    %26 = vector.shape_cast %25 : vector<1x8xf32> to vector<1x8xf32>
    %27 = vector.broadcast %26 : vector<1x8xf32> to vector<8x8xf32>
    %c0_13 = arith.constant 0 : index
    %c0_14 = arith.constant 0 : index
    %c0_15 = arith.constant 0 : index
    %28 = vector.load %arg5[%c0_13, %c0_14, %c0_15] : memref<2x32x96xbf16, #tpu.memory_space<vmem>>, vector<1x32x96xbf16>
    %29 = vector.shape_cast %28 : vector<1x32x96xbf16> to vector<32x96xbf16>
    %c0_16 = arith.constant 0 : index
    %c0_17 = arith.constant 0 : index
    %c0_18 = arith.constant 0 : index
    %30 = vector.load %arg7[%c0_16, %c0_17, %c0_18] : memref<2x32x32xbf16, #tpu.memory_space<vmem>>, vector<1x32x32xbf16>
    %31 = vector.shape_cast %30 : vector<1x32x32xbf16> to vector<32x32xbf16>
    %c0_19 = arith.constant 0 : index
    %c0_20 = arith.constant 0 : index
    %c0_21 = arith.constant 0 : index
    %32 = vector.load %arg11[%c0_19, %c0_20, %c0_21] : memref<2x32x64xbf16, #tpu.memory_space<vmem>>, vector<1x32x64xbf16>
    %33 = vector.shape_cast %32 : vector<1x32x64xbf16> to vector<32x64xbf16>
    %c0_22 = arith.constant 0 : index
    %c0_23 = arith.constant 0 : index
    %c0_24 = arith.constant 0 : index
    %34 = vector.load %arg13[%c0_22, %c0_23, %c0_24] : memref<2x64x32xbf16, #tpu.memory_space<vmem>>, vector<1x64x32xbf16>
    %35 = vector.shape_cast %34 : vector<1x64x32xbf16> to vector<64x32xbf16>
    %c0_25 = arith.constant 0 : index
    %c0_26 = arith.constant 0 : index
    %c0_27 = arith.constant 0 : index
    %36 = vector.load %arg6[%c0_25, %c0_26, %c0_27] : memref<2x1x96xf32, #tpu.memory_space<vmem>>, vector<1x1x96xf32>
    %37 = vector.shape_cast %36 : vector<1x1x96xf32> to vector<1x96xf32>
    %c0_28 = arith.constant 0 : index
    %c0_29 = arith.constant 0 : index
    %c0_30 = arith.constant 0 : index
    %38 = vector.load %arg8[%c0_28, %c0_29, %c0_30] : memref<2x1x32xf32, #tpu.memory_space<vmem>>, vector<1x1x32xf32>
    %39 = vector.shape_cast %38 : vector<1x1x32xf32> to vector<1x32xf32>
    %c0_31 = arith.constant 0 : index
    %c0_32 = arith.constant 0 : index
    %c0_33 = arith.constant 0 : index
    %40 = vector.load %arg12[%c0_31, %c0_32, %c0_33] : memref<2x1x64xf32, #tpu.memory_space<vmem>>, vector<1x1x64xf32>
    %41 = vector.shape_cast %40 : vector<1x1x64xf32> to vector<1x64xf32>
    %c0_34 = arith.constant 0 : index
    %c0_35 = arith.constant 0 : index
    %c0_36 = arith.constant 0 : index
    %42 = vector.load %arg14[%c0_34, %c0_35, %c0_36] : memref<2x1x32xf32, #tpu.memory_space<vmem>>, vector<1x1x32xf32>
    %43 = vector.shape_cast %42 : vector<1x1x32xf32> to vector<1x32xf32>
    %c0_37 = arith.constant 0 : index
    %c0_38 = arith.constant 0 : index
    %c0_39 = arith.constant 0 : index
    %44 = vector.load %arg9[%c0_37, %c0_38, %c0_39] : memref<2x1x32xf32, #tpu.memory_space<vmem>>, vector<1x1x32xf32>
    %45 = vector.shape_cast %44 : vector<1x1x32xf32> to vector<1x32xf32>
    %c0_40 = arith.constant 0 : index
    %c0_41 = arith.constant 0 : index
    %c0_42 = arith.constant 0 : index
    %46 = vector.load %arg10[%c0_40, %c0_41, %c0_42] : memref<2x1x32xf32, #tpu.memory_space<vmem>>, vector<1x1x32xf32>
    %47 = vector.shape_cast %46 : vector<1x1x32xf32> to vector<1x32xf32>
    %c0_43 = arith.constant 0 : index
    %c0_44 = arith.constant 0 : index
    %c0_45 = arith.constant 0 : index
    %48 = vector.load %arg15[%c0_43, %c0_44, %c0_45] : memref<2x1x32xf32, #tpu.memory_space<vmem>>, vector<1x1x32xf32>
    %49 = vector.shape_cast %48 : vector<1x1x32xf32> to vector<1x32xf32>
    %c0_46 = arith.constant 0 : index
    %c0_47 = arith.constant 0 : index
    %c0_48 = arith.constant 0 : index
    %50 = vector.load %arg16[%c0_46, %c0_47, %c0_48] : memref<2x1x32xf32, #tpu.memory_space<vmem>>, vector<1x1x32xf32>
    %51 = vector.shape_cast %50 : vector<1x1x32xf32> to vector<1x32xf32>
    %52 = arith.truncf %23 : vector<8x32xf32> to vector<8x32xbf16>
    %cst_49 = arith.constant dense<0.000000e+00> : vector<8x96xf32>
    %53 = tpu.matmul %52, %29, %cst_49 {dimension_numbers = #tpu.dot_dimension_numbers<[1], [0], [0], [1], [0, 0, 1, 1], [], []>} : vector<8x32xbf16>, vector<32x96xbf16>, vector<8x96xf32> -> vector<8x96xf32>
    %54 = vector.broadcast %37 : vector<1x96xf32> to vector<8x96xf32>
    %55 = arith.addf %53, %54 : vector<8x96xf32>
    %56 = arith.truncf %55 : vector<8x96xf32> to vector<8x96xbf16>
    %57 = vector.extract_strided_slice %56 {offsets = [0, 0], sizes = [8, 8], strides = [1, 1]} : vector<8x96xbf16> to vector<8x8xbf16>
    %58 = vector.extract_strided_slice %56 {offsets = [0, 32], sizes = [8, 8], strides = [1, 1]} : vector<8x96xbf16> to vector<8x8xbf16>
    %59 = vector.extract_strided_slice %56 {offsets = [0, 64], sizes = [8, 8], strides = [1, 1]} : vector<8x96xbf16> to vector<8x8xbf16>
    %cst_50 = arith.constant dense<0.000000e+00> : vector<8x8xf32>
    %60 = tpu.matmul %57, %58, %cst_50 {dimension_numbers = #tpu.dot_dimension_numbers<[1], [1], [0], [0], [0, 0, 1, 0], [], []>} : vector<8x8xbf16>, vector<8x8xbf16>, vector<8x8xf32> -> vector<8x8xf32>
    %cst_51 = arith.constant 0.353553385 : f32
    %61 = vector.broadcast %cst_51 : f32 to vector<8x8xf32>
    %62 = arith.mulf %60, %61 : vector<8x8xf32>
    %63 = arith.addf %62, %27 : vector<8x8xf32>
    %cst_52 = arith.constant dense<0xFF800000> : vector<8xf32>
    %64 = vector.multi_reduction <maximumf>, %63, %cst_52 [1] : vector<8x8xf32> to vector<8xf32>
    %65 = vector.shape_cast %64 : vector<8xf32> to vector<8x1xf32>
    %66 = vector.broadcast %65 : vector<8x1xf32> to vector<8x8xf32>
    %67 = arith.subf %63, %66 : vector<8x8xf32>
    %68 = math.exp %67 : vector<8x8xf32>
    %cst_53 = arith.constant dense<0.000000e+00> : vector<8xf32>
    %69 = vector.multi_reduction <add>, %68, %cst_53 [1] : vector<8x8xf32> to vector<8xf32>
    %70 = vector.shape_cast %69 : vector<8xf32> to vector<8x1xf32>
    %71 = vector.broadcast %70 : vector<8x1xf32> to vector<8x8xf32>
    %72 = arith.divf %68, %71 : vector<8x8xf32>
    %73 = arith.truncf %72 : vector<8x8xf32> to vector<8x8xbf16>
    %cst_54 = arith.constant dense<0.000000e+00> : vector<8x8xf32>
    %74 = tpu.matmul %73, %59, %cst_54 {dimension_numbers = #tpu.dot_dimension_numbers<[1], [0], [0], [1], [0, 0, 1, 1], [], []>} : vector<8x8xbf16>, vector<8x8xbf16>, vector<8x8xf32> -> vector<8x8xf32>
    %75 = arith.truncf %74 : vector<8x8xf32> to vector<8x8xbf16>
    %76 = vector.extract_strided_slice %31 {offsets = [0, 0], sizes = [8, 32], strides = [1, 1]} : vector<32x32xbf16> to vector<8x32xbf16>
    %cst_55 = arith.constant dense<0.000000e+00> : vector<8x32xf32>
    %77 = tpu.matmul %75, %76, %cst_55 {dimension_numbers = #tpu.dot_dimension_numbers<[1], [0], [0], [1], [0, 0, 1, 1], [], []>} : vector<8x8xbf16>, vector<8x32xbf16>, vector<8x32xf32> -> vector<8x32xf32>
    %78 = vector.extract_strided_slice %56 {offsets = [0, 8], sizes = [8, 8], strides = [1, 1]} : vector<8x96xbf16> to vector<8x8xbf16>
    %79 = vector.extract_strided_slice %56 {offsets = [0, 40], sizes = [8, 8], strides = [1, 1]} : vector<8x96xbf16> to vector<8x8xbf16>
    %80 = vector.extract_strided_slice %56 {offsets = [0, 72], sizes = [8, 8], strides = [1, 1]} : vector<8x96xbf16> to vector<8x8xbf16>
    %cst_56 = arith.constant dense<0.000000e+00> : vector<8x8xf32>
    %81 = tpu.matmul %78, %79, %cst_56 {dimension_numbers = #tpu.dot_dimension_numbers<[1], [1], [0], [0], [0, 0, 1, 0], [], []>} : vector<8x8xbf16>, vector<8x8xbf16>, vector<8x8xf32> -> vector<8x8xf32>
    %cst_57 = arith.constant 0.353553385 : f32
    %82 = vector.broadcast %cst_57 : f32 to vector<8x8xf32>
    %83 = arith.mulf %81, %82 : vector<8x8xf32>
    %84 = arith.addf %83, %27 : vector<8x8xf32>
    %cst_58 = arith.constant dense<0xFF800000> : vector<8xf32>
    %85 = vector.multi_reduction <maximumf>, %84, %cst_58 [1] : vector<8x8xf32> to vector<8xf32>
    %86 = vector.shape_cast %85 : vector<8xf32> to vector<8x1xf32>
    %87 = vector.broadcast %86 : vector<8x1xf32> to vector<8x8xf32>
    %88 = arith.subf %84, %87 : vector<8x8xf32>
    %89 = math.exp %88 : vector<8x8xf32>
    %cst_59 = arith.constant dense<0.000000e+00> : vector<8xf32>
    %90 = vector.multi_reduction <add>, %89, %cst_59 [1] : vector<8x8xf32> to vector<8xf32>
    %91 = vector.shape_cast %90 : vector<8xf32> to vector<8x1xf32>
    %92 = vector.broadcast %91 : vector<8x1xf32> to vector<8x8xf32>
    %93 = arith.divf %89, %92 : vector<8x8xf32>
    %94 = arith.truncf %93 : vector<8x8xf32> to vector<8x8xbf16>
    %cst_60 = arith.constant dense<0.000000e+00> : vector<8x8xf32>
    %95 = tpu.matmul %94, %80, %cst_60 {dimension_numbers = #tpu.dot_dimension_numbers<[1], [0], [0], [1], [0, 0, 1, 1], [], []>} : vector<8x8xbf16>, vector<8x8xbf16>, vector<8x8xf32> -> vector<8x8xf32>
    %96 = arith.truncf %95 : vector<8x8xf32> to vector<8x8xbf16>
    %97 = vector.extract_strided_slice %31 {offsets = [8, 0], sizes = [8, 32], strides = [1, 1]} : vector<32x32xbf16> to vector<8x32xbf16>
    %cst_61 = arith.constant dense<0.000000e+00> : vector<8x32xf32>
    %98 = tpu.matmul %96, %97, %cst_61 {dimension_numbers = #tpu.dot_dimension_numbers<[1], [0], [0], [1], [0, 0, 1, 1], [], []>} : vector<8x8xbf16>, vector<8x32xbf16>, vector<8x32xf32> -> vector<8x32xf32>
    %99 = arith.addf %77, %98 : vector<8x32xf32>
    %100 = vector.extract_strided_slice %56 {offsets = [0, 16], sizes = [8, 8], strides = [1, 1]} : vector<8x96xbf16> to vector<8x8xbf16>
    %101 = vector.extract_strided_slice %56 {offsets = [0, 48], sizes = [8, 8], strides = [1, 1]} : vector<8x96xbf16> to vector<8x8xbf16>
    %102 = vector.extract_strided_slice %56 {offsets = [0, 80], sizes = [8, 8], strides = [1, 1]} : vector<8x96xbf16> to vector<8x8xbf16>
    %cst_62 = arith.constant dense<0.000000e+00> : vector<8x8xf32>
    %103 = tpu.matmul %100, %101, %cst_62 {dimension_numbers = #tpu.dot_dimension_numbers<[1], [1], [0], [0], [0, 0, 1, 0], [], []>} : vector<8x8xbf16>, vector<8x8xbf16>, vector<8x8xf32> -> vector<8x8xf32>
    %cst_63 = arith.constant 0.353553385 : f32
    %104 = vector.broadcast %cst_63 : f32 to vector<8x8xf32>
    %105 = arith.mulf %103, %104 : vector<8x8xf32>
    %106 = arith.addf %105, %27 : vector<8x8xf32>
    %cst_64 = arith.constant dense<0xFF800000> : vector<8xf32>
    %107 = vector.multi_reduction <maximumf>, %106, %cst_64 [1] : vector<8x8xf32> to vector<8xf32>
    %108 = vector.shape_cast %107 : vector<8xf32> to vector<8x1xf32>
    %109 = vector.broadcast %108 : vector<8x1xf32> to vector<8x8xf32>
    %110 = arith.subf %106, %109 : vector<8x8xf32>
    %111 = math.exp %110 : vector<8x8xf32>
    %cst_65 = arith.constant dense<0.000000e+00> : vector<8xf32>
    %112 = vector.multi_reduction <add>, %111, %cst_65 [1] : vector<8x8xf32> to vector<8xf32>
    %113 = vector.shape_cast %112 : vector<8xf32> to vector<8x1xf32>
    %114 = vector.broadcast %113 : vector<8x1xf32> to vector<8x8xf32>
    %115 = arith.divf %111, %114 : vector<8x8xf32>
    %116 = arith.truncf %115 : vector<8x8xf32> to vector<8x8xbf16>
    %cst_66 = arith.constant dense<0.000000e+00> : vector<8x8xf32>
    %117 = tpu.matmul %116, %102, %cst_66 {dimension_numbers = #tpu.dot_dimension_numbers<[1], [0], [0], [1], [0, 0, 1, 1], [], []>} : vector<8x8xbf16>, vector<8x8xbf16>, vector<8x8xf32> -> vector<8x8xf32>
    %118 = arith.truncf %117 : vector<8x8xf32> to vector<8x8xbf16>
    %119 = vector.extract_strided_slice %31 {offsets = [16, 0], sizes = [8, 32], strides = [1, 1]} : vector<32x32xbf16> to vector<8x32xbf16>
    %cst_67 = arith.constant dense<0.000000e+00> : vector<8x32xf32>
    %120 = tpu.matmul %118, %119, %cst_67 {dimension_numbers = #tpu.dot_dimension_numbers<[1], [0], [0], [1], [0, 0, 1, 1], [], []>} : vector<8x8xbf16>, vector<8x32xbf16>, vector<8x32xf32> -> vector<8x32xf32>
    %121 = arith.addf %99, %120 : vector<8x32xf32>
    %122 = vector.extract_strided_slice %56 {offsets = [0, 24], sizes = [8, 8], strides = [1, 1]} : vector<8x96xbf16> to vector<8x8xbf16>
    %123 = vector.extract_strided_slice %56 {offsets = [0, 56], sizes = [8, 8], strides = [1, 1]} : vector<8x96xbf16> to vector<8x8xbf16>
    %124 = vector.extract_strided_slice %56 {offsets = [0, 88], sizes = [8, 8], strides = [1, 1]} : vector<8x96xbf16> to vector<8x8xbf16>
    %cst_68 = arith.constant dense<0.000000e+00> : vector<8x8xf32>
    %125 = tpu.matmul %122, %123, %cst_68 {dimension_numbers = #tpu.dot_dimension_numbers<[1], [1], [0], [0], [0, 0, 1, 0], [], []>} : vector<8x8xbf16>, vector<8x8xbf16>, vector<8x8xf32> -> vector<8x8xf32>
    %cst_69 = arith.constant 0.353553385 : f32
    %126 = vector.broadcast %cst_69 : f32 to vector<8x8xf32>
    %127 = arith.mulf %125, %126 : vector<8x8xf32>
    %128 = arith.addf %127, %27 : vector<8x8xf32>
    %cst_70 = arith.constant dense<0xFF800000> : vector<8xf32>
    %129 = vector.multi_reduction <maximumf>, %128, %cst_70 [1] : vector<8x8xf32> to vector<8xf32>
    %130 = vector.shape_cast %129 : vector<8xf32> to vector<8x1xf32>
    %131 = vector.broadcast %130 : vector<8x1xf32> to vector<8x8xf32>
    %132 = arith.subf %128, %131 : vector<8x8xf32>
    %133 = math.exp %132 : vector<8x8xf32>
    %cst_71 = arith.constant dense<0.000000e+00> : vector<8xf32>
    %134 = vector.multi_reduction <add>, %133, %cst_71 [1] : vector<8x8xf32> to vector<8xf32>
    %135 = vector.shape_cast %134 : vector<8xf32> to vector<8x1xf32>
    %136 = vector.broadcast %135 : vector<8x1xf32> to vector<8x8xf32>
    %137 = arith.divf %133, %136 : vector<8x8xf32>
    %138 = arith.truncf %137 : vector<8x8xf32> to vector<8x8xbf16>
    %cst_72 = arith.constant dense<0.000000e+00> : vector<8x8xf32>
    %139 = tpu.matmul %138, %124, %cst_72 {dimension_numbers = #tpu.dot_dimension_numbers<[1], [0], [0], [1], [0, 0, 1, 1], [], []>} : vector<8x8xbf16>, vector<8x8xbf16>, vector<8x8xf32> -> vector<8x8xf32>
    %140 = arith.truncf %139 : vector<8x8xf32> to vector<8x8xbf16>
    %141 = vector.extract_strided_slice %31 {offsets = [24, 0], sizes = [8, 32], strides = [1, 1]} : vector<32x32xbf16> to vector<8x32xbf16>
    %cst_73 = arith.constant dense<0.000000e+00> : vector<8x32xf32>
    %142 = tpu.matmul %140, %141, %cst_73 {dimension_numbers = #tpu.dot_dimension_numbers<[1], [0], [0], [1], [0, 0, 1, 1], [], []>} : vector<8x8xbf16>, vector<8x32xbf16>, vector<8x32xf32> -> vector<8x32xf32>
    %143 = arith.addf %121, %142 : vector<8x32xf32>
    %144 = vector.broadcast %39 : vector<1x32xf32> to vector<8x32xf32>
    %145 = arith.addf %143, %144 : vector<8x32xf32>
    %146 = arith.addf %145, %23 : vector<8x32xf32>
    %cst_74 = arith.constant dense<0.000000e+00> : vector<8xf32>
    %147 = vector.multi_reduction <add>, %146, %cst_74 [1] : vector<8x32xf32> to vector<8xf32>
    %148 = vector.shape_cast %147 : vector<8xf32> to vector<8x1xf32>
    %cst_75 = arith.constant 3.200000e+01 : f32
    %149 = vector.broadcast %cst_75 : f32 to vector<8x1xf32>
    %150 = arith.divf %148, %149 : vector<8x1xf32>
    %151 = vector.broadcast %150 : vector<8x1xf32> to vector<8x32xf32>
    %152 = arith.subf %146, %151 : vector<8x32xf32>
    %153 = arith.mulf %152, %152 : vector<8x32xf32>
    %cst_76 = arith.constant dense<0.000000e+00> : vector<8xf32>
    %154 = vector.multi_reduction <add>, %153, %cst_76 [1] : vector<8x32xf32> to vector<8xf32>
    %155 = vector.shape_cast %154 : vector<8xf32> to vector<8x1xf32>
    %cst_77 = arith.constant 3.200000e+01 : f32
    %156 = vector.broadcast %cst_77 : f32 to vector<8x1xf32>
    %157 = arith.divf %155, %156 : vector<8x1xf32>
    %cst_78 = arith.constant 9.99999996E-13 : f32
    %158 = vector.broadcast %cst_78 : f32 to vector<8x1xf32>
    %159 = arith.addf %157, %158 : vector<8x1xf32>
    %160 = math.rsqrt %159 : vector<8x1xf32>
    %161 = vector.broadcast %160 : vector<8x1xf32> to vector<8x32xf32>
    %162 = arith.mulf %152, %161 : vector<8x32xf32>
    %163 = vector.broadcast %45 : vector<1x32xf32> to vector<8x32xf32>
    %164 = arith.mulf %162, %163 : vector<8x32xf32>
    %165 = vector.broadcast %47 : vector<1x32xf32> to vector<8x32xf32>
    %166 = arith.addf %164, %165 : vector<8x32xf32>
    %167 = arith.truncf %166 : vector<8x32xf32> to vector<8x32xbf16>
    %cst_79 = arith.constant dense<0.000000e+00> : vector<8x64xf32>
    %168 = tpu.matmul %167, %33, %cst_79 {dimension_numbers = #tpu.dot_dimension_numbers<[1], [0], [0], [1], [0, 0, 1, 1], [], []>} : vector<8x32xbf16>, vector<32x64xbf16>, vector<8x64xf32> -> vector<8x64xf32>
    %169 = vector.broadcast %41 : vector<1x64xf32> to vector<8x64xf32>
    %170 = arith.addf %168, %169 : vector<8x64xf32>
    %cst_80 = arith.constant 5.000000e-01 : f32
    %171 = vector.broadcast %cst_80 : f32 to vector<8x64xf32>
    %172 = arith.mulf %171, %170 : vector<8x64xf32>
    %cst_81 = arith.constant 4.471500e-02 : f32
    %173 = vector.broadcast %cst_81 : f32 to vector<8x64xf32>
    %174 = arith.mulf %173, %170 : vector<8x64xf32>
    %175 = arith.mulf %174, %170 : vector<8x64xf32>
    %176 = arith.mulf %175, %170 : vector<8x64xf32>
    %177 = arith.addf %170, %176 : vector<8x64xf32>
    %cst_82 = arith.constant 0.797884583 : f32
    %178 = vector.broadcast %cst_82 : f32 to vector<8x64xf32>
    %179 = arith.mulf %178, %177 : vector<8x64xf32>
    %180 = math.tanh %179 : vector<8x64xf32>
    %cst_83 = arith.constant 1.000000e+00 : f32
    %181 = vector.broadcast %cst_83 : f32 to vector<8x64xf32>
    %182 = arith.addf %181, %180 : vector<8x64xf32>
    %183 = arith.mulf %172, %182 : vector<8x64xf32>
    %184 = arith.truncf %183 : vector<8x64xf32> to vector<8x64xbf16>
    %cst_84 = arith.constant dense<0.000000e+00> : vector<8x32xf32>
    %185 = tpu.matmul %184, %35, %cst_84 {dimension_numbers = #tpu.dot_dimension_numbers<[1], [0], [0], [1], [0, 0, 1, 1], [], []>} : vector<8x64xbf16>, vector<64x32xbf16>, vector<8x32xf32> -> vector<8x32xf32>
    %186 = vector.broadcast %43 : vector<1x32xf32> to vector<8x32xf32>
    %187 = arith.addf %185, %186 : vector<8x32xf32>
    %188 = arith.addf %187, %166 : vector<8x32xf32>
    %cst_85 = arith.constant dense<0.000000e+00> : vector<8xf32>
    %189 = vector.multi_reduction <add>, %188, %cst_85 [1] : vector<8x32xf32> to vector<8xf32>
    %190 = vector.shape_cast %189 : vector<8xf32> to vector<8x1xf32>
    %cst_86 = arith.constant 3.200000e+01 : f32
    %191 = vector.broadcast %cst_86 : f32 to vector<8x1xf32>
    %192 = arith.divf %190, %191 : vector<8x1xf32>
    %193 = vector.broadcast %192 : vector<8x1xf32> to vector<8x32xf32>
    %194 = arith.subf %188, %193 : vector<8x32xf32>
    %195 = arith.mulf %194, %194 : vector<8x32xf32>
    %cst_87 = arith.constant dense<0.000000e+00> : vector<8xf32>
    %196 = vector.multi_reduction <add>, %195, %cst_87 [1] : vector<8x32xf32> to vector<8xf32>
    %197 = vector.shape_cast %196 : vector<8xf32> to vector<8x1xf32>
    %cst_88 = arith.constant 3.200000e+01 : f32
    %198 = vector.broadcast %cst_88 : f32 to vector<8x1xf32>
    %199 = arith.divf %197, %198 : vector<8x1xf32>
    %cst_89 = arith.constant 9.99999996E-13 : f32
    %200 = vector.broadcast %cst_89 : f32 to vector<8x1xf32>
    %201 = arith.addf %199, %200 : vector<8x1xf32>
    %202 = math.rsqrt %201 : vector<8x1xf32>
    %203 = vector.broadcast %202 : vector<8x1xf32> to vector<8x32xf32>
    %204 = arith.mulf %194, %203 : vector<8x32xf32>
    %205 = vector.broadcast %49 : vector<1x32xf32> to vector<8x32xf32>
    %206 = arith.mulf %204, %205 : vector<8x32xf32>
    %207 = vector.broadcast %51 : vector<1x32xf32> to vector<8x32xf32>
    %208 = arith.addf %206, %207 : vector<8x32xf32>
    %c1 = arith.constant 1 : index
    %c0_90 = arith.constant 0 : index
    %c0_91 = arith.constant 0 : index
    %209 = vector.load %arg5[%c1, %c0_90, %c0_91] : memref<2x32x96xbf16, #tpu.memory_space<vmem>>, vector<1x32x96xbf16>
    %210 = vector.shape_cast %209 : vector<1x32x96xbf16> to vector<32x96xbf16>
    %c1_92 = arith.constant 1 : index
    %c0_93 = arith.constant 0 : index
    %c0_94 = arith.constant 0 : index
    %211 = vector.load %arg7[%c1_92, %c0_93, %c0_94] : memref<2x32x32xbf16, #tpu.memory_space<vmem>>, vector<1x32x32xbf16>
    %212 = vector.shape_cast %211 : vector<1x32x32xbf16> to vector<32x32xbf16>
    %c1_95 = arith.constant 1 : index
    %c0_96 = arith.constant 0 : index
    %c0_97 = arith.constant 0 : index
    %213 = vector.load %arg11[%c1_95, %c0_96, %c0_97] : memref<2x32x64xbf16, #tpu.memory_space<vmem>>, vector<1x32x64xbf16>
    %214 = vector.shape_cast %213 : vector<1x32x64xbf16> to vector<32x64xbf16>
    %c1_98 = arith.constant 1 : index
    %c0_99 = arith.constant 0 : index
    %c0_100 = arith.constant 0 : index
    %215 = vector.load %arg13[%c1_98, %c0_99, %c0_100] : memref<2x64x32xbf16, #tpu.memory_space<vmem>>, vector<1x64x32xbf16>
    %216 = vector.shape_cast %215 : vector<1x64x32xbf16> to vector<64x32xbf16>
    %c1_101 = arith.constant 1 : index
    %c0_102 = arith.constant 0 : index
    %c0_103 = arith.constant 0 : index
    %217 = vector.load %arg6[%c1_101, %c0_102, %c0_103] : memref<2x1x96xf32, #tpu.memory_space<vmem>>, vector<1x1x96xf32>
    %218 = vector.shape_cast %217 : vector<1x1x96xf32> to vector<1x96xf32>
    %c1_104 = arith.constant 1 : index
    %c0_105 = arith.constant 0 : index
    %c0_106 = arith.constant 0 : index
    %219 = vector.load %arg8[%c1_104, %c0_105, %c0_106] : memref<2x1x32xf32, #tpu.memory_space<vmem>>, vector<1x1x32xf32>
    %220 = vector.shape_cast %219 : vector<1x1x32xf32> to vector<1x32xf32>
    %c1_107 = arith.constant 1 : index
    %c0_108 = arith.constant 0 : index
    %c0_109 = arith.constant 0 : index
    %221 = vector.load %arg12[%c1_107, %c0_108, %c0_109] : memref<2x1x64xf32, #tpu.memory_space<vmem>>, vector<1x1x64xf32>
    %222 = vector.shape_cast %221 : vector<1x1x64xf32> to vector<1x64xf32>
    %c1_110 = arith.constant 1 : index
    %c0_111 = arith.constant 0 : index
    %c0_112 = arith.constant 0 : index
    %223 = vector.load %arg14[%c1_110, %c0_111, %c0_112] : memref<2x1x32xf32, #tpu.memory_space<vmem>>, vector<1x1x32xf32>
    %224 = vector.shape_cast %223 : vector<1x1x32xf32> to vector<1x32xf32>
    %c1_113 = arith.constant 1 : index
    %c0_114 = arith.constant 0 : index
    %c0_115 = arith.constant 0 : index
    %225 = vector.load %arg9[%c1_113, %c0_114, %c0_115] : memref<2x1x32xf32, #tpu.memory_space<vmem>>, vector<1x1x32xf32>
    %226 = vector.shape_cast %225 : vector<1x1x32xf32> to vector<1x32xf32>
    %c1_116 = arith.constant 1 : index
    %c0_117 = arith.constant 0 : index
    %c0_118 = arith.constant 0 : index
    %227 = vector.load %arg10[%c1_116, %c0_117, %c0_118] : memref<2x1x32xf32, #tpu.memory_space<vmem>>, vector<1x1x32xf32>
    %228 = vector.shape_cast %227 : vector<1x1x32xf32> to vector<1x32xf32>
    %c1_119 = arith.constant 1 : index
    %c0_120 = arith.constant 0 : index
    %c0_121 = arith.constant 0 : index
    %229 = vector.load %arg15[%c1_119, %c0_120, %c0_121] : memref<2x1x32xf32, #tpu.memory_space<vmem>>, vector<1x1x32xf32>
    %230 = vector.shape_cast %229 : vector<1x1x32xf32> to vector<1x32xf32>
    %c1_122 = arith.constant 1 : index
    %c0_123 = arith.constant 0 : index
    %c0_124 = arith.constant 0 : index
    %231 = vector.load %arg16[%c1_122, %c0_123, %c0_124] : memref<2x1x32xf32, #tpu.memory_space<vmem>>, vector<1x1x32xf32>
    %232 = vector.shape_cast %231 : vector<1x1x32xf32> to vector<1x32xf32>
    %233 = arith.truncf %208 : vector<8x32xf32> to vector<8x32xbf16>
    %cst_125 = arith.constant dense<0.000000e+00> : vector<8x96xf32>
    %234 = tpu.matmul %233, %210, %cst_125 {dimension_numbers = #tpu.dot_dimension_numbers<[1], [0], [0], [1], [0, 0, 1, 1], [], []>} : vector<8x32xbf16>, vector<32x96xbf16>, vector<8x96xf32> -> vector<8x96xf32>
    %235 = vector.broadcast %218 : vector<1x96xf32> to vector<8x96xf32>
    %236 = arith.addf %234, %235 : vector<8x96xf32>
    %237 = arith.truncf %236 : vector<8x96xf32> to vector<8x96xbf16>
    %238 = vector.extract_strided_slice %237 {offsets = [0, 0], sizes = [8, 8], strides = [1, 1]} : vector<8x96xbf16> to vector<8x8xbf16>
    %239 = vector.extract_strided_slice %237 {offsets = [0, 32], sizes = [8, 8], strides = [1, 1]} : vector<8x96xbf16> to vector<8x8xbf16>
    %240 = vector.extract_strided_slice %237 {offsets = [0, 64], sizes = [8, 8], strides = [1, 1]} : vector<8x96xbf16> to vector<8x8xbf16>
    %cst_126 = arith.constant dense<0.000000e+00> : vector<8x8xf32>
    %241 = tpu.matmul %238, %239, %cst_126 {dimension_numbers = #tpu.dot_dimension_numbers<[1], [1], [0], [0], [0, 0, 1, 0], [], []>} : vector<8x8xbf16>, vector<8x8xbf16>, vector<8x8xf32> -> vector<8x8xf32>
    %cst_127 = arith.constant 0.353553385 : f32
    %242 = vector.broadcast %cst_127 : f32 to vector<8x8xf32>
    %243 = arith.mulf %241, %242 : vector<8x8xf32>
    %244 = arith.addf %243, %27 : vector<8x8xf32>
    %cst_128 = arith.constant dense<0xFF800000> : vector<8xf32>
    %245 = vector.multi_reduction <maximumf>, %244, %cst_128 [1] : vector<8x8xf32> to vector<8xf32>
    %246 = vector.shape_cast %245 : vector<8xf32> to vector<8x1xf32>
    %247 = vector.broadcast %246 : vector<8x1xf32> to vector<8x8xf32>
    %248 = arith.subf %244, %247 : vector<8x8xf32>
    %249 = math.exp %248 : vector<8x8xf32>
    %cst_129 = arith.constant dense<0.000000e+00> : vector<8xf32>
    %250 = vector.multi_reduction <add>, %249, %cst_129 [1] : vector<8x8xf32> to vector<8xf32>
    %251 = vector.shape_cast %250 : vector<8xf32> to vector<8x1xf32>
    %252 = vector.broadcast %251 : vector<8x1xf32> to vector<8x8xf32>
    %253 = arith.divf %249, %252 : vector<8x8xf32>
    %254 = arith.truncf %253 : vector<8x8xf32> to vector<8x8xbf16>
    %cst_130 = arith.constant dense<0.000000e+00> : vector<8x8xf32>
    %255 = tpu.matmul %254, %240, %cst_130 {dimension_numbers = #tpu.dot_dimension_numbers<[1], [0], [0], [1], [0, 0, 1, 1], [], []>} : vector<8x8xbf16>, vector<8x8xbf16>, vector<8x8xf32> -> vector<8x8xf32>
    %256 = arith.truncf %255 : vector<8x8xf32> to vector<8x8xbf16>
    %257 = vector.extract_strided_slice %212 {offsets = [0, 0], sizes = [8, 32], strides = [1, 1]} : vector<32x32xbf16> to vector<8x32xbf16>
    %cst_131 = arith.constant dense<0.000000e+00> : vector<8x32xf32>
    %258 = tpu.matmul %256, %257, %cst_131 {dimension_numbers = #tpu.dot_dimension_numbers<[1], [0], [0], [1], [0, 0, 1, 1], [], []>} : vector<8x8xbf16>, vector<8x32xbf16>, vector<8x32xf32> -> vector<8x32xf32>
    %259 = vector.extract_strided_slice %237 {offsets = [0, 8], sizes = [8, 8], strides = [1, 1]} : vector<8x96xbf16> to vector<8x8xbf16>
    %260 = vector.extract_strided_slice %237 {offsets = [0, 40], sizes = [8, 8], strides = [1, 1]} : vector<8x96xbf16> to vector<8x8xbf16>
    %261 = vector.extract_strided_slice %237 {offsets = [0, 72], sizes = [8, 8], strides = [1, 1]} : vector<8x96xbf16> to vector<8x8xbf16>
    %cst_132 = arith.constant dense<0.000000e+00> : vector<8x8xf32>
    %262 = tpu.matmul %259, %260, %cst_132 {dimension_numbers = #tpu.dot_dimension_numbers<[1], [1], [0], [0], [0, 0, 1, 0], [], []>} : vector<8x8xbf16>, vector<8x8xbf16>, vector<8x8xf32> -> vector<8x8xf32>
    %cst_133 = arith.constant 0.353553385 : f32
    %263 = vector.broadcast %cst_133 : f32 to vector<8x8xf32>
    %264 = arith.mulf %262, %263 : vector<8x8xf32>
    %265 = arith.addf %264, %27 : vector<8x8xf32>
    %cst_134 = arith.constant dense<0xFF800000> : vector<8xf32>
    %266 = vector.multi_reduction <maximumf>, %265, %cst_134 [1] : vector<8x8xf32> to vector<8xf32>
    %267 = vector.shape_cast %266 : vector<8xf32> to vector<8x1xf32>
    %268 = vector.broadcast %267 : vector<8x1xf32> to vector<8x8xf32>
    %269 = arith.subf %265, %268 : vector<8x8xf32>
    %270 = math.exp %269 : vector<8x8xf32>
    %cst_135 = arith.constant dense<0.000000e+00> : vector<8xf32>
    %271 = vector.multi_reduction <add>, %270, %cst_135 [1] : vector<8x8xf32> to vector<8xf32>
    %272 = vector.shape_cast %271 : vector<8xf32> to vector<8x1xf32>
    %273 = vector.broadcast %272 : vector<8x1xf32> to vector<8x8xf32>
    %274 = arith.divf %270, %273 : vector<8x8xf32>
    %275 = arith.truncf %274 : vector<8x8xf32> to vector<8x8xbf16>
    %cst_136 = arith.constant dense<0.000000e+00> : vector<8x8xf32>
    %276 = tpu.matmul %275, %261, %cst_136 {dimension_numbers = #tpu.dot_dimension_numbers<[1], [0], [0], [1], [0, 0, 1, 1], [], []>} : vector<8x8xbf16>, vector<8x8xbf16>, vector<8x8xf32> -> vector<8x8xf32>
    %277 = arith.truncf %276 : vector<8x8xf32> to vector<8x8xbf16>
    %278 = vector.extract_strided_slice %212 {offsets = [8, 0], sizes = [8, 32], strides = [1, 1]} : vector<32x32xbf16> to vector<8x32xbf16>
    %cst_137 = arith.constant dense<0.000000e+00> : vector<8x32xf32>
    %279 = tpu.matmul %277, %278, %cst_137 {dimension_numbers = #tpu.dot_dimension_numbers<[1], [0], [0], [1], [0, 0, 1, 1], [], []>} : vector<8x8xbf16>, vector<8x32xbf16>, vector<8x32xf32> -> vector<8x32xf32>
    %280 = arith.addf %258, %279 : vector<8x32xf32>
    %281 = vector.extract_strided_slice %237 {offsets = [0, 16], sizes = [8, 8], strides = [1, 1]} : vector<8x96xbf16> to vector<8x8xbf16>
    %282 = vector.extract_strided_slice %237 {offsets = [0, 48], sizes = [8, 8], strides = [1, 1]} : vector<8x96xbf16> to vector<8x8xbf16>
    %283 = vector.extract_strided_slice %237 {offsets = [0, 80], sizes = [8, 8], strides = [1, 1]} : vector<8x96xbf16> to vector<8x8xbf16>
    %cst_138 = arith.constant dense<0.000000e+00> : vector<8x8xf32>
    %284 = tpu.matmul %281, %282, %cst_138 {dimension_numbers = #tpu.dot_dimension_numbers<[1], [1], [0], [0], [0, 0, 1, 0], [], []>} : vector<8x8xbf16>, vector<8x8xbf16>, vector<8x8xf32> -> vector<8x8xf32>
    %cst_139 = arith.constant 0.353553385 : f32
    %285 = vector.broadcast %cst_139 : f32 to vector<8x8xf32>
    %286 = arith.mulf %284, %285 : vector<8x8xf32>
    %287 = arith.addf %286, %27 : vector<8x8xf32>
    %cst_140 = arith.constant dense<0xFF800000> : vector<8xf32>
    %288 = vector.multi_reduction <maximumf>, %287, %cst_140 [1] : vector<8x8xf32> to vector<8xf32>
    %289 = vector.shape_cast %288 : vector<8xf32> to vector<8x1xf32>
    %290 = vector.broadcast %289 : vector<8x1xf32> to vector<8x8xf32>
    %291 = arith.subf %287, %290 : vector<8x8xf32>
    %292 = math.exp %291 : vector<8x8xf32>
    %cst_141 = arith.constant dense<0.000000e+00> : vector<8xf32>
    %293 = vector.multi_reduction <add>, %292, %cst_141 [1] : vector<8x8xf32> to vector<8xf32>
    %294 = vector.shape_cast %293 : vector<8xf32> to vector<8x1xf32>
    %295 = vector.broadcast %294 : vector<8x1xf32> to vector<8x8xf32>
    %296 = arith.divf %292, %295 : vector<8x8xf32>
    %297 = arith.truncf %296 : vector<8x8xf32> to vector<8x8xbf16>
    %cst_142 = arith.constant dense<0.000000e+00> : vector<8x8xf32>
    %298 = tpu.matmul %297, %283, %cst_142 {dimension_numbers = #tpu.dot_dimension_numbers<[1], [0], [0], [1], [0, 0, 1, 1], [], []>} : vector<8x8xbf16>, vector<8x8xbf16>, vector<8x8xf32> -> vector<8x8xf32>
    %299 = arith.truncf %298 : vector<8x8xf32> to vector<8x8xbf16>
    %300 = vector.extract_strided_slice %212 {offsets = [16, 0], sizes = [8, 32], strides = [1, 1]} : vector<32x32xbf16> to vector<8x32xbf16>
    %cst_143 = arith.constant dense<0.000000e+00> : vector<8x32xf32>
    %301 = tpu.matmul %299, %300, %cst_143 {dimension_numbers = #tpu.dot_dimension_numbers<[1], [0], [0], [1], [0, 0, 1, 1], [], []>} : vector<8x8xbf16>, vector<8x32xbf16>, vector<8x32xf32> -> vector<8x32xf32>
    %302 = arith.addf %280, %301 : vector<8x32xf32>
    %303 = vector.extract_strided_slice %237 {offsets = [0, 24], sizes = [8, 8], strides = [1, 1]} : vector<8x96xbf16> to vector<8x8xbf16>
    %304 = vector.extract_strided_slice %237 {offsets = [0, 56], sizes = [8, 8], strides = [1, 1]} : vector<8x96xbf16> to vector<8x8xbf16>
    %305 = vector.extract_strided_slice %237 {offsets = [0, 88], sizes = [8, 8], strides = [1, 1]} : vector<8x96xbf16> to vector<8x8xbf16>
    %cst_144 = arith.constant dense<0.000000e+00> : vector<8x8xf32>
    %306 = tpu.matmul %303, %304, %cst_144 {dimension_numbers = #tpu.dot_dimension_numbers<[1], [1], [0], [0], [0, 0, 1, 0], [], []>} : vector<8x8xbf16>, vector<8x8xbf16>, vector<8x8xf32> -> vector<8x8xf32>
    %cst_145 = arith.constant 0.353553385 : f32
    %307 = vector.broadcast %cst_145 : f32 to vector<8x8xf32>
    %308 = arith.mulf %306, %307 : vector<8x8xf32>
    %309 = arith.addf %308, %27 : vector<8x8xf32>
    %cst_146 = arith.constant dense<0xFF800000> : vector<8xf32>
    %310 = vector.multi_reduction <maximumf>, %309, %cst_146 [1] : vector<8x8xf32> to vector<8xf32>
    %311 = vector.shape_cast %310 : vector<8xf32> to vector<8x1xf32>
    %312 = vector.broadcast %311 : vector<8x1xf32> to vector<8x8xf32>
    %313 = arith.subf %309, %312 : vector<8x8xf32>
    %314 = math.exp %313 : vector<8x8xf32>
    %cst_147 = arith.constant dense<0.000000e+00> : vector<8xf32>
    %315 = vector.multi_reduction <add>, %314, %cst_147 [1] : vector<8x8xf32> to vector<8xf32>
    %316 = vector.shape_cast %315 : vector<8xf32> to vector<8x1xf32>
    %317 = vector.broadcast %316 : vector<8x1xf32> to vector<8x8xf32>
    %318 = arith.divf %314, %317 : vector<8x8xf32>
    %319 = arith.truncf %318 : vector<8x8xf32> to vector<8x8xbf16>
    %cst_148 = arith.constant dense<0.000000e+00> : vector<8x8xf32>
    %320 = tpu.matmul %319, %305, %cst_148 {dimension_numbers = #tpu.dot_dimension_numbers<[1], [0], [0], [1], [0, 0, 1, 1], [], []>} : vector<8x8xbf16>, vector<8x8xbf16>, vector<8x8xf32> -> vector<8x8xf32>
    %321 = arith.truncf %320 : vector<8x8xf32> to vector<8x8xbf16>
    %322 = vector.extract_strided_slice %212 {offsets = [24, 0], sizes = [8, 32], strides = [1, 1]} : vector<32x32xbf16> to vector<8x32xbf16>
    %cst_149 = arith.constant dense<0.000000e+00> : vector<8x32xf32>
    %323 = tpu.matmul %321, %322, %cst_149 {dimension_numbers = #tpu.dot_dimension_numbers<[1], [0], [0], [1], [0, 0, 1, 1], [], []>} : vector<8x8xbf16>, vector<8x32xbf16>, vector<8x32xf32> -> vector<8x32xf32>
    %324 = arith.addf %302, %323 : vector<8x32xf32>
    %325 = vector.broadcast %220 : vector<1x32xf32> to vector<8x32xf32>
    %326 = arith.addf %324, %325 : vector<8x32xf32>
    %327 = arith.addf %326, %208 : vector<8x32xf32>
    %cst_150 = arith.constant dense<0.000000e+00> : vector<8xf32>
    %328 = vector.multi_reduction <add>, %327, %cst_150 [1] : vector<8x32xf32> to vector<8xf32>
    %329 = vector.shape_cast %328 : vector<8xf32> to vector<8x1xf32>
    %cst_151 = arith.constant 3.200000e+01 : f32
    %330 = vector.broadcast %cst_151 : f32 to vector<8x1xf32>
    %331 = arith.divf %329, %330 : vector<8x1xf32>
    %332 = vector.broadcast %331 : vector<8x1xf32> to vector<8x32xf32>
    %333 = arith.subf %327, %332 : vector<8x32xf32>
    %334 = arith.mulf %333, %333 : vector<8x32xf32>
    %cst_152 = arith.constant dense<0.000000e+00> : vector<8xf32>
    %335 = vector.multi_reduction <add>, %334, %cst_152 [1] : vector<8x32xf32> to vector<8xf32>
    %336 = vector.shape_cast %335 : vector<8xf32> to vector<8x1xf32>
    %cst_153 = arith.constant 3.200000e+01 : f32
    %337 = vector.broadcast %cst_153 : f32 to vector<8x1xf32>
    %338 = arith.divf %336, %337 : vector<8x1xf32>
    %cst_154 = arith.constant 9.99999996E-13 : f32
    %339 = vector.broadcast %cst_154 : f32 to vector<8x1xf32>
    %340 = arith.addf %338, %339 : vector<8x1xf32>
    %341 = math.rsqrt %340 : vector<8x1xf32>
    %342 = vector.broadcast %341 : vector<8x1xf32> to vector<8x32xf32>
    %343 = arith.mulf %333, %342 : vector<8x32xf32>
    %344 = vector.broadcast %226 : vector<1x32xf32> to vector<8x32xf32>
    %345 = arith.mulf %343, %344 : vector<8x32xf32>
    %346 = vector.broadcast %228 : vector<1x32xf32> to vector<8x32xf32>
    %347 = arith.addf %345, %346 : vector<8x32xf32>
    %348 = arith.truncf %347 : vector<8x32xf32> to vector<8x32xbf16>
    %cst_155 = arith.constant dense<0.000000e+00> : vector<8x64xf32>
    %349 = tpu.matmul %348, %214, %cst_155 {dimension_numbers = #tpu.dot_dimension_numbers<[1], [0], [0], [1], [0, 0, 1, 1], [], []>} : vector<8x32xbf16>, vector<32x64xbf16>, vector<8x64xf32> -> vector<8x64xf32>
    %350 = vector.broadcast %222 : vector<1x64xf32> to vector<8x64xf32>
    %351 = arith.addf %349, %350 : vector<8x64xf32>
    %cst_156 = arith.constant 5.000000e-01 : f32
    %352 = vector.broadcast %cst_156 : f32 to vector<8x64xf32>
    %353 = arith.mulf %352, %351 : vector<8x64xf32>
    %cst_157 = arith.constant 4.471500e-02 : f32
    %354 = vector.broadcast %cst_157 : f32 to vector<8x64xf32>
    %355 = arith.mulf %354, %351 : vector<8x64xf32>
    %356 = arith.mulf %355, %351 : vector<8x64xf32>
    %357 = arith.mulf %356, %351 : vector<8x64xf32>
    %358 = arith.addf %351, %357 : vector<8x64xf32>
    %cst_158 = arith.constant 0.797884583 : f32
    %359 = vector.broadcast %cst_158 : f32 to vector<8x64xf32>
    %360 = arith.mulf %359, %358 : vector<8x64xf32>
    %361 = math.tanh %360 : vector<8x64xf32>
    %cst_159 = arith.constant 1.000000e+00 : f32
    %362 = vector.broadcast %cst_159 : f32 to vector<8x64xf32>
    %363 = arith.addf %362, %361 : vector<8x64xf32>
    %364 = arith.mulf %353, %363 : vector<8x64xf32>
    %365 = arith.truncf %364 : vector<8x64xf32> to vector<8x64xbf16>
    %cst_160 = arith.constant dense<0.000000e+00> : vector<8x32xf32>
    %366 = tpu.matmul %365, %216, %cst_160 {dimension_numbers = #tpu.dot_dimension_numbers<[1], [0], [0], [1], [0, 0, 1, 1], [], []>} : vector<8x64xbf16>, vector<64x32xbf16>, vector<8x32xf32> -> vector<8x32xf32>
    %367 = vector.broadcast %224 : vector<1x32xf32> to vector<8x32xf32>
    %368 = arith.addf %366, %367 : vector<8x32xf32>
    %369 = arith.addf %368, %347 : vector<8x32xf32>
    %cst_161 = arith.constant dense<0.000000e+00> : vector<8xf32>
    %370 = vector.multi_reduction <add>, %369, %cst_161 [1] : vector<8x32xf32> to vector<8xf32>
    %371 = vector.shape_cast %370 : vector<8xf32> to vector<8x1xf32>
    %cst_162 = arith.constant 3.200000e+01 : f32
    %372 = vector.broadcast %cst_162 : f32 to vector<8x1xf32>
    %373 = arith.divf %371, %372 : vector<8x1xf32>
    %374 = vector.broadcast %373 : vector<8x1xf32> to vector<8x32xf32>
    %375 = arith.subf %369, %374 : vector<8x32xf32>
    %376 = arith.mulf %375, %375 : vector<8x32xf32>
    %cst_163 = arith.constant dense<0.000000e+00> : vector<8xf32>
    %377 = vector.multi_reduction <add>, %376, %cst_163 [1] : vector<8x32xf32> to vector<8xf32>
    %378 = vector.shape_cast %377 : vector<8xf32> to vector<8x1xf32>
    %cst_164 = arith.constant 3.200000e+01 : f32
    %379 = vector.broadcast %cst_164 : f32 to vector<8x1xf32>
    %380 = arith.divf %378, %379 : vector<8x1xf32>
    %cst_165 = arith.constant 9.99999996E-13 : f32
    %381 = vector.broadcast %cst_165 : f32 to vector<8x1xf32>
    %382 = arith.addf %380, %381 : vector<8x1xf32>
    %383 = math.rsqrt %382 : vector<8x1xf32>
    %384 = vector.broadcast %383 : vector<8x1xf32> to vector<8x32xf32>
    %385 = arith.mulf %375, %384 : vector<8x32xf32>
    %386 = vector.broadcast %230 : vector<1x32xf32> to vector<8x32xf32>
    %387 = arith.mulf %385, %386 : vector<8x32xf32>
    %388 = vector.broadcast %232 : vector<1x32xf32> to vector<8x32xf32>
    %389 = arith.addf %387, %388 : vector<8x32xf32>
    %390 = vector.extract_strided_slice %389 {offsets = [0, 0], sizes = [1, 32], strides = [1, 1]} : vector<8x32xf32> to vector<1x32xf32>
    %391 = arith.truncf %390 : vector<1x32xf32> to vector<1x32xbf16>
    %c0_166 = arith.constant 0 : index
    %c0_167 = arith.constant 0 : index
    %392 = vector.load %arg17[%c0_166, %c0_167] : memref<32x32xbf16, #tpu.memory_space<vmem>>, vector<32x32xbf16>
    %cst_168 = arith.constant dense<0.000000e+00> : vector<1x32xf32>
    %393 = tpu.matmul %391, %392, %cst_168 {dimension_numbers = #tpu.dot_dimension_numbers<[1], [0], [0], [1], [0, 0, 1, 1], [], []>} : vector<1x32xbf16>, vector<32x32xbf16>, vector<1x32xf32> -> vector<1x32xf32>
    %c0_169 = arith.constant 0 : index
    %c0_170 = arith.constant 0 : index
    %394 = vector.load %arg18[%c0_169, %c0_170] : memref<1x32xf32, #tpu.memory_space<vmem>>, vector<1x32xf32>
    %395 = arith.addf %393, %394 : vector<1x32xf32>
    %396 = math.tanh %395 : vector<1x32xf32>
    %397 = arith.truncf %396 : vector<1x32xf32> to vector<1x32xbf16>
    %c0_171 = arith.constant 0 : index
    %c0_172 = arith.constant 0 : index
    %398 = vector.load %arg19[%c0_171, %c0_172] : memref<32x128xbf16, #tpu.memory_space<vmem>>, vector<32x128xbf16>
    %cst_173 = arith.constant dense<0.000000e+00> : vector<1x128xf32>
    %399 = tpu.matmul %397, %398, %cst_173 {dimension_numbers = #tpu.dot_dimension_numbers<[1], [0], [0], [1], [0, 0, 1, 1], [], []>} : vector<1x32xbf16>, vector<32x128xbf16>, vector<1x128xf32> -> vector<1x128xf32>
    %c0_174 = arith.constant 0 : index
    %c0_175 = arith.constant 0 : index
    %400 = vector.load %arg20[%c0_174, %c0_175] : memref<1x128xf32, #tpu.memory_space<vmem>>, vector<1x128xf32>
    %401 = arith.addf %399, %400 : vector<1x128xf32>
    %c0_176 = arith.constant 0 : index
    %c0_177 = arith.constant 0 : index
    %c0_178 = arith.constant 0 : index
    %402 = vector.load %arg21[%c0_176, %c0_177, %c0_178] : memref<1x1x128xf32, #tpu.memory_space<vmem>>, vector<1x1x128xf32>
    %403 = vector.shape_cast %402 : vector<1x1x128xf32> to vector<1x128xf32>
    %404 = vector.shape_cast %401 : vector<1x128xf32> to vector<1x1x128xf32>
    tpu.vector_store %arg21[%c0_176, %c0_177, %c0_178], %404 {strides = array<i32>} : memref<1x1x128xf32, #tpu.memory_space<vmem>>, vector<1x1x128xf32>,
    return
  }
  func.func @transform_0(%arg0: i32) -> (i32, i32, i32) {
    %c0_i32 = arith.constant 0 : i32
    %c0_i32_0 = arith.constant 0 : i32
    %c0_i32_1 = arith.constant 0 : i32
    return %arg0, %c0_i32, %c0_i32_0 : i32, i32, i32
  }
  func.func @transform_1(%arg0: i32) -> (i32, i32, i32) {
    %c0_i32 = arith.constant 0 : i32
    %c0_i32_0 = arith.constant 0 : i32
    %c0_i32_1 = arith.constant 0 : i32
    return %arg0, %c0_i32, %c0_i32_0 : i32, i32, i32
  }
  func.func @transform_2(%arg0: i32) -> (i32, i32) {
    %c0_i32 = arith.constant 0 : i32
    %c0_i32_0 = arith.constant 0 : i32
    %c0_i32_1 = arith.constant 0 : i32
    return %c0_i32, %c0_i32_0 : i32, i32
  }
  func.func @transform_3(%arg0: i32) -> (i32, i32) {
    %c0_i32 = arith.constant 0 : i32
    %c0_i32_0 = arith.constant 0 : i32
    %c0_i32_1 = arith.constant 0 : i32
    return %c0_i32, %c0_i32_0 : i32, i32
  }
  func.func @transform_4(%arg0: i32) -> (i32, i32, i32) {
    %c0_i32 = arith.constant 0 : i32
    %c0_i32_0 = arith.constant 0 : i32
    %c0_i32_1 = arith.constant 0 : i32
    %c0_i32_2 = arith.constant 0 : i32
    return %c0_i32, %c0_i32_0, %c0_i32_1 : i32, i32, i32
  }
  func.func @transform_5(%arg0: i32) -> (i32, i32, i32) {
    %c0_i32 = arith.constant 0 : i32
    %c0_i32_0 = arith.constant 0 : i32
    %c0_i32_1 = arith.constant 0 : i32
    %c0_i32_2 = arith.constant 0 : i32
    return %c0_i32, %c0_i32_0, %c0_i32_1 : i32, i32, i32
  }
  func.func @transform_6(%arg0: i32) -> (i32, i32, i32) {
    %c0_i32 = arith.constant 0 : i32
    %c0_i32_0 = arith.constant 0 : i32
    %c0_i32_1 = arith.constant 0 : i32
    %c0_i32_2 = arith.constant 0 : i32
    return %c0_i32, %c0_i32_0, %c0_i32_1 : i32, i32, i32
  }
  func.func @transform_7(%arg0: i32) -> (i32, i32, i32) {
    %c0_i32 = arith.constant 0 : i32
    %c0_i32_0 = arith.constant 0 : i32
    %c0_i32_1 = arith.constant 0 : i32
    %c0_i32_2 = arith.constant 0 : i32
    return %c0_i32, %c0_i32_0, %c0_i32_1 : i32, i32, i32
  }
  func.func @transform_8(%arg0: i32) -> (i32, i32, i32) {
    %c0_i32 = arith.constant 0 : i32
    %c0_i32_0 = arith.constant 0 : i32
    %c0_i32_1 = arith.constant 0 : i32
    %c0_i32_2 = arith.constant 0 : i32
    return %c0_i32, %c0_i32_0, %c0_i32_1 : i32, i32, i32
  }
  func.func @transform_9(%arg0: i32) -> (i32, i32, i32) {
    %c0_i32 = arith.constant 0 : i32
    %c0_i32_0 = arith.constant 0 : i32
    %c0_i32_1 = arith.constant 0 : i32
    %c0_i32_2 = arith.constant 0 : i32
    return %c0_i32, %c0_i32_0, %c0_i32_1 : i32, i32, i32
  }
  func.func @transform_10(%arg0: i32) -> (i32, i32, i32) {
    %c0_i32 = arith.constant 0 : i32
    %c0_i32_0 = arith.constant 0 : i32
    %c0_i32_1 = arith.constant 0 : i32
    %c0_i32_2 = arith.constant 0 : i32
    return %c0_i32, %c0_i32_0, %c0_i32_1 : i32, i32, i32
  }
  func.func @transform_11(%arg0: i32) -> (i32, i32, i32) {
    %c0_i32 = arith.constant 0 : i32
    %c0_i32_0 = arith.constant 0 : i32
    %c0_i32_1 = arith.constant 0 : i32
    %c0_i32_2 = arith.constant 0 : i32
    return %c0_i32, %c0_i32_0, %c0_i32_1 : i32, i32, i32
  }
  func.func @transform_12(%arg0: i32) -> (i32, i32, i32) {
    %c0_i32 = arith.constant 0 : i32
    %c0_i32_0 = arith.constant 0 : i32
    %c0_i32_1 = arith.constant 0 : i32
    %c0_i32_2 = arith.constant 0 : i32
    return %c0_i32, %c0_i32_0, %c0_i32_1 : i32, i32, i32
  }
  func.func @transform_13(%arg0: i32) -> (i32, i32, i32) {
    %c0_i32 = arith.constant 0 : i32
    %c0_i32_0 = arith.constant 0 : i32
    %c0_i32_1 = arith.constant 0 : i32
    %c0_i32_2 = arith.constant 0 : i32
    return %c0_i32, %c0_i32_0, %c0_i32_1 : i32, i32, i32
  }
  func.func @transform_14(%arg0: i32) -> (i32, i32, i32) {
    %c0_i32 = arith.constant 0 : i32
    %c0_i32_0 = arith.constant 0 : i32
    %c0_i32_1 = arith.constant 0 : i32
    %c0_i32_2 = arith.constant 0 : i32
    return %c0_i32, %c0_i32_0, %c0_i32_1 : i32, i32, i32
  }
  func.func @transform_15(%arg0: i32) -> (i32, i32, i32) {
    %c0_i32 = arith.constant 0 : i32
    %c0_i32_0 = arith.constant 0 : i32
    %c0_i32_1 = arith.constant 0 : i32
    %c0_i32_2 = arith.constant 0 : i32
    return %c0_i32, %c0_i32_0, %c0_i32_1 : i32, i32, i32
  }
  func.func @transform_16(%arg0: i32) -> (i32, i32) {
    %c0_i32 = arith.constant 0 : i32
    %c0_i32_0 = arith.constant 0 : i32
    %c0_i32_1 = arith.constant 0 : i32
    return %c0_i32, %c0_i32_0 : i32, i32
  }
  func.func @transform_17(%arg0: i32) -> (i32, i32) {
    %c0_i32 = arith.constant 0 : i32
    %c0_i32_0 = arith.constant 0 : i32
    %c0_i32_1 = arith.constant 0 : i32
    return %c0_i32, %c0_i32_0 : i32, i32
  }
  func.func @transform_18(%arg0: i32) -> (i32, i32) {
    %c0_i32 = arith.constant 0 : i32
    %c0_i32_0 = arith.constant 0 : i32
    %c0_i32_1 = arith.constant 0 : i32
    return %c0_i32, %c0_i32_0 : i32, i32
  }
  func.func @transform_19(%arg0: i32) -> (i32, i32) {
    %c0_i32 = arith.constant 0 : i32
    %c0_i32_0 = arith.constant 0 : i32
    %c0_i32_1 = arith.constant 0 : i32
    return %c0_i32, %c0_i32_0 : i32, i32
  }
  func.func @transform_20(%arg0: i32) -> (i32, i32, i32) {
    %c0_i32 = arith.constant 0 : i32
    %c0_i32_0 = arith.constant 0 : i32
    %c0_i32_1 = arith.constant 0 : i32
    return %arg0, %c0_i32, %c0_i32_0 : i32, i32, i32
  }
}

</mosaic_0001>

<llo_original>
// kernel: encoder_model_forward.1
$region0: #{encoder_model_forward.1}
  #allocation0 [shape = 'u32[]', space=smem, size = 0x4, offset = 0x4, fixed_abs, tag = 'smem constant byte address 0x4 - core index']
  #allocation1 [shape = 'u32[144,128]{1,0:T(1,128)}', space=vmem, size = 0x12000, scoped, tag = 'internal scratch']
  %s0 = inlined_call_operand.vmem [shape: f32[2,8,32], index: 0, kind: input, shape index: {}]
  %s1 = inlined_call_operand.vmem [shape: f32[2,1,8], index: 1, kind: input, shape index: {}]
  %s2 = inlined_call_operand.vmem [shape: f32[1,32], index: 2, kind: input, shape index: {}]
  %s3 = inlined_call_operand.vmem [shape: f32[1,32], index: 3, kind: input, shape index: {}]
  %s4 = inlined_call_operand.vmem [shape: bf16[2,32,96], index: 4, kind: input, shape index: {}]
  %s5 = inlined_call_operand.vmem [shape: f32[2,1,96], index: 5, kind: input, shape index: {}]
  %s6 = inlined_call_operand.vmem [shape: bf16[2,32,32], index: 6, kind: input, shape index: {}]
  %s7 = inlined_call_operand.vmem [shape: f32[2,1,32], index: 7, kind: input, shape index: {}]
  %s8 = inlined_call_operand.vmem [shape: f32[2,1,32], index: 8, kind: input, shape index: {}]
  %s9 = inlined_call_operand.vmem [shape: f32[2,1,32], index: 9, kind: input, shape index: {}]
  %s10 = inlined_call_operand.vmem [shape: bf16[2,32,64], index: 10, kind: input, shape index: {}]
  %s11 = inlined_call_operand.vmem [shape: f32[2,1,64], index: 11, kind: input, shape index: {}]
  %s12 = inlined_call_operand.vmem [shape: bf16[2,64,32], index: 12, kind: input, shape index: {}]
  %s13 = inlined_call_operand.vmem [shape: f32[2,1,32], index: 13, kind: input, shape index: {}]
  %s14 = inlined_call_operand.vmem [shape: f32[2,1,32], index: 14, kind: input, shape index: {}]
  %s15 = inlined_call_operand.vmem [shape: f32[2,1,32], index: 15, kind: input, shape index: {}]
  %s16 = inlined_call_operand.vmem [shape: bf16[32,32], index: 16, kind: input, shape index: {}]
  %s17 = inlined_call_operand.vmem [shape: f32[1,32], index: 17, kind: input, shape index: {}]
  %s18 = inlined_call_operand.vmem [shape: bf16[32,128], index: 18, kind: input, shape index: {}]
  %s19 = inlined_call_operand.vmem [shape: f32[1,128], index: 19, kind: input, shape index: {}]
  %s20 = inlined_call_operand.hbm [shape: f32[2,1,128], index: 20, kind: output, shape index: {}]
  %s21 = sld [smem:[#allocation0]]
  $region113: #{encoder_model_forward.1} parent=0
    _
  %s23 = ssub.s32 1, %s21
  %s24 = scalar_select 0, %s23, %s21
  $region1: #{encoder_model_forward.1} parent=0
    #allocation2 [shape = 'u8[1024]{0}', space=vmem, size = 0x400, scoped, tag = 'output window, operand 0']
    #allocation3 [shape = 's32[2]{0}', space=sflag, size = 0x8, scoped, tag = 'scoped memory for encoder_model_forward.1']
    %25 = vsyncpa [#allocation3], 0
    %s26 = scalar_lea.sflag [#allocation3], 1
    %27 = vsyncpa %s26, 0
    loop: start=0, step=1, limit=4
    $region2: #{encoder_model_forward.1} parent=1 // loop_pre_header
      _
    $region3: #{encoder_model_forward.1} parent=1 // loop_header
      %s29 = sphi 0, %s33
      %p30 = scmp.ge.s32.totalorder %s29, 4
      %s39 = sphi 0, %s41
      %s42 = sphi 0, %s39
      %s43 = sphi 0, %s42
      %s59 = sphi 0, %s43
      %s65 = sphi 0, %s67
      %s68 = sphi 0, %s65
      %s69 = sphi 0, %s68
      %s85 = sphi 0, %s69
      %s89 = sphi 0, %s89
      %s91 = sphi 0, %s89
      %s92 = sphi 0, %s91
      %s106 = sphi 0, %s92
      %s110 = sphi 0, %s110
      %s112 = sphi 0, %s110
      %s113 = sphi 0, %s112
      %s127 = sphi 0, %s113
      %s131 = sphi 0, %s131
      %s133 = sphi 0, %s131
      %s134 = sphi 0, %s133
      %s148 = sphi 0, %s134
      %s152 = sphi 0, %s152
      %s154 = sphi 0, %s152
      %s155 = sphi 0, %s154
      %s169 = sphi 0, %s155
      %s173 = sphi 0, %s173
      %s175 = sphi 0, %s173
      %s176 = sphi 0, %s175
      %s190 = sphi 0, %s176
      %s194 = sphi 0, %s194
      %s196 = sphi 0, %s194
      %s197 = sphi 0, %s196
      %s211 = sphi 0, %s197
      %s215 = sphi 0, %s215
      %s217 = sphi 0, %s215
      %s218 = sphi 0, %s217
      %s232 = sphi 0, %s218
      %s236 = sphi 0, %s236
      %s238 = sphi 0, %s236
      %s239 = sphi 0, %s238
      %s253 = sphi 0, %s239
      %s257 = sphi 0, %s257
      %s259 = sphi 0, %s257
      %s260 = sphi 0, %s259
      %s274 = sphi 0, %s260
      %s278 = sphi 0, %s278
      %s280 = sphi 0, %s278
      %s281 = sphi 0, %s280
      %s295 = sphi 0, %s281
      %s299 = sphi 0, %s299
      %s301 = sphi 0, %s299
      %s302 = sphi 0, %s301
      %s316 = sphi 0, %s302
      %s320 = sphi 0, %s320
      %s322 = sphi 0, %s320
      %s323 = sphi 0, %s322
      %s337 = sphi 0, %s323
      %s341 = sphi 0, %s341
      %s343 = sphi 0, %s341
      %s344 = sphi 0, %s343
      %s358 = sphi 0, %s344
      %s362 = sphi 0, %s362
      %s364 = sphi 0, %s362
      %s365 = sphi 0, %s364
      %s379 = sphi 0, %s365
      %s383 = sphi 0, %s383
      %s385 = sphi 0, %s383
      %s386 = sphi 0, %s385
      %s400 = sphi 0, %s386
      %s404 = sphi 0, %s404
      %s406 = sphi 0, %s404
      %s407 = sphi 0, %s406
      %s421 = sphi 0, %s407
      %s425 = sphi 0, %s425
      %s427 = sphi 0, %s425
      %s428 = sphi 0, %s427
      %s442 = sphi 0, %s428
      %s446 = sphi 0, %s446
      %s448 = sphi 0, %s446
      %s449 = sphi 0, %s448
      %s463 = sphi 0, %s449
      %s469 = sphi 0, %s471
      %s472 = sphi 0, %s469
      %s473 = sphi 0, %s472
      %s489 = sphi 0, %s473
    $region4: #{encoder_model_forward.1} parent=1 // loop_header_branch
      %32 = sbr.rel (%p30) target = $region8
    $region5: #{encoder_model_forward.1} parent=1 // loop_body
      %s34 = ssub.s32 %s29, 1
      %s35 = ssub.s32 %s29, 2
      %s36 = sadd.s32 %s29, 1
      %s37 = ssub.s32 %s29, %s36
      %p38 = scmp.eq.s32.totalorder %s37, 0
      %s40 = sadd.s32 %s39, 1
      %s41 = scalar_select %p38, %s39, %s40
      %p44 = pneg %p38
      %p45 = scmp.eq.s32.totalorder %s29, 1
      %p46 = por %p44, %p45
      %p47 = scmp.ne.s32.totalorder %s39, %s42
      %p48 = scmp.eq.s32.totalorder %s29, 0
      %p49 = por %p47, %p48
      %p50 = scmp.ne.s32.totalorder %s39, %s42
      %p51 = scmp.eq.s32.totalorder %s34, 1
      %p52 = por %p50, %p51
      %p53 = scmp.ne.s32.totalorder %s42, %s43
      %p54 = scmp.eq.s32.totalorder %s34, 0
      %p55 = por %p53, %p54
      %p56 = scmp.ne.s32.totalorder %s42, %s43
      %p57 = scmp.eq.s32.totalorder %s35, 1
      %p58 = por %p56, %p57
      %p60 = scmp.ne.s32.totalorder %s43, %s59
      %p61 = scmp.eq.s32.totalorder %s35, 0
      %p62 = por %p60, %p61
      %s63 = ssub.s32 %s29, %s36
      %p64 = scmp.eq.s32.totalorder %s63, 0
      %s66 = sadd.s32 %s65, 1
      %s67 = scalar_select %p64, %s65, %s66
      %p70 = pneg %p64
      %p71 = scmp.eq.s32.totalorder %s29, 1
      %p72 = por %p70, %p71
      %p73 = scmp.ne.s32.totalorder %s65, %s68
      %p74 = scmp.eq.s32.totalorder %s29, 0
      %p75 = por %p73, %p74
      %p76 = scmp.ne.s32.totalorder %s65, %s68
      %p77 = scmp.eq.s32.totalorder %s34, 1
      %p78 = por %p76, %p77
      %p79 = scmp.ne.s32.totalorder %s68, %s69
      %p80 = scmp.eq.s32.totalorder %s34, 0
      %p81 = por %p79, %p80
      %p82 = scmp.ne.s32.totalorder %s68, %s69
      %p83 = scmp.eq.s32.totalorder %s35, 1
      %p84 = por %p82, %p83
      %p86 = scmp.ne.s32.totalorder %s69, %s85
      %p87 = scmp.eq.s32.totalorder %s35, 0
      %p88 = por %p86, %p87
      %s90 = sadd.s32 %s89, 1
      %p93 = scmp.eq.s32.totalorder %s29, 1
      %p94 = scmp.ne.s32.totalorder %s89, %s91
      %p95 = scmp.eq.s32.totalorder %s29, 0
      %p96 = por %p94, %p95
      %p97 = scmp.ne.s32.totalorder %s89, %s91
      %p98 = scmp.eq.s32.totalorder %s34, 1
      %p99 = por %p97, %p98
      %p100 = scmp.ne.s32.totalorder %s91, %s92
      %p101 = scmp.eq.s32.totalorder %s34, 0
      %p102 = por %p100, %p101
      %p103 = scmp.ne.s32.totalorder %s91, %s92
      %p104 = scmp.eq.s32.totalorder %s35, 1
      %p105 = por %p103, %p104
      %p107 = scmp.ne.s32.totalorder %s92, %s106
      %p108 = scmp.eq.s32.totalorder %s35, 0
      %p109 = por %p107, %p108
      %s111 = sadd.s32 %s110, 1
      %p114 = scmp.eq.s32.totalorder %s29, 1
      %p115 = scmp.ne.s32.totalorder %s110, %s112
      %p116 = scmp.eq.s32.totalorder %s29, 0
      %p117 = por %p115, %p116
      %p118 = scmp.ne.s32.totalorder %s110, %s112
      %p119 = scmp.eq.s32.totalorder %s34, 1
      %p120 = por %p118, %p119
      %p121 = scmp.ne.s32.totalorder %s112, %s113
      %p122 = scmp.eq.s32.totalorder %s34, 0
      %p123 = por %p121, %p122
      %p124 = scmp.ne.s32.totalorder %s112, %s113
      %p125 = scmp.eq.s32.totalorder %s35, 1
      %p126 = por %p124, %p125
      %p128 = scmp.ne.s32.totalorder %s113, %s127
      %p129 = scmp.eq.s32.totalorder %s35, 0
      %p130 = por %p128, %p129
      %s132 = sadd.s32 %s131, 1
      %p135 = scmp.eq.s32.totalorder %s29, 1
      %p136 = scmp.ne.s32.totalorder %s131, %s133
      %p137 = scmp.eq.s32.totalorder %s29, 0
      %p138 = por %p136, %p137
      %p139 = scmp.ne.s32.totalorder %s131, %s133
      %p140 = scmp.eq.s32.totalorder %s34, 1
      %p141 = por %p139, %p140
      %p142 = scmp.ne.s32.totalorder %s133, %s134
      %p143 = scmp.eq.s32.totalorder %s34, 0
      %p144 = por %p142, %p143
      %p145 = scmp.ne.s32.totalorder %s133, %s134
      %p146 = scmp.eq.s32.totalorder %s35, 1
      %p147 = por %p145, %p146
      %p149 = scmp.ne.s32.totalorder %s134, %s148
      %p150 = scmp.eq.s32.totalorder %s35, 0
      %p151 = por %p149, %p150
      %s153 = sadd.s32 %s152, 1
      %p156 = scmp.eq.s32.totalorder %s29, 1
      %p157 = scmp.ne.s32.totalorder %s152, %s154
      %p158 = scmp.eq.s32.totalorder %s29, 0
      %p159 = por %p157, %p158
      %p160 = scmp.ne.s32.totalorder %s152, %s154
      %p161 = scmp.eq.s32.totalorder %s34, 1
      %p162 = por %p160, %p161
      %p163 = scmp.ne.s32.totalorder %s154, %s155
      %p164 = scmp.eq.s32.totalorder %s34, 0
      %p165 = por %p163, %p164
      %p166 = scmp.ne.s32.totalorder %s154, %s155
      %p167 = scmp.eq.s32.totalorder %s35, 1
      %p168 = por %p166, %p167
      %p170 = scmp.ne.s32.totalorder %s155, %s169
      %p171 = scmp.eq.s32.totalorder %s35, 0
      %p172 = por %p170, %p171
      %s174 = sadd.s32 %s173, 1
      %p177 = scmp.eq.s32.totalorder %s29, 1
      %p178 = scmp.ne.s32.totalorder %s173, %s175
      %p179 = scmp.eq.s32.totalorder %s29, 0
      %p180 = por %p178, %p179
      %p181 = scmp.ne.s32.totalorder %s173, %s175
      %p182 = scmp.eq.s32.totalorder %s34, 1
      %p183 = por %p181, %p182
      %p184 = scmp.ne.s32.totalorder %s175, %s176
      %p185 = scmp.eq.s32.totalorder %s34, 0
      %p186 = por %p184, %p185
      %p187 = scmp.ne.s32.totalorder %s175, %s176
      %p188 = scmp.eq.s32.totalorder %s35, 1
      %p189 = por %p187, %p188
      %p191 = scmp.ne.s32.totalorder %s176, %s190
      %p192 = scmp.eq.s32.totalorder %s35, 0
      %p193 = por %p191, %p192
      %s195 = sadd.s32 %s194, 1
      %p198 = scmp.eq.s32.totalorder %s29, 1
      %p199 = scmp.ne.s32.totalorder %s194, %s196
      %p200 = scmp.eq.s32.totalorder %s29, 0
      %p201 = por %p199, %p200
      %p202 = scmp.ne.s32.totalorder %s194, %s196
      %p203 = scmp.eq.s32.totalorder %s34, 1
      %p204 = por %p202, %p203
      %p205 = scmp.ne.s32.totalorder %s196, %s197
      %p206 = scmp.eq.s32.totalorder %s34, 0
      %p207 = por %p205, %p206
      %p208 = scmp.ne.s32.totalorder %s196, %s197
      %p209 = scmp.eq.s32.totalorder %s35, 1
      %p210 = por %p208, %p209
      %p212 = scmp.ne.s32.totalorder %s197, %s211
      %p213 = scmp.eq.s32.totalorder %s35, 0
      %p214 = por %p212, %p213
      %s216 = sadd.s32 %s215, 1
      %p219 = scmp.eq.s32.totalorder %s29, 1
      %p220 = scmp.ne.s32.totalorder %s215, %s217
      %p221 = scmp.eq.s32.totalorder %s29, 0
      %p222 = por %p220, %p221
      %p223 = scmp.ne.s32.totalorder %s215, %s217
      %p224 = scmp.eq.s32.totalorder %s34, 1
      %p225 = por %p223, %p224
      %p226 = scmp.ne.s32.totalorder %s217, %s218
      %p227 = scmp.eq.s32.totalorder %s34, 0
      %p228 = por %p226, %p227
      %p229 = scmp.ne.s32.totalorder %s217, %s218
      %p230 = scmp.eq.s32.totalorder %s35, 1
      %p231 = por %p229, %p230
      %p233 = scmp.ne.s32.totalorder %s218, %s232
      %p234 = scmp.eq.s32.totalorder %s35, 0
      %p235 = por %p233, %p234
      %s237 = sadd.s32 %s236, 1
      %p240 = scmp.eq.s32.totalorder %s29, 1
      %p241 = scmp.ne.s32.totalorder %s236, %s238
      %p242 = scmp.eq.s32.totalorder %s29, 0
      %p243 = por %p241, %p242
      %p244 = scmp.ne.s32.totalorder %s236, %s238
      %p245 = scmp.eq.s32.totalorder %s34, 1
      %p246 = por %p244, %p245
      %p247 = scmp.ne.s32.totalorder %s238, %s239
      %p248 = scmp.eq.s32.totalorder %s34, 0
      %p249 = por %p247, %p248
      %p250 = scmp.ne.s32.totalorder %s238, %s239
      %p251 = scmp.eq.s32.totalorder %s35, 1
      %p252 = por %p250, %p251
      %p254 = scmp.ne.s32.totalorder %s239, %s253
      %p255 = scmp.eq.s32.totalorder %s35, 0
      %p256 = por %p254, %p255
      %s258 = sadd.s32 %s257, 1
      %p261 = scmp.eq.s32.totalorder %s29, 1
      %p262 = scmp.ne.s32.totalorder %s257, %s259
      %p263 = scmp.eq.s32.totalorder %s29, 0
      %p264 = por %p262, %p263
      %p265 = scmp.ne.s32.totalorder %s257, %s259
      %p266 = scmp.eq.s32.totalorder %s34, 1
      %p267 = por %p265, %p266
      %p268 = scmp.ne.s32.totalorder %s259, %s260
      %p269 = scmp.eq.s32.totalorder %s34, 0
      %p270 = por %p268, %p269
      %p271 = scmp.ne.s32.totalorder %s259, %s260
      %p272 = scmp.eq.s32.totalorder %s35, 1
      %p273 = por %p271, %p272
      %p275 = scmp.ne.s32.totalorder %s260, %s274
      %p276 = scmp.eq.s32.totalorder %s35, 0
      %p277 = por %p275, %p276
      %s279 = sadd.s32 %s278, 1
      %p282 = scmp.eq.s32.totalorder %s29, 1
      %p283 = scmp.ne.s32.totalorder %s278, %s280
      %p284 = scmp.eq.s32.totalorder %s29, 0
      %p285 = por %p283, %p284
      %p286 = scmp.ne.s32.totalorder %s278, %s280
      %p287 = scmp.eq.s32.totalorder %s34, 1
      %p288 = por %p286, %p287
      %p289 = scmp.ne.s32.totalorder %s280, %s281
      %p290 = scmp.eq.s32.totalorder %s34, 0
      %p291 = por %p289, %p290
      %p292 = scmp.ne.s32.totalorder %s280, %s281
      %p293 = scmp.eq.s32.totalorder %s35, 1
      %p294 = por %p292, %p293
      %p296 = scmp.ne.s32.totalorder %s281, %s295
      %p297 = scmp.eq.s32.totalorder %s35, 0
      %p298 = por %p296, %p297
      %s300 = sadd.s32 %s299, 1
      %p303 = scmp.eq.s32.totalorder %s29, 1
      %p304 = scmp.ne.s32.totalorder %s299, %s301
      %p305 = scmp.eq.s32.totalorder %s29, 0
      %p306 = por %p304, %p305
      %p307 = scmp.ne.s32.totalorder %s299, %s301
      %p308 = scmp.eq.s32.totalorder %s34, 1
      %p309 = por %p307, %p308
      %p310 = scmp.ne.s32.totalorder %s301, %s302
      %p311 = scmp.eq.s32.totalorder %s34, 0
      %p312 = por %p310, %p311
      %p313 = scmp.ne.s32.totalorder %s301, %s302
      %p314 = scmp.eq.s32.totalorder %s35, 1
      %p315 = por %p313, %p314
      %p317 = scmp.ne.s32.totalorder %s302, %s316
      %p318 = scmp.eq.s32.totalorder %s35, 0
      %p319 = por %p317, %p318
      %s321 = sadd.s32 %s320, 1
      %p324 = scmp.eq.s32.totalorder %s29, 1
      %p325 = scmp.ne.s32.totalorder %s320, %s322
      %p326 = scmp.eq.s32.totalorder %s29, 0
      %p327 = por %p325, %p326
      %p328 = scmp.ne.s32.totalorder %s320, %s322
      %p329 = scmp.eq.s32.totalorder %s34, 1
      %p330 = por %p328, %p329
      %p331 = scmp.ne.s32.totalorder %s322, %s323
      %p332 = scmp.eq.s32.totalorder %s34, 0
      %p333 = por %p331, %p332
      %p334 = scmp.ne.s32.totalorder %s322, %s323
      %p335 = scmp.eq.s32.totalorder %s35, 1
      %p336 = por %p334, %p335
      %p338 = scmp.ne.s32.totalorder %s323, %s337
      %p339 = scmp.eq.s32.totalorder %s35, 0
      %p340 = por %p338, %p339
      %s342 = sadd.s32 %s341, 1
      %p345 = scmp.eq.s32.totalorder %s29, 1
      %p346 = scmp.ne.s32.totalorder %s341, %s343
      %p347 = scmp.eq.s32.totalorder %s29, 0
      %p348 = por %p346, %p347
      %p349 = scmp.ne.s32.totalorder %s341, %s343
      %p350 = scmp.eq.s32.totalorder %s34, 1
      %p351 = por %p349, %p350
      %p352 = scmp.ne.s32.totalorder %s343, %s344
      %p353 = scmp.eq.s32.totalorder %s34, 0
      %p354 = por %p352, %p353
      %p355 = scmp.ne.s32.totalorder %s343, %s344
      %p356 = scmp.eq.s32.totalorder %s35, 1
      %p357 = por %p355, %p356
      %p359 = scmp.ne.s32.totalorder %s344, %s358
      %p360 = scmp.eq.s32.totalorder %s35, 0
      %p361 = por %p359, %p360
      %s363 = sadd.s32 %s362, 1
      %p366 = scmp.eq.s32.totalorder %s29, 1
      %p367 = scmp.ne.s32.totalorder %s362, %s364
      %p368 = scmp.eq.s32.totalorder %s29, 0
      %p369 = por %p367, %p368
      %p370 = scmp.ne.s32.totalorder %s362, %s364
      %p371 = scmp.eq.s32.totalorder %s34, 1
      %p372 = por %p370, %p371
      %p373 = scmp.ne.s32.totalorder %s364, %s365
      %p374 = scmp.eq.s32.totalorder %s34, 0
      %p375 = por %p373, %p374
      %p376 = scmp.ne.s32.totalorder %s364, %s365
      %p377 = scmp.eq.s32.totalorder %s35, 1
      %p378 = por %p376, %p377
      %p380 = scmp.ne.s32.totalorder %s365, %s379
      %p381 = scmp.eq.s32.totalorder %s35, 0
      %p382 = por %p380, %p381
      %s384 = sadd.s32 %s383, 1
      %p387 = scmp.eq.s32.totalorder %s29, 1
      %p388 = scmp.ne.s32.totalorder %s383, %s385
      %p389 = scmp.eq.s32.totalorder %s29, 0
      %p390 = por %p388, %p389
      %p391 = scmp.ne.s32.totalorder %s383, %s385
      %p392 = scmp.eq.s32.totalorder %s34, 1
      %p393 = por %p391, %p392
      %p394 = scmp.ne.s32.totalorder %s385, %s386
      %p395 = scmp.eq.s32.totalorder %s34, 0
      %p396 = por %p394, %p395
      %p397 = scmp.ne.s32.totalorder %s385, %s386
      %p398 = scmp.eq.s32.totalorder %s35, 1
      %p399 = por %p397, %p398
      %p401 = scmp.ne.s32.totalorder %s386, %s400
      %p402 = scmp.eq.s32.totalorder %s35, 0
      %p403 = por %p401, %p402
      %s405 = sadd.s32 %s404, 1
      %p408 = scmp.eq.s32.totalorder %s29, 1
      %p409 = scmp.ne.s32.totalorder %s404, %s406
      %p410 = scmp.eq.s32.totalorder %s29, 0
      %p411 = por %p409, %p410
      %p412 = scmp.ne.s32.totalorder %s404, %s406
      %p413 = scmp.eq.s32.totalorder %s34, 1
      %p414 = por %p412, %p413
      %p415 = scmp.ne.s32.totalorder %s406, %s407
      %p416 = scmp.eq.s32.totalorder %s34, 0
      %p417 = por %p415, %p416
      %p418 = scmp.ne.s32.totalorder %s406, %s407
      %p419 = scmp.eq.s32.totalorder %s35, 1
      %p420 = por %p418, %p419
      %p422 = scmp.ne.s32.totalorder %s407, %s421
      %p423 = scmp.eq.s32.totalorder %s35, 0
      %p424 = por %p422, %p423
      %s426 = sadd.s32 %s425, 1
      %p429 = scmp.eq.s32.totalorder %s29, 1
      %p430 = scmp.ne.s32.totalorder %s425, %s427
      %p431 = scmp.eq.s32.totalorder %s29, 0
      %p432 = por %p430, %p431
      %p433 = scmp.ne.s32.totalorder %s425, %s427
      %p434 = scmp.eq.s32.totalorder %s34, 1
      %p435 = por %p433, %p434
      %p436 = scmp.ne.s32.totalorder %s427, %s428
      %p437 = scmp.eq.s32.totalorder %s34, 0
      %p438 = por %p436, %p437
      %p439 = scmp.ne.s32.totalorder %s427, %s428
      %p440 = scmp.eq.s32.totalorder %s35, 1
      %p441 = por %p439, %p440
      %p443 = scmp.ne.s32.totalorder %s428, %s442
      %p444 = scmp.eq.s32.totalorder %s35, 0
      %p445 = por %p443, %p444
      %s447 = sadd.s32 %s446, 1
      %p450 = scmp.eq.s32.totalorder %s29, 1
      %p451 = scmp.ne.s32.totalorder %s446, %s448
      %p452 = scmp.eq.s32.totalorder %s29, 0
      %p453 = por %p451, %p452
      %p454 = scmp.ne.s32.totalorder %s446, %s448
      %p455 = scmp.eq.s32.totalorder %s34, 1
      %p456 = por %p454, %p455
      %p457 = scmp.ne.s32.totalorder %s448, %s449
      %p458 = scmp.eq.s32.totalorder %s34, 0
      %p459 = por %p457, %p458
      %p460 = scmp.ne.s32.totalorder %s448, %s449
      %p461 = scmp.eq.s32.totalorder %s35, 1
      %p462 = por %p460, %p461
      %p464 = scmp.ne.s32.totalorder %s449, %s463
      %p465 = scmp.eq.s32.totalorder %s35, 0
      %p466 = por %p464, %p465
      %s467 = ssub.s32 %s29, %s36
      %p468 = scmp.eq.s32.totalorder %s467, 0
      %s470 = sadd.s32 %s469, 1
      %s471 = scalar_select %p468, %s469, %s470
      %p474 = pneg %p468
      %p475 = scmp.eq.s32.totalorder %s29, 1
      %p476 = por %p474, %p475
      %p477 = scmp.ne.s32.totalorder %s469, %s472
      %p478 = scmp.eq.s32.totalorder %s29, 0
      %p479 = por %p477, %p478
      %p480 = scmp.ne.s32.totalorder %s469, %s472
      %p481 = scmp.eq.s32.totalorder %s34, 1
      %p482 = por %p480, %p481
      %p483 = scmp.ne.s32.totalorder %s472, %s473
      %p484 = scmp.eq.s32.totalorder %s34, 0
      %p485 = por %p483, %p484
      %p486 = scmp.ne.s32.totalorder %s472, %s473
      %p487 = scmp.eq.s32.totalorder %s35, 1
      %p488 = por %p486, %p487
      %p490 = scmp.ne.s32.totalorder %s473, %s489
      %p491 = scmp.eq.s32.totalorder %s35, 0
      %p492 = por %p490, %p491
      %p493 = scmp.le.s32.totalorder 1, %s29
      %p494 = scmp.lt.s32.totalorder %s29, 3
      %p495 = pnand %p493, %p494
      %p496 = pneg %p495
      // Predicated region
      $region9: #{encoder_model_forward.1} parent=5 // pred_check
        _
      $region10: #{encoder_model_forward.1} parent=5 // pred_check_branch
        %498 = sbr.rel (%p495) target = $region12
      $region11: #{encoder_model_forward.1} parent=5 // pred_region
        %s499 = ssub.s32 %s29, 1
        // Predicated region
        $region13: #{encoder_model_forward.1} parent=11 // pred_check
          %p500 = pneg %p102
        $region14: #{encoder_model_forward.1} parent=11 // pred_check_branch
          %502 = sbr.rel (%p500) target = $region16
        $region15: #{encoder_model_forward.1} parent=11 // pred_region
          _
        $region16: #{encoder_model_forward.1} parent=11 // pred_fallthru
          _
        // Predicated region
        $region17: #{encoder_model_forward.1} parent=11 // pred_check
          %p503 = pneg %p123
        $region18: #{encoder_model_forward.1} parent=11 // pred_check_branch
          %505 = sbr.rel (%p503) target = $region20
        $region19: #{encoder_model_forward.1} parent=11 // pred_region
          _
        $region20: #{encoder_model_forward.1} parent=11 // pred_fallthru
          _
        // Predicated region
        $region21: #{encoder_model_forward.1} parent=11 // pred_check
          %p506 = pneg %p144
        $region22: #{encoder_model_forward.1} parent=11 // pred_check_branch
          %508 = sbr.rel (%p506) target = $region24
        $region23: #{encoder_model_forward.1} parent=11 // pred_region
          _
        $region24: #{encoder_model_forward.1} parent=11 // pred_fallthru
          _
        // Predicated region
        $region25: #{encoder_model_forward.1} parent=11 // pred_check
          %p509 = pneg %p165
        $region26: #{encoder_model_forward.1} parent=11 // pred_check_branch
          %511 = sbr.rel (%p509) target = $region28
        $region27: #{encoder_model_forward.1} parent=11 // pred_region
          _
        $region28: #{encoder_model_forward.1} parent=11 // pred_fallthru
          _
        // Predicated region
        $region29: #{encoder_model_forward.1} parent=11 // pred_check
          %p512 = pneg %p186
        $region30: #{encoder_model_forward.1} parent=11 // pred_check_branch
          %514 = sbr.rel (%p512) target = $region32
        $region31: #{encoder_model_forward.1} parent=11 // pred_region
          _
        $region32: #{encoder_model_forward.1} parent=11 // pred_fallthru
          _
        // Predicated region
        $region33: #{encoder_model_forward.1} parent=11 // pred_check
          %p515 = pneg %p207
        $region34: #{encoder_model_forward.1} parent=11 // pred_check_branch
          %517 = sbr.rel (%p515) target = $region36
        $region35: #{encoder_model_forward.1} parent=11 // pred_region
          _
        $region36: #{encoder_model_forward.1} parent=11 // pred_fallthru
          _
        // Predicated region
        $region37: #{encoder_model_forward.1} parent=11 // pred_check
          %p518 = pneg %p228
        $region38: #{encoder_model_forward.1} parent=11 // pred_check_branch
          %520 = sbr.rel (%p518) target = $region40
        $region39: #{encoder_model_forward.1} parent=11 // pred_region
          _
        $region40: #{encoder_model_forward.1} parent=11 // pred_fallthru
          _
        // Predicated region
        $region41: #{encoder_model_forward.1} parent=11 // pred_check
          %p521 = pneg %p249
        $region42: #{encoder_model_forward.1} parent=11 // pred_check_branch
          %523 = sbr.rel (%p521) target = $region44
        $region43: #{encoder_model_forward.1} parent=11 // pred_region
          _
        $region44: #{encoder_model_forward.1} parent=11 // pred_fallthru
          _
        // Predicated region
        $region45: #{encoder_model_forward.1} parent=11 // pred_check
          %p524 = pneg %p270
        $region46: #{encoder_model_forward.1} parent=11 // pred_check_branch
          %526 = sbr.rel (%p524) target = $region48
        $region47: #{encoder_model_forward.1} parent=11 // pred_region
          _
        $region48: #{encoder_model_forward.1} parent=11 // pred_fallthru
          _
        // Predicated region
        $region49: #{encoder_model_forward.1} parent=11 // pred_check
          %p527 = pneg %p291
        $region50: #{encoder_model_forward.1} parent=11 // pred_check_branch
          %529 = sbr.rel (%p527) target = $region52
        $region51: #{encoder_model_forward.1} parent=11 // pred_region
          _
        $region52: #{encoder_model_forward.1} parent=11 // pred_fallthru
          _
        // Predicated region
        $region53: #{encoder_model_forward.1} parent=11 // pred_check
          %p530 = pneg %p312
        $region54: #{encoder_model_forward.1} parent=11 // pred_check_branch
          %532 = sbr.rel (%p530) target = $region56
        $region55: #{encoder_model_forward.1} parent=11 // pred_region
          _
        $region56: #{encoder_model_forward.1} parent=11 // pred_fallthru
          _
        // Predicated region
        $region57: #{encoder_model_forward.1} parent=11 // pred_check
          %p533 = pneg %p333
        $region58: #{encoder_model_forward.1} parent=11 // pred_check_branch
          %535 = sbr.rel (%p533) target = $region60
        $region59: #{encoder_model_forward.1} parent=11 // pred_region
          _
        $region60: #{encoder_model_forward.1} parent=11 // pred_fallthru
          _
        // Predicated region
        $region61: #{encoder_model_forward.1} parent=11 // pred_check
          %p536 = pneg %p354
        $region62: #{encoder_model_forward.1} parent=11 // pred_check_branch
          %538 = sbr.rel (%p536) target = $region64
        $region63: #{encoder_model_forward.1} parent=11 // pred_region
          _
        $region64: #{encoder_model_forward.1} parent=11 // pred_fallthru
          _
        // Predicated region
        $region65: #{encoder_model_forward.1} parent=11 // pred_check
          %p539 = pneg %p375
        $region66: #{encoder_model_forward.1} parent=11 // pred_check_branch
          %541 = sbr.rel (%p539) target = $region68
        $region67: #{encoder_model_forward.1} parent=11 // pred_region
          _
        $region68: #{encoder_model_forward.1} parent=11 // pred_fallthru
          _
        // Predicated region
        $region69: #{encoder_model_forward.1} parent=11 // pred_check
          %p542 = pneg %p396
        $region70: #{encoder_model_forward.1} parent=11 // pred_check_branch
          %544 = sbr.rel (%p542) target = $region72
        $region71: #{encoder_model_forward.1} parent=11 // pred_region
          _
        $region72: #{encoder_model_forward.1} parent=11 // pred_fallthru
          _
        // Predicated region
        $region73: #{encoder_model_forward.1} parent=11 // pred_check
          %p545 = pneg %p417
        $region74: #{encoder_model_forward.1} parent=11 // pred_check_branch
          %547 = sbr.rel (%p545) target = $region76
        $region75: #{encoder_model_forward.1} parent=11 // pred_region
          _
        $region76: #{encoder_model_forward.1} parent=11 // pred_fallthru
          _
        // Predicated region
        $region77: #{encoder_model_forward.1} parent=11 // pred_check
          %p548 = pneg %p438
        $region78: #{encoder_model_forward.1} parent=11 // pred_check_branch
          %550 = sbr.rel (%p548) target = $region80
        $region79: #{encoder_model_forward.1} parent=11 // pred_region
          _
        $region80: #{encoder_model_forward.1} parent=11 // pred_fallthru
          _
        // Predicated region
        $region81: #{encoder_model_forward.1} parent=11 // pred_check
          %p551 = pneg %p459
        $region82: #{encoder_model_forward.1} parent=11 // pred_check_branch
          %553 = sbr.rel (%p551) target = $region84
        $region83: #{encoder_model_forward.1} parent=11 // pred_region
          _
        $region84: #{encoder_model_forward.1} parent=11 // pred_fallthru
          _
      $region12: #{encoder_model_forward.1} parent=5 // pred_fallthru
        _
      %p554 = scmp.lt.s32.totalorder %s29, 2
      // Predicated region
      $region85: #{encoder_model_forward.1} parent=5 // pred_check
        %p555 = pneg %p554
      $region86: #{encoder_model_forward.1} parent=5 // pred_check_branch
        %557 = sbr.rel (%p555) target = $region88
      $region87: #{encoder_model_forward.1} parent=5 // pred_region
        // Predicated region
        $region89: #{encoder_model_forward.1} parent=87 // pred_check
          %p558 = pneg %p49
        $region90: #{encoder_model_forward.1} parent=87 // pred_check_branch
          %560 = sbr.rel (%p558) target = $region92
        $region91: #{encoder_model_forward.1} parent=87 // pred_region
          %p561 = scmp.lt.s32.totalorder %s29, 1
          %s562 = scalar_select %p561, %s29, 1
          %s563 = smul.addr %s562, 8
          %s564 = scalar_lea.vmem %s0, %s563
        $region92: #{encoder_model_forward.1} parent=87 // pred_fallthru
          _
        // Predicated region
        $region93: #{encoder_model_forward.1} parent=87 // pred_check
          %p565 = pneg %p75
        $region94: #{encoder_model_forward.1} parent=87 // pred_check_branch
          %567 = sbr.rel (%p565) target = $region96
        $region95: #{encoder_model_forward.1} parent=87 // pred_region
          %p568 = scmp.lt.s32.totalorder %s29, 1
          %s569 = scalar_select %p568, %s29, 1
          %s570 = scalar_lea.vmem %s1, %s569
        $region96: #{encoder_model_forward.1} parent=87 // pred_fallthru
          _
      $region88: #{encoder_model_forward.1} parent=5 // pred_fallthru
        _
      %p571 = scmp.le.s32.totalorder 1, %s29
      %p572 = scmp.lt.s32.totalorder %s29, 3
      %p573 = pnand %p571, %p572
      %p574 = pneg %p573
      // Predicated region
      $region97: #{encoder_model_forward.1} parent=5 // pred_check
        _
      $region98: #{encoder_model_forward.1} parent=5 // pred_check_branch
        %576 = sbr.rel (%p573) target = $region100
      $region99: #{encoder_model_forward.1} parent=5 // pred_region
        %s577 = ssub.s32 %s29, 1
        %p578 = scmp.lt.s32.totalorder %s34, 1
        %s579 = scalar_select %p578, %s34, 1
        %s580 = smul.addr %s579, 8
        %s581 = scalar_lea.vmem %s0, %s580
        %p582 = pneg %p55
        %p583 = pneg %p52
        %p584 = scmp.lt.s32.totalorder %s34, 1
        %s585 = scalar_select %p584, %s34, 1
        %s586 = scalar_lea.vmem %s1, %s585
        %p587 = pneg %p81
        %p588 = pneg %p78
        %p589 = pneg %p102
        %p590 = pneg %p99
        %p591 = pneg %p123
        %p592 = pneg %p120
        %p593 = pneg %p144
        %p594 = pneg %p141
        %p595 = pneg %p165
        %p596 = pneg %p162
        %p597 = pneg %p186
        %p598 = pneg %p183
        %p599 = pneg %p207
        %p600 = pneg %p204
        %p601 = pneg %p228
        %p602 = pneg %p225
        %p603 = pneg %p249
        %p604 = pneg %p246
        %p605 = pneg %p270
        %p606 = pneg %p267
        %p607 = pneg %p291
        %p608 = pneg %p288
        %p609 = pneg %p312
        %p610 = pneg %p309
        %p611 = pneg %p333
        %p612 = pneg %p330
        %p613 = pneg %p354
        %p614 = pneg %p351
        %p615 = pneg %p375
        %p616 = pneg %p372
        %p617 = pneg %p396
        %p618 = pneg %p393
        %p619 = pneg %p417
        %p620 = pneg %p414
        %p621 = pneg %p438
        %p622 = pneg %p435
        %p623 = pneg %p459
        %p624 = pneg %p456
        %p625 = pneg %p485
        %p626 = pneg %p482
        %s627 = sand.u32 %s472, 1
        %s628 = scalar_lea.sflag [#allocation3], %s627
        %s629 = sand.u32 %s472, 1
        %s630 = scalar_lea.vmem [#allocation2], %s629
        %p631 = scmp.lt.s32.totalorder %s34, 1
        %s632 = scalar_select %p631, %s34, 1
        %s633 = smul.addr %s632, 8
        %s634 = scalar_lea.vmem %s0, %s633
        %p635 = scmp.lt.s32.totalorder %s34, 1
        %s636 = scalar_select %p635, %s34, 1
        %s637 = scalar_lea.vmem %s1, %s636
        %v639 = vld [vmem:[%s634] sm:$0xff]
        %v640 = vld [vmem:[%s2] sm:$0x1]
        %v641 = vld [vmem:[%s3] sm:$0x1]
        %vm642 = vcmask 261120
        %v643 = vsel %vm642, %v639, 0.0
        %644 = vadd.xlane.f32.xlu0 %v643
        %v645 = vpop.xlane.xlu0 %644
        %v646 = vrcp.pop 32.0
        %v647 = vmul.f32 %v645, %v646
        %v648 = vsub.f32 %v639, %v647
        %v649 = vmul.f32 %v648, %v648
        %v650 = vsel %vm642, %v649, 0.0
        %651 = vadd.xlane.f32.xlu0 %v650
        %v652 = vpop.xlane.xlu0 %651
        %v653 = vmul.f32 %v652, %v646
        %v654 = vadd.f32 %v653, 1e-12
        %v655 = vrsqrt.pop %v654
        %v656 = vmul.f32 %v648, %v655
        %v658 = vlaneseq
        %v659 = vshrl.u32 %v658, 7
        %v660 = vsub.s32 0, %v659
        %v661 = vrot.slane %v640, %v660
        %v663 = vmul.f32 %v656, %v661
        %v665 = vlaneseq
        %v666 = vshrl.u32 %v665, 7
        %v667 = vsub.s32 0, %v666
        %v668 = vrot.slane %v641, %v667
        %v670 = vadd.f32 %v663, %v668
        %v671 = vld [vmem:[%s637] sm:$0x1]
        %v673 = vlaneseq
        %v674 = vshrl.u32 %v673, 7
        %v675 = vsub.s32 0, %v674
        %v676 = vrot.slane %v671, %v675
        %v678 = vld [vmem:[%s4] sm:$0xf]
        %v679 = vld [vmem:[%s4 + $0x4] sm:$0xf]
        %v680 = vld [vmem:[%s4 + $0x8] sm:$0xf]
        %v681 = vld [vmem:[%s4 + $0xc] sm:$0xf]
        %v682 = vld [vmem:[%s6] sm:$0xf]
        %v683 = vld [vmem:[%s6 + $0x4] sm:$0xf]
        %v684 = vld [vmem:[%s6 + $0x8] sm:$0xf]
        %v685 = vld [vmem:[%s6 + $0xc] sm:$0xf]
        %v686 = vld [vmem:[%s10] sm:$0xf]
        %v687 = vld [vmem:[%s10 + $0x4] sm:$0xf]
        %v688 = vld [vmem:[%s10 + $0x8] sm:$0xf]
        %v689 = vld [vmem:[%s10 + $0xc] sm:$0xf]
        %v690 = vld [vmem:[%s12] sm:$0xf]
        %v691 = vld [vmem:[%s12 + $0x4] sm:$0xf]
        %v692 = vld [vmem:[%s12 + $0x8] sm:$0xf]
        %v693 = vld [vmem:[%s12 + $0xc] sm:$0xf]
        %v694 = vld [vmem:[%s12 + $0x10] sm:$0xf]
        %v695 = vld [vmem:[%s12 + $0x14] sm:$0xf]
        %v696 = vld [vmem:[%s12 + $0x18] sm:$0xf]
        %v697 = vld [vmem:[%s12 + $0x1c] sm:$0xf]
        %v698 = vld [vmem:[%s5] sm:$0x1]
        %v699 = vld [vmem:[%s7] sm:$0x1]
        %v700 = vld [vmem:[%s11] sm:$0x1]
        %v701 = vld [vmem:[%s13] sm:$0x1]
        %v702 = vld [vmem:[%s8] sm:$0x1]
        %v703 = vld [vmem:[%s9] sm:$0x1]
        %v704 = vld [vmem:[%s14] sm:$0x1]
        %v705 = vld [vmem:[%s15] sm:$0x1]
        %v706 = vpack.c.bf16 %v670, %v670
        %v708 = vlaneseq
        %v709 = vshrl.u32 %v708, 7
        %v710 = vsub.s32 0, %v709
        %v711 = vrot.slane %v698, %v710
        %v717 = vunpack.c.l.b16 %v678
        %v718 = vunpack.c.l.b16 %v679
        %v719 = vunpack.c.l.b16 %v680
        %v720 = vunpack.c.l.b16 %v681
        %v721 = vpack.c.b16 %v718, %v717
        %v722 = vpack.c.b16 %v720, %v719
        %v726 = vsel %vm642, %v706, 0
        %728 = vmatprep.subr.bf16.mxu0 0
        %729 = vmatpush1.bf16.msra.mxu0 %v721
        %730 = vmatprep.subr.bf16.mxu0 0
        %731 = vmatpush1.bf16.msra.mxu0 %v722
        %732 = vmatprep.subr.bf16.mxu0 0
        %733 = vmatpush1.bf16.msra.mxu0 0
        %734 = vmatprep.subr.bf16.mxu0 0
        %735 = vmatpush1.bf16.msra.mxu0 0
        %736 = vmatprep.subr.bf16.mxu0 0
        %737 = vmatpush1.bf16.msra.mxu0 0
        %738 = vmatprep.subr.bf16.mxu0 0
        %739 = vmatpush1.bf16.msra.mxu0 0
        %740 = vmatprep.subr.bf16.mxu0 0
        %741 = vmatpush1.bf16.msra.mxu0 0
        %742 = vmatprep.subr.bf16.mxu0 0
        %743 = vmatpush1.bf16.msra.mxu0 0
        %744 = vmatprep.subr.bf16.mxu0 0
        %745 = vmatpush1.bf16.msra.mxu0 0
        %746 = vmatprep.subr.bf16.mxu0 0
        %747 = vmatpush1.bf16.msra.mxu0 0
        %748 = vmatprep.subr.bf16.mxu0 0
        %749 = vmatpush1.bf16.msra.mxu0 0
        %750 = vmatprep.subr.bf16.mxu0 0
        %751 = vmatpush1.bf16.msra.mxu0 0
        %752 = vmatprep.subr.bf16.mxu0 0
        %753 = vmatpush1.bf16.msra.mxu0 0
        %754 = vmatprep.subr.bf16.mxu0 0
        %755 = vmatpush1.bf16.msra.mxu0 0
        %756 = vmatprep.subr.bf16.mxu0 0
        %757 = vmatpush1.bf16.msra.mxu0 0
        %758 = vmatprep.subr.bf16.mxu0 0
        %759 = vmatpush1.bf16.msra.mxu0 0
        %760 = vmatprep.mubr.bf16.mxu0 0
        %761 = vmatmul.mubr.bf16.gmra.mrb[0].mxu0 %v726
        %v762 = vpop.f32.mrb[0].mxu0
        %v763 = vadd.f32 %v711, %v762
        %v764 = vpop.f32.mrb[0].mxu0
        %v765 = vpop.f32.mrb[0].mxu0
        %v766 = vpop.f32.mrb[0].mxu0
        %767 = vdwg.mxu0
        %v768 = vpack.c.bf16 %v763, %v763
        %770 = vrot.lane.b32.xlu0 %v768, 96
        %v771 = vpop.permute.xlu0 %770
        %vm772 = vcmask 64512
        %v774 = vsel %vm772, %v768, 0
        %v777 = vsel %vm772, %v771, 0
        %779 = vmatprep.subr.bf16.mxu0 0
        %780 = vmatpush1.bf16.xpose.msra.mxu0 %v777
        %781 = vmatprep.subr.bf16.mxu0 0
        %782 = vmatpush1.bf16.xpose.msra.mxu0 0
        %783 = vmatprep.subr.bf16.mxu0 0
        %784 = vmatpush1.bf16.xpose.msra.mxu0 0
        %785 = vmatprep.subr.bf16.mxu0 0
        %786 = vmatpush1.bf16.xpose.msra.mxu0 0
        %787 = vmatprep.subr.bf16.mxu0 0
        %788 = vmatpush1.bf16.xpose.msra.mxu0 0
        %789 = vmatprep.subr.bf16.mxu0 0
        %790 = vmatpush1.bf16.xpose.msra.mxu0 0
        %791 = vmatprep.subr.bf16.mxu0 0
        %792 = vmatpush1.bf16.xpose.msra.mxu0 0
        %793 = vmatprep.subr.bf16.mxu0 0
        %794 = vmatpush1.bf16.xpose.msra.mxu0 0
        %795 = vmatprep.subr.bf16.mxu0 0
        %796 = vmatpush1.bf16.xpose.msra.mxu0 0
        %797 = vmatprep.subr.bf16.mxu0 0
        %798 = vmatpush1.bf16.xpose.msra.mxu0 0
        %799 = vmatprep.subr.bf16.mxu0 0
        %800 = vmatpush1.bf16.xpose.msra.mxu0 0
        %801 = vmatprep.subr.bf16.mxu0 0
        %802 = vmatpush1.bf16.xpose.msra.mxu0 0
        %803 = vmatprep.subr.bf16.mxu0 0
        %804 = vmatpush1.bf16.xpose.msra.mxu0 0
        %805 = vmatprep.subr.bf16.mxu0 0
        %806 = vmatpush1.bf16.xpose.msra.mxu0 0
        %807 = vmatprep.subr.bf16.mxu0 0
        %808 = vmatpush1.bf16.xpose.msra.mxu0 0
        %809 = vmatprep.subr.bf16.mxu0 0
        %810 = vmatpush1.bf16.xpose.msra.mxu0 0
        %811 = vmatprep.mubr.bf16.mxu0 0
        %812 = vmatmul.mubr.bf16.gmra.mrb[0].mxu0 %v774
        %v813 = vpop.f32.mrb[0].mxu0
        %v814 = vadd.f32 0.0, %v813
        %v815 = vpop.f32.mrb[0].mxu0
        %v816 = vpop.f32.mrb[0].mxu0
        %v817 = vpop.f32.mrb[0].mxu0
        %818 = vdwg.mxu0
        %v819 = vmul.f32 %v814, 0.35355338
        %v820 = vadd.f32 %v819, %v676
        %v821 = vsel %vm772, %v820, -inf
        %822 = vmax.xlane.f32.xlu0 %v821
        %v823 = vpop.xlane.xlu0 %822
        %v824 = vsub.f32 %v820, %v823
        %v825 = vmul.f32 %v824, 1.442695
        %v826 = vpow.pop %v825
        %v827 = vsel %vm772, %v826, 0.0
        %828 = vadd.xlane.f32.xlu0 %v827
        %v829 = vpop.xlane.xlu0 %828
        %v830 = vrcp.pop %v829
        %v831 = vmul.f32 %v826, %v830
        %v832 = vpack.c.bf16 %v831, %v831
        %833 = vrot.lane.b32.xlu0 %v768, 64
        %v834 = vpop.permute.xlu0 %833
        %v836 = vsel %vm772, %v832, 0
        %vm838 = vcmask 1043456
        %v840 = vsel %vm838, %v834, 0
        %842 = vmatprep.subr.bf16.mxu0 0
        %843 = vmatpush1.bf16.msra.mxu0 %v840
        %844 = vmatprep.subr.bf16.mxu0 0
        %845 = vmatpush1.bf16.msra.mxu0 0
        %846 = vmatprep.subr.bf16.mxu0 0
        %847 = vmatpush1.bf16.msra.mxu0 0
        %848 = vmatprep.subr.bf16.mxu0 0
        %849 = vmatpush1.bf16.msra.mxu0 0
        %850 = vmatprep.subr.bf16.mxu0 0
        %851 = vmatpush1.bf16.msra.mxu0 0
        %852 = vmatprep.subr.bf16.mxu0 0
        %853 = vmatpush1.bf16.msra.mxu0 0
        %854 = vmatprep.subr.bf16.mxu0 0
        %855 = vmatpush1.bf16.msra.mxu0 0
        %856 = vmatprep.subr.bf16.mxu0 0
        %857 = vmatpush1.bf16.msra.mxu0 0
        %858 = vmatprep.subr.bf16.mxu0 0
        %859 = vmatpush1.bf16.msra.mxu0 0
        %860 = vmatprep.subr.bf16.mxu0 0
        %861 = vmatpush1.bf16.msra.mxu0 0
        %862 = vmatprep.subr.bf16.mxu0 0
        %863 = vmatpush1.bf16.msra.mxu0 0
        %864 = vmatprep.subr.bf16.mxu0 0
        %865 = vmatpush1.bf16.msra.mxu0 0
        %866 = vmatprep.subr.bf16.mxu0 0
        %867 = vmatpush1.bf16.msra.mxu0 0
        %868 = vmatprep.subr.bf16.mxu0 0
        %869 = vmatpush1.bf16.msra.mxu0 0
        %870 = vmatprep.subr.bf16.mxu0 0
        %871 = vmatpush1.bf16.msra.mxu0 0
        %872 = vmatprep.subr.bf16.mxu0 0
        %873 = vmatpush1.bf16.msra.mxu0 0
        %874 = vmatprep.mubr.bf16.mxu0 0
        %875 = vmatmul.mubr.bf16.gmra.mrb[0].mxu0 %v836
        %v876 = vpop.f32.mrb[0].mxu0
        %v877 = vadd.f32 0.0, %v876
        %v878 = vpop.f32.mrb[0].mxu0
        %v879 = vpop.f32.mrb[0].mxu0
        %v880 = vpop.f32.mrb[0].mxu0
        %881 = vdwg.mxu0
        %v882 = vpack.c.bf16 %v877, %v877
        %883 = vrot.lane.b32.xlu0 %v768, 120
        %v884 = vpop.permute.xlu0 %883
        %885 = vrot.lane.b32.xlu0 %v768, 88
        %v886 = vpop.permute.xlu0 %885
        %v888 = vsel %vm772, %v884, 0
        %v891 = vsel %vm772, %v886, 0
        %893 = vmatprep.subr.bf16.mxu0 0
        %894 = vmatpush1.bf16.xpose.msra.mxu0 %v891
        %895 = vmatprep.subr.bf16.mxu0 0
        %896 = vmatpush1.bf16.xpose.msra.mxu0 0
        %897 = vmatprep.subr.bf16.mxu0 0
        %898 = vmatpush1.bf16.xpose.msra.mxu0 0
        %899 = vmatprep.subr.bf16.mxu0 0
        %900 = vmatpush1.bf16.xpose.msra.mxu0 0
        %901 = vmatprep.subr.bf16.mxu0 0
        %902 = vmatpush1.bf16.xpose.msra.mxu0 0
        %903 = vmatprep.subr.bf16.mxu0 0
        %904 = vmatpush1.bf16.xpose.msra.mxu0 0
        %905 = vmatprep.subr.bf16.mxu0 0
        %906 = vmatpush1.bf16.xpose.msra.mxu0 0
        %907 = vmatprep.subr.bf16.mxu0 0
        %908 = vmatpush1.bf16.xpose.msra.mxu0 0
        %909 = vmatprep.subr.bf16.mxu0 0
        %910 = vmatpush1.bf16.xpose.msra.mxu0 0
        %911 = vmatprep.subr.bf16.mxu0 0
        %912 = vmatpush1.bf16.xpose.msra.mxu0 0
        %913 = vmatprep.subr.bf16.mxu0 0
        %914 = vmatpush1.bf16.xpose.msra.mxu0 0
        %915 = vmatprep.subr.bf16.mxu0 0
        %916 = vmatpush1.bf16.xpose.msra.mxu0 0
        %917 = vmatprep.subr.bf16.mxu0 0
        %918 = vmatpush1.bf16.xpose.msra.mxu0 0
        %919 = vmatprep.subr.bf16.mxu0 0
        %920 = vmatpush1.bf16.xpose.msra.mxu0 0
        %921 = vmatprep.subr.bf16.mxu0 0
        %922 = vmatpush1.bf16.xpose.msra.mxu0 0
        %923 = vmatprep.subr.bf16.mxu0 0
        %924 = vmatpush1.bf16.xpose.msra.mxu0 0
        %925 = vmatprep.mubr.bf16.mxu0 0
        %926 = vmatmul.mubr.bf16.gmra.mrb[0].mxu0 %v888
        %v927 = vpop.f32.mrb[0].mxu0
        %v928 = vadd.f32 0.0, %v927
        %v929 = vpop.f32.mrb[0].mxu0
        %v930 = vpop.f32.mrb[0].mxu0
        %v931 = vpop.f32.mrb[0].mxu0
        %932 = vdwg.mxu0
        %v933 = vmul.f32 %v928, 0.35355338
        %v934 = vadd.f32 %v933, %v676
        %v935 = vsel %vm772, %v934, -inf
        %936 = vmax.xlane.f32.xlu0 %v935
        %v937 = vpop.xlane.xlu0 %936
        %v938 = vsub.f32 %v934, %v937
        %v939 = vmul.f32 %v938, 1.442695
        %v940 = vpow.pop %v939
        %v941 = vsel %vm772, %v940, 0.0
        %942 = vadd.xlane.f32.xlu0 %v941
        %v943 = vpop.xlane.xlu0 %942
        %v944 = vrcp.pop %v943
        %v945 = vmul.f32 %v940, %v944
        %v946 = vpack.c.bf16 %v945, %v945
        %947 = vrot.lane.b32.xlu0 %v768, 56
        %v948 = vpop.permute.xlu0 %947
        %v950 = vsel %vm772, %v946, 0
        %v953 = vsel %vm838, %v948, 0
        %955 = vmatprep.subr.bf16.mxu0 0
        %956 = vmatpush1.bf16.msra.mxu0 %v953
        %957 = vmatprep.subr.bf16.mxu0 0
        %958 = vmatpush1.bf16.msra.mxu0 0
        %959 = vmatprep.subr.bf16.mxu0 0
        %960 = vmatpush1.bf16.msra.mxu0 0
        %961 = vmatprep.subr.bf16.mxu0 0
        %962 = vmatpush1.bf16.msra.mxu0 0
        %963 = vmatprep.subr.bf16.mxu0 0
        %964 = vmatpush1.bf16.msra.mxu0 0
        %965 = vmatprep.subr.bf16.mxu0 0
        %966 = vmatpush1.bf16.msra.mxu0 0
        %967 = vmatprep.subr.bf16.mxu0 0
        %968 = vmatpush1.bf16.msra.mxu0 0
        %969 = vmatprep.subr.bf16.mxu0 0
        %970 = vmatpush1.bf16.msra.mxu0 0
        %971 = vmatprep.subr.bf16.mxu0 0
        %972 = vmatpush1.bf16.msra.mxu0 0
        %973 = vmatprep.subr.bf16.mxu0 0
        %974 = vmatpush1.bf16.msra.mxu0 0
        %975 = vmatprep.subr.bf16.mxu0 0
        %976 = vmatpush1.bf16.msra.mxu0 0
        %977 = vmatprep.subr.bf16.mxu0 0
        %978 = vmatpush1.bf16.msra.mxu0 0
        %979 = vmatprep.subr.bf16.mxu0 0
        %980 = vmatpush1.bf16.msra.mxu0 0
        %981 = vmatprep.subr.bf16.mxu0 0
        %982 = vmatpush1.bf16.msra.mxu0 0
        %983 = vmatprep.subr.bf16.mxu0 0
        %984 = vmatpush1.bf16.msra.mxu0 0
        %985 = vmatprep.subr.bf16.mxu0 0
        %986 = vmatpush1.bf16.msra.mxu0 0
        %987 = vmatprep.mubr.bf16.mxu0 0
        %988 = vmatmul.mubr.bf16.gmra.mrb[0].mxu0 %v950
        %v989 = vpop.f32.mrb[0].mxu0
        %v990 = vadd.f32 0.0, %v989
        %v991 = vpop.f32.mrb[0].mxu0
        %v992 = vpop.f32.mrb[0].mxu0
        %v993 = vpop.f32.mrb[0].mxu0
        %994 = vdwg.mxu0
        %v995 = vpack.c.bf16 %v990, %v990
        %v997 = vsel %vm772, %v995, 0
        %v1000 = vsel %vm838, %v683, 0
        %1002 = vmatprep.subr.bf16.mxu0 0
        %1003 = vmatpush1.bf16.msra.mxu0 %v1000
        %1004 = vmatprep.subr.bf16.mxu0 0
        %1005 = vmatpush1.bf16.msra.mxu0 0
        %1006 = vmatprep.subr.bf16.mxu0 0
        %1007 = vmatpush1.bf16.msra.mxu0 0
        %1008 = vmatprep.subr.bf16.mxu0 0
        %1009 = vmatpush1.bf16.msra.mxu0 0
        %1010 = vmatprep.subr.bf16.mxu0 0
        %1011 = vmatpush1.bf16.msra.mxu0 0
        %1012 = vmatprep.subr.bf16.mxu0 0
        %1013 = vmatpush1.bf16.msra.mxu0 0
        %1014 = vmatprep.subr.bf16.mxu0 0
        %1015 = vmatpush1.bf16.msra.mxu0 0
        %1016 = vmatprep.subr.bf16.mxu0 0
        %1017 = vmatpush1.bf16.msra.mxu0 0
        %1018 = vmatprep.subr.bf16.mxu0 0
        %1019 = vmatpush1.bf16.msra.mxu0 0
        %1020 = vmatprep.subr.bf16.mxu0 0
        %1021 = vmatpush1.bf16.msra.mxu0 0
        %1022 = vmatprep.subr.bf16.mxu0 0
        %1023 = vmatpush1.bf16.msra.mxu0 0
        %1024 = vmatprep.subr.bf16.mxu0 0
        %1025 = vmatpush1.bf16.msra.mxu0 0
        %1026 = vmatprep.subr.bf16.mxu0 0
        %1027 = vmatpush1.bf16.msra.mxu0 0
        %1028 = vmatprep.subr.bf16.mxu0 0
        %1029 = vmatpush1.bf16.msra.mxu0 0
        %1030 = vmatprep.subr.bf16.mxu0 0
        %1031 = vmatpush1.bf16.msra.mxu0 0
        %1032 = vmatprep.subr.bf16.mxu0 0
        %1033 = vmatpush1.bf16.msra.mxu0 0
        %1034 = vmatprep.mubr.bf16.mxu0 0
        %1035 = vmatmul.mubr.bf16.gmra.mrb[0].mxu0 %v997
        %v1036 = vpop.f32.mrb[0].mxu0
        %v1037 = vadd.f32 0.0, %v1036
        %v1038 = vpop.f32.mrb[0].mxu0
        %v1039 = vpop.f32.mrb[0].mxu0
        %v1040 = vpop.f32.mrb[0].mxu0
        %1041 = vdwg.mxu0
        %v1043 = vsel %vm772, %v882, 0
        %v1046 = vsel %vm838, %v682, 0
        %1048 = vmatprep.subr.bf16.mxu0 0
        %1049 = vmatpush1.bf16.msra.mxu0 %v1046
        %1050 = vmatprep.subr.bf16.mxu0 0
        %1051 = vmatpush1.bf16.msra.mxu0 0
        %1052 = vmatprep.subr.bf16.mxu0 0
        %1053 = vmatpush1.bf16.msra.mxu0 0
        %1054 = vmatprep.subr.bf16.mxu0 0
        %1055 = vmatpush1.bf16.msra.mxu0 0
        %1056 = vmatprep.subr.bf16.mxu0 0
        %1057 = vmatpush1.bf16.msra.mxu0 0
        %1058 = vmatprep.subr.bf16.mxu0 0
        %1059 = vmatpush1.bf16.msra.mxu0 0
        %1060 = vmatprep.subr.bf16.mxu0 0
        %1061 = vmatpush1.bf16.msra.mxu0 0
        %1062 = vmatprep.subr.bf16.mxu0 0
        %1063 = vmatpush1.bf16.msra.mxu0 0
        %1064 = vmatprep.subr.bf16.mxu0 0
        %1065 = vmatpush1.bf16.msra.mxu0 0
        %1066 = vmatprep.subr.bf16.mxu0 0
        %1067 = vmatpush1.bf16.msra.mxu0 0
        %1068 = vmatprep.subr.bf16.mxu0 0
        %1069 = vmatpush1.bf16.msra.mxu0 0
        %1070 = vmatprep.subr.bf16.mxu0 0
        %1071 = vmatpush1.bf16.msra.mxu0 0
        %1072 = vmatprep.subr.bf16.mxu0 0
        %1073 = vmatpush1.bf16.msra.mxu0 0
        %1074 = vmatprep.subr.bf16.mxu0 0
        %1075 = vmatpush1.bf16.msra.mxu0 0
        %1076 = vmatprep.subr.bf16.mxu0 0
        %1077 = vmatpush1.bf16.msra.mxu0 0
        %1078 = vmatprep.subr.bf16.mxu0 0
        %1079 = vmatpush1.bf16.msra.mxu0 0
        %1080 = vmatprep.mubr.bf16.mxu0 0
        %1081 = vmatmul.mubr.bf16.gmra.mrb[0].mxu0 %v1043
        %v1082 = vpop.f32.mrb[0].mxu0
        %v1083 = vadd.f32 %v1037, %v1082
        %v1084 = vpop.f32.mrb[0].mxu0
        %v1085 = vpop.f32.mrb[0].mxu0
        %v1086 = vpop.f32.mrb[0].mxu0
        %1087 = vdwg.mxu0
        %1088 = vrot.lane.b32.xlu0 %v768, 112
        %v1089 = vpop.permute.xlu0 %1088
        %1090 = vrot.lane.b32.xlu0 %v768, 80
        %v1091 = vpop.permute.xlu0 %1090
        %v1093 = vsel %vm772, %v1089, 0
        %v1096 = vsel %vm772, %v1091, 0
        %1098 = vmatprep.subr.bf16.mxu0 0
        %1099 = vmatpush1.bf16.xpose.msra.mxu0 %v1096
        %1100 = vmatprep.subr.bf16.mxu0 0
        %1101 = vmatpush1.bf16.xpose.msra.mxu0 0
        %1102 = vmatprep.subr.bf16.mxu0 0
        %1103 = vmatpush1.bf16.xpose.msra.mxu0 0
        %1104 = vmatprep.subr.bf16.mxu0 0
        %1105 = vmatpush1.bf16.xpose.msra.mxu0 0
        %1106 = vmatprep.subr.bf16.mxu0 0
        %1107 = vmatpush1.bf16.xpose.msra.mxu0 0
        %1108 = vmatprep.subr.bf16.mxu0 0
        %1109 = vmatpush1.bf16.xpose.msra.mxu0 0
        %1110 = vmatprep.subr.bf16.mxu0 0
        %1111 = vmatpush1.bf16.xpose.msra.mxu0 0
        %1112 = vmatprep.subr.bf16.mxu0 0
        %1113 = vmatpush1.bf16.xpose.msra.mxu0 0
        %1114 = vmatprep.subr.bf16.mxu0 0
        %1115 = vmatpush1.bf16.xpose.msra.mxu0 0
        %1116 = vmatprep.subr.bf16.mxu0 0
        %1117 = vmatpush1.bf16.xpose.msra.mxu0 0
        %1118 = vmatprep.subr.bf16.mxu0 0
        %1119 = vmatpush1.bf16.xpose.msra.mxu0 0
        %1120 = vmatprep.subr.bf16.mxu0 0
        %1121 = vmatpush1.bf16.xpose.msra.mxu0 0
        %1122 = vmatprep.subr.bf16.mxu0 0
        %1123 = vmatpush1.bf16.xpose.msra.mxu0 0
        %1124 = vmatprep.subr.bf16.mxu0 0
        %1125 = vmatpush1.bf16.xpose.msra.mxu0 0
        %1126 = vmatprep.subr.bf16.mxu0 0
        %1127 = vmatpush1.bf16.xpose.msra.mxu0 0
        %1128 = vmatprep.subr.bf16.mxu0 0
        %1129 = vmatpush1.bf16.xpose.msra.mxu0 0
        %1130 = vmatprep.mubr.bf16.mxu0 0
        %1131 = vmatmul.mubr.bf16.gmra.mrb[0].mxu0 %v1093
        %v1132 = vpop.f32.mrb[0].mxu0
        %v1133 = vadd.f32 0.0, %v1132
        %v1134 = vpop.f32.mrb[0].mxu0
        %v1135 = vpop.f32.mrb[0].mxu0
        %v1136 = vpop.f32.mrb[0].mxu0
        %1137 = vdwg.mxu0
        %v1138 = vmul.f32 %v1133, 0.35355338
        %v1139 = vadd.f32 %v1138, %v676
        %v1140 = vsel %vm772, %v1139, -inf
        %1141 = vmax.xlane.f32.xlu0 %v1140
        %v1142 = vpop.xlane.xlu0 %1141
        %v1143 = vsub.f32 %v1139, %v1142
        %v1144 = vmul.f32 %v1143, 1.442695
        %v1145 = vpow.pop %v1144
        %v1146 = vsel %vm772, %v1145, 0.0
        %1147 = vadd.xlane.f32.xlu0 %v1146
        %v1148 = vpop.xlane.xlu0 %1147
        %v1149 = vrcp.pop %v1148
        %v1150 = vmul.f32 %v1145, %v1149
        %v1151 = vpack.c.bf16 %v1150, %v1150
        %1152 = vrot.lane.b32.xlu0 %v768, 48
        %v1153 = vpop.permute.xlu0 %1152
        %v1155 = vsel %vm772, %v1151, 0
        %v1158 = vsel %vm838, %v1153, 0
        %1160 = vmatprep.subr.bf16.mxu0 0
        %1161 = vmatpush1.bf16.msra.mxu0 %v1158
        %1162 = vmatprep.subr.bf16.mxu0 0
        %1163 = vmatpush1.bf16.msra.mxu0 0
        %1164 = vmatprep.subr.bf16.mxu0 0
        %1165 = vmatpush1.bf16.msra.mxu0 0
        %1166 = vmatprep.subr.bf16.mxu0 0
        %1167 = vmatpush1.bf16.msra.mxu0 0
        %1168 = vmatprep.subr.bf16.mxu0 0
        %1169 = vmatpush1.bf16.msra.mxu0 0
        %1170 = vmatprep.subr.bf16.mxu0 0
        %1171 = vmatpush1.bf16.msra.mxu0 0
        %1172 = vmatprep.subr.bf16.mxu0 0
        %1173 = vmatpush1.bf16.msra.mxu0 0
        %1174 = vmatprep.subr.bf16.mxu0 0
        %1175 = vmatpush1.bf16.msra.mxu0 0
        %1176 = vmatprep.subr.bf16.mxu0 0
        %1177 = vmatpush1.bf16.msra.mxu0 0
        %1178 = vmatprep.subr.bf16.mxu0 0
        %1179 = vmatpush1.bf16.msra.mxu0 0
        %1180 = vmatprep.subr.bf16.mxu0 0
        %1181 = vmatpush1.bf16.msra.mxu0 0
        %1182 = vmatprep.subr.bf16.mxu0 0
        %1183 = vmatpush1.bf16.msra.mxu0 0
        %1184 = vmatprep.subr.bf16.mxu0 0
        %1185 = vmatpush1.bf16.msra.mxu0 0
        %1186 = vmatprep.subr.bf16.mxu0 0
        %1187 = vmatpush1.bf16.msra.mxu0 0
        %1188 = vmatprep.subr.bf16.mxu0 0
        %1189 = vmatpush1.bf16.msra.mxu0 0
        %1190 = vmatprep.subr.bf16.mxu0 0
        %1191 = vmatpush1.bf16.msra.mxu0 0
        %1192 = vmatprep.mubr.bf16.mxu0 0
        %1193 = vmatmul.mubr.bf16.gmra.mrb[0].mxu0 %v1155
        %v1194 = vpop.f32.mrb[0].mxu0
        %v1195 = vadd.f32 0.0, %v1194
        %v1196 = vpop.f32.mrb[0].mxu0
        %v1197 = vpop.f32.mrb[0].mxu0
        %v1198 = vpop.f32.mrb[0].mxu0
        %1199 = vdwg.mxu0
        %v1200 = vpack.c.bf16 %v1195, %v1195
        %v1202 = vsel %vm772, %v1200, 0
        %v1205 = vsel %vm838, %v684, 0
        %1207 = vmatprep.subr.bf16.mxu0 0
        %1208 = vmatpush1.bf16.msra.mxu0 %v1205
        %1209 = vmatprep.subr.bf16.mxu0 0
        %1210 = vmatpush1.bf16.msra.mxu0 0
        %1211 = vmatprep.subr.bf16.mxu0 0
        %1212 = vmatpush1.bf16.msra.mxu0 0
        %1213 = vmatprep.subr.bf16.mxu0 0
        %1214 = vmatpush1.bf16.msra.mxu0 0
        %1215 = vmatprep.subr.bf16.mxu0 0
        %1216 = vmatpush1.bf16.msra.mxu0 0
        %1217 = vmatprep.subr.bf16.mxu0 0
        %1218 = vmatpush1.bf16.msra.mxu0 0
        %1219 = vmatprep.subr.bf16.mxu0 0
        %1220 = vmatpush1.bf16.msra.mxu0 0
        %1221 = vmatprep.subr.bf16.mxu0 0
        %1222 = vmatpush1.bf16.msra.mxu0 0
        %1223 = vmatprep.subr.bf16.mxu0 0
        %1224 = vmatpush1.bf16.msra.mxu0 0
        %1225 = vmatprep.subr.bf16.mxu0 0
        %1226 = vmatpush1.bf16.msra.mxu0 0
        %1227 = vmatprep.subr.bf16.mxu0 0
        %1228 = vmatpush1.bf16.msra.mxu0 0
        %1229 = vmatprep.subr.bf16.mxu0 0
        %1230 = vmatpush1.bf16.msra.mxu0 0
        %1231 = vmatprep.subr.bf16.mxu0 0
        %1232 = vmatpush1.bf16.msra.mxu0 0
        %1233 = vmatprep.subr.bf16.mxu0 0
        %1234 = vmatpush1.bf16.msra.mxu0 0
        %1235 = vmatprep.subr.bf16.mxu0 0
        %1236 = vmatpush1.bf16.msra.mxu0 0
        %1237 = vmatprep.subr.bf16.mxu0 0
        %1238 = vmatpush1.bf16.msra.mxu0 0
        %1239 = vmatprep.mubr.bf16.mxu0 0
        %1240 = vmatmul.mubr.bf16.gmra.mrb[0].mxu0 %v1202
        %v1241 = vpop.f32.mrb[0].mxu0
        %v1242 = vadd.f32 0.0, %v1241
        %v1243 = vpop.f32.mrb[0].mxu0
        %v1244 = vpop.f32.mrb[0].mxu0
        %v1245 = vpop.f32.mrb[0].mxu0
        %1246 = vdwg.mxu0
        %v1247 = vadd.f32 %v1083, %v1242
        %1248 = vrot.lane.b32.xlu0 %v768, 104
        %v1249 = vpop.permute.xlu0 %1248
        %1250 = vrot.lane.b32.xlu0 %v768, 72
        %v1251 = vpop.permute.xlu0 %1250
        %v1253 = vsel %vm772, %v1249, 0
        %v1256 = vsel %vm772, %v1251, 0
        %1258 = vmatprep.subr.bf16.mxu0 0
        %1259 = vmatpush1.bf16.xpose.msra.mxu0 %v1256
        %1260 = vmatprep.subr.bf16.mxu0 0
        %1261 = vmatpush1.bf16.xpose.msra.mxu0 0
        %1262 = vmatprep.subr.bf16.mxu0 0
        %1263 = vmatpush1.bf16.xpose.msra.mxu0 0
        %1264 = vmatprep.subr.bf16.mxu0 0
        %1265 = vmatpush1.bf16.xpose.msra.mxu0 0
        %1266 = vmatprep.subr.bf16.mxu0 0
        %1267 = vmatpush1.bf16.xpose.msra.mxu0 0
        %1268 = vmatprep.subr.bf16.mxu0 0
        %1269 = vmatpush1.bf16.xpose.msra.mxu0 0
        %1270 = vmatprep.subr.bf16.mxu0 0
        %1271 = vmatpush1.bf16.xpose.msra.mxu0 0
        %1272 = vmatprep.subr.bf16.mxu0 0
        %1273 = vmatpush1.bf16.xpose.msra.mxu0 0
        %1274 = vmatprep.subr.bf16.mxu0 0
        %1275 = vmatpush1.bf16.xpose.msra.mxu0 0
        %1276 = vmatprep.subr.bf16.mxu0 0
        %1277 = vmatpush1.bf16.xpose.msra.mxu0 0
        %1278 = vmatprep.subr.bf16.mxu0 0
        %1279 = vmatpush1.bf16.xpose.msra.mxu0 0
        %1280 = vmatprep.subr.bf16.mxu0 0
        %1281 = vmatpush1.bf16.xpose.msra.mxu0 0
        %1282 = vmatprep.subr.bf16.mxu0 0
        %1283 = vmatpush1.bf16.xpose.msra.mxu0 0
        %1284 = vmatprep.subr.bf16.mxu0 0
        %1285 = vmatpush1.bf16.xpose.msra.mxu0 0
        %1286 = vmatprep.subr.bf16.mxu0 0
        %1287 = vmatpush1.bf16.xpose.msra.mxu0 0
        %1288 = vmatprep.subr.bf16.mxu0 0
        %1289 = vmatpush1.bf16.xpose.msra.mxu0 0
        %1290 = vmatprep.mubr.bf16.mxu0 0
        %1291 = vmatmul.mubr.bf16.gmra.mrb[0].mxu0 %v1253
        %v1292 = vpop.f32.mrb[0].mxu0
        %v1293 = vadd.f32 0.0, %v1292
        %v1294 = vpop.f32.mrb[0].mxu0
        %v1295 = vpop.f32.mrb[0].mxu0
        %v1296 = vpop.f32.mrb[0].mxu0
        %1297 = vdwg.mxu0
        %v1298 = vmul.f32 %v1293, 0.35355338
        %v1299 = vadd.f32 %v1298, %v676
        %v1300 = vsel %vm772, %v1299, -inf
        %1301 = vmax.xlane.f32.xlu0 %v1300
        %v1302 = vpop.xlane.xlu0 %1301
        %v1303 = vsub.f32 %v1299, %v1302
        %v1304 = vmul.f32 %v1303, 1.442695
        %v1305 = vpow.pop %v1304
        %v1306 = vsel %vm772, %v1305, 0.0
        %1307 = vadd.xlane.f32.xlu0 %v1306
        %v1308 = vpop.xlane.xlu0 %1307
        %v1309 = vrcp.pop %v1308
        %v1310 = vmul.f32 %v1305, %v1309
        %v1311 = vpack.c.bf16 %v1310, %v1310
        %1312 = vrot.lane.b32.xlu0 %v768, 40
        %v1313 = vpop.permute.xlu0 %1312
        %v1315 = vsel %vm772, %v1311, 0
        %v1318 = vsel %vm838, %v1313, 0
        %1320 = vmatprep.subr.bf16.mxu0 0
        %1321 = vmatpush1.bf16.msra.mxu0 %v1318
        %1322 = vmatprep.subr.bf16.mxu0 0
        %1323 = vmatpush1.bf16.msra.mxu0 0
        %1324 = vmatprep.subr.bf16.mxu0 0
        %1325 = vmatpush1.bf16.msra.mxu0 0
        %1326 = vmatprep.subr.bf16.mxu0 0
        %1327 = vmatpush1.bf16.msra.mxu0 0
        %1328 = vmatprep.subr.bf16.mxu0 0
        %1329 = vmatpush1.bf16.msra.mxu0 0
        %1330 = vmatprep.subr.bf16.mxu0 0
        %1331 = vmatpush1.bf16.msra.mxu0 0
        %1332 = vmatprep.subr.bf16.mxu0 0
        %1333 = vmatpush1.bf16.msra.mxu0 0
        %1334 = vmatprep.subr.bf16.mxu0 0
        %1335 = vmatpush1.bf16.msra.mxu0 0
        %1336 = vmatprep.subr.bf16.mxu0 0
        %1337 = vmatpush1.bf16.msra.mxu0 0
        %1338 = vmatprep.subr.bf16.mxu0 0
        %1339 = vmatpush1.bf16.msra.mxu0 0
        %1340 = vmatprep.subr.bf16.mxu0 0
        %1341 = vmatpush1.bf16.msra.mxu0 0
        %1342 = vmatprep.subr.bf16.mxu0 0
        %1343 = vmatpush1.bf16.msra.mxu0 0
        %1344 = vmatprep.subr.bf16.mxu0 0
        %1345 = vmatpush1.bf16.msra.mxu0 0
        %1346 = vmatprep.subr.bf16.mxu0 0
        %1347 = vmatpush1.bf16.msra.mxu0 0
        %1348 = vmatprep.subr.bf16.mxu0 0
        %1349 = vmatpush1.bf16.msra.mxu0 0
        %1350 = vmatprep.subr.bf16.mxu0 0
        %1351 = vmatpush1.bf16.msra.mxu0 0
        %1352 = vmatprep.mubr.bf16.mxu0 0
        %1353 = vmatmul.mubr.bf16.gmra.mrb[0].mxu0 %v1315
        %v1354 = vpop.f32.mrb[0].mxu0
        %v1355 = vadd.f32 0.0, %v1354
        %v1356 = vpop.f32.mrb[0].mxu0
        %v1357 = vpop.f32.mrb[0].mxu0
        %v1358 = vpop.f32.mrb[0].mxu0
        %1359 = vdwg.mxu0
        %v1360 = vpack.c.bf16 %v1355, %v1355
        %v1362 = vsel %vm772, %v1360, 0
        %v1365 = vsel %vm838, %v685, 0
        %1367 = vmatprep.subr.bf16.mxu0 0
        %1368 = vmatpush1.bf16.msra.mxu0 %v1365
        %1369 = vmatprep.subr.bf16.mxu0 0
        %1370 = vmatpush1.bf16.msra.mxu0 0
        %1371 = vmatprep.subr.bf16.mxu0 0
        %1372 = vmatpush1.bf16.msra.mxu0 0
        %1373 = vmatprep.subr.bf16.mxu0 0
        %1374 = vmatpush1.bf16.msra.mxu0 0
        %1375 = vmatprep.subr.bf16.mxu0 0
        %1376 = vmatpush1.bf16.msra.mxu0 0
        %1377 = vmatprep.subr.bf16.mxu0 0
        %1378 = vmatpush1.bf16.msra.mxu0 0
        %1379 = vmatprep.subr.bf16.mxu0 0
        %1380 = vmatpush1.bf16.msra.mxu0 0
        %1381 = vmatprep.subr.bf16.mxu0 0
        %1382 = vmatpush1.bf16.msra.mxu0 0
        %1383 = vmatprep.subr.bf16.mxu0 0
        %1384 = vmatpush1.bf16.msra.mxu0 0
        %1385 = vmatprep.subr.bf16.mxu0 0
        %1386 = vmatpush1.bf16.msra.mxu0 0
        %1387 = vmatprep.subr.bf16.mxu0 0
        %1388 = vmatpush1.bf16.msra.mxu0 0
        %1389 = vmatprep.subr.bf16.mxu0 0
        %1390 = vmatpush1.bf16.msra.mxu0 0
        %1391 = vmatprep.subr.bf16.mxu0 0
        %1392 = vmatpush1.bf16.msra.mxu0 0
        %1393 = vmatprep.subr.bf16.mxu0 0
        %1394 = vmatpush1.bf16.msra.mxu0 0
        %1395 = vmatprep.subr.bf16.mxu0 0
        %1396 = vmatpush1.bf16.msra.mxu0 0
        %1397 = vmatprep.subr.bf16.mxu0 0
        %1398 = vmatpush1.bf16.msra.mxu0 0
        %1399 = vmatprep.mubr.bf16.mxu0 0
        %1400 = vmatmul.mubr.bf16.gmra.mrb[0].mxu0 %v1362
        %v1401 = vpop.f32.mrb[0].mxu0
        %v1402 = vadd.f32 0.0, %v1401
        %v1403 = vpop.f32.mrb[0].mxu0
        %v1404 = vpop.f32.mrb[0].mxu0
        %v1405 = vpop.f32.mrb[0].mxu0
        %1406 = vdwg.mxu0
        %v1407 = vadd.f32 %v1247, %v1402
        %v1409 = vlaneseq
        %v1410 = vshrl.u32 %v1409, 7
        %v1411 = vsub.s32 0, %v1410
        %v1412 = vrot.slane %v699, %v1411
        %v1414 = vadd.f32 %v1407, %v1412
        %v1415 = vadd.f32 %v1414, %v670
        %v1416 = vsel %vm642, %v1415, 0.0
        %1417 = vadd.xlane.f32.xlu0 %v1416
        %v1418 = vpop.xlane.xlu0 %1417
        %v1419 = vmul.f32 %v1418, %v646
        %v1420 = vsub.f32 %v1415, %v1419
        %v1421 = vmul.f32 %v1420, %v1420
        %v1422 = vsel %vm642, %v1421, 0.0
        %1423 = vadd.xlane.f32.xlu0 %v1422
        %v1424 = vpop.xlane.xlu0 %1423
        %v1425 = vmul.f32 %v1424, %v646
        %v1426 = vadd.f32 %v1425, 1e-12
        %v1427 = vrsqrt.pop %v1426
        %v1428 = vmul.f32 %v1420, %v1427
        %v1430 = vlaneseq
        %v1431 = vshrl.u32 %v1430, 7
        %v1432 = vsub.s32 0, %v1431
        %v1433 = vrot.slane %v702, %v1432
        %v1435 = vmul.f32 %v1428, %v1433
        %v1437 = vlaneseq
        %v1438 = vshrl.u32 %v1437, 7
        %v1439 = vsub.s32 0, %v1438
        %v1440 = vrot.slane %v703, %v1439
        %v1442 = vadd.f32 %v1435, %v1440
        %v1443 = vpack.c.bf16 %v1442, %v1442
        %v1445 = vlaneseq
        %v1446 = vshrl.u32 %v1445, 7
        %v1447 = vsub.s32 0, %v1446
        %v1448 = vrot.slane %v700, %v1447
        %v1454 = vunpack.c.l.b16 %v686
        %v1455 = vunpack.c.l.b16 %v687
        %v1456 = vunpack.c.l.b16 %v688
        %v1457 = vunpack.c.l.b16 %v689
        %v1458 = vpack.c.b16 %v1455, %v1454
        %v1459 = vpack.c.b16 %v1457, %v1456
        %v1463 = vsel %vm642, %v1443, 0
        %1465 = vmatprep.subr.bf16.mxu0 0
        %1466 = vmatpush1.bf16.msra.mxu0 %v1458
        %1467 = vmatprep.subr.bf16.mxu0 0
        %1468 = vmatpush1.bf16.msra.mxu0 %v1459
        %1469 = vmatprep.subr.bf16.mxu0 0
        %1470 = vmatpush1.bf16.msra.mxu0 0
        %1471 = vmatprep.subr.bf16.mxu0 0
        %1472 = vmatpush1.bf16.msra.mxu0 0
        %1473 = vmatprep.subr.bf16.mxu0 0
        %1474 = vmatpush1.bf16.msra.mxu0 0
        %1475 = vmatprep.subr.bf16.mxu0 0
        %1476 = vmatpush1.bf16.msra.mxu0 0
        %1477 = vmatprep.subr.bf16.mxu0 0
        %1478 = vmatpush1.bf16.msra.mxu0 0
        %1479 = vmatprep.subr.bf16.mxu0 0
        %1480 = vmatpush1.bf16.msra.mxu0 0
        %1481 = vmatprep.subr.bf16.mxu0 0
        %1482 = vmatpush1.bf16.msra.mxu0 0
        %1483 = vmatprep.subr.bf16.mxu0 0
        %1484 = vmatpush1.bf16.msra.mxu0 0
        %1485 = vmatprep.subr.bf16.mxu0 0
        %1486 = vmatpush1.bf16.msra.mxu0 0
        %1487 = vmatprep.subr.bf16.mxu0 0
        %1488 = vmatpush1.bf16.msra.mxu0 0
        %1489 = vmatprep.subr.bf16.mxu0 0
        %1490 = vmatpush1.bf16.msra.mxu0 0
        %1491 = vmatprep.subr.bf16.mxu0 0
        %1492 = vmatpush1.bf16.msra.mxu0 0
        %1493 = vmatprep.subr.bf16.mxu0 0
        %1494 = vmatpush1.bf16.msra.mxu0 0
        %1495 = vmatprep.subr.bf16.mxu0 0
        %1496 = vmatpush1.bf16.msra.mxu0 0
        %1497 = vmatprep.mubr.bf16.mxu0 0
        %1498 = vmatmul.mubr.bf16.gmra.mrb[0].mxu0 %v1463
        %v1499 = vpop.f32.mrb[0].mxu0
        %v1500 = vadd.f32 %v1448, %v1499
        %v1501 = vpop.f32.mrb[0].mxu0
        %v1502 = vpop.f32.mrb[0].mxu0
        %v1503 = vpop.f32.mrb[0].mxu0
        %1504 = vdwg.mxu0
        %v1505 = vmul.f32 %v1500, 0.5
        %v1506 = vmul.f32 %v1500, 0.044715
        %v1507 = vmul.f32 %v1506, %v1500
        %v1508 = vmul.f32 %v1507, %v1500
        %v1509 = vadd.f32 %v1500, %v1508
        %v1510 = vmul.f32 %v1509, 0.7978846
        %v1511 = vtanh.pop %v1510
        %v1512 = vadd.f32 %v1511, 1.0
        %v1513 = vmul.f32 %v1505, %v1512
        %v1514 = vpack.c.bf16 %v1513, %v1513
        %v1516 = vlaneseq
        %v1517 = vshrl.u32 %v1516, 7
        %v1518 = vsub.s32 0, %v1517
        %v1519 = vrot.slane %v701, %v1518
        %v1529 = vunpack.c.l.b16 %v690
        %v1530 = vunpack.c.l.b16 %v691
        %v1531 = vunpack.c.l.b16 %v692
        %v1532 = vunpack.c.l.b16 %v693
        %v1533 = vunpack.c.l.b16 %v694
        %v1534 = vunpack.c.l.b16 %v695
        %v1535 = vunpack.c.l.b16 %v696
        %v1536 = vunpack.c.l.b16 %v697
        %v1537 = vpack.c.b16 %v1530, %v1529
        %v1538 = vpack.c.b16 %v1532, %v1531
        %v1539 = vpack.c.b16 %v1534, %v1533
        %v1540 = vpack.c.b16 %v1536, %v1535
        %vm1545 = vcmask 523264
        %v1547 = vsel %vm1545, %v1514, 0
        %1549 = vmatprep.subr.bf16.mxu0 0
        %1550 = vmatpush1.bf16.msra.mxu0 %v1537
        %1551 = vmatprep.subr.bf16.mxu0 0
        %1552 = vmatpush1.bf16.msra.mxu0 %v1538
        %1553 = vmatprep.subr.bf16.mxu0 0
        %1554 = vmatpush1.bf16.msra.mxu0 %v1539
        %1555 = vmatprep.subr.bf16.mxu0 0
        %1556 = vmatpush1.bf16.msra.mxu0 %v1540
        %1557 = vmatprep.subr.bf16.mxu0 0
        %1558 = vmatpush1.bf16.msra.mxu0 0
        %1559 = vmatprep.subr.bf16.mxu0 0
        %1560 = vmatpush1.bf16.msra.mxu0 0
        %1561 = vmatprep.subr.bf16.mxu0 0
        %1562 = vmatpush1.bf16.msra.mxu0 0
        %1563 = vmatprep.subr.bf16.mxu0 0
        %1564 = vmatpush1.bf16.msra.mxu0 0
        %1565 = vmatprep.subr.bf16.mxu0 0
        %1566 = vmatpush1.bf16.msra.mxu0 0
        %1567 = vmatprep.subr.bf16.mxu0 0
        %1568 = vmatpush1.bf16.msra.mxu0 0
        %1569 = vmatprep.subr.bf16.mxu0 0
        %1570 = vmatpush1.bf16.msra.mxu0 0
        %1571 = vmatprep.subr.bf16.mxu0 0
        %1572 = vmatpush1.bf16.msra.mxu0 0
        %1573 = vmatprep.subr.bf16.mxu0 0
        %1574 = vmatpush1.bf16.msra.mxu0 0
        %1575 = vmatprep.subr.bf16.mxu0 0
        %1576 = vmatpush1.bf16.msra.mxu0 0
        %1577 = vmatprep.subr.bf16.mxu0 0
        %1578 = vmatpush1.bf16.msra.mxu0 0
        %1579 = vmatprep.subr.bf16.mxu0 0
        %1580 = vmatpush1.bf16.msra.mxu0 0
        %1581 = vmatprep.mubr.bf16.mxu0 0
        %1582 = vmatmul.mubr.bf16.gmra.mrb[0].mxu0 %v1547
        %v1583 = vpop.f32.mrb[0].mxu0
        %v1584 = vadd.f32 %v1519, %v1583
        %v1585 = vpop.f32.mrb[0].mxu0
        %v1586 = vpop.f32.mrb[0].mxu0
        %v1587 = vpop.f32.mrb[0].mxu0
        %1588 = vdwg.mxu0
        %v1589 = vadd.f32 %v1584, %v1442
        %v1590 = vsel %vm642, %v1589, 0.0
        %1591 = vadd.xlane.f32.xlu0 %v1590
        %v1592 = vpop.xlane.xlu0 %1591
        %v1593 = vmul.f32 %v1592, %v646
        %v1594 = vsub.f32 %v1589, %v1593
        %v1595 = vmul.f32 %v1594, %v1594
        %v1596 = vsel %vm642, %v1595, 0.0
        %1597 = vadd.xlane.f32.xlu0 %v1596
        %v1598 = vpop.xlane.xlu0 %1597
        %v1599 = vmul.f32 %v1598, %v646
        %v1600 = vadd.f32 %v1599, 1e-12
        %v1601 = vrsqrt.pop %v1600
        %v1602 = vmul.f32 %v1594, %v1601
        %v1604 = vlaneseq
        %v1605 = vshrl.u32 %v1604, 7
        %v1606 = vsub.s32 0, %v1605
        %v1607 = vrot.slane %v704, %v1606
        %v1609 = vmul.f32 %v1602, %v1607
        %v1611 = vlaneseq
        %v1612 = vshrl.u32 %v1611, 7
        %v1613 = vsub.s32 0, %v1612
        %v1614 = vrot.slane %v705, %v1613
        %v1616 = vadd.f32 %v1609, %v1614
        %s1617 = scalar_lea.vmem %s4, 16
        %v1618 = vld [vmem:[%s1617] sm:$0xf]
        %v1619 = vld [vmem:[%s1617 + $0x4] sm:$0xf]
        %v1620 = vld [vmem:[%s1617 + $0x8] sm:$0xf]
        %v1621 = vld [vmem:[%s1617 + $0xc] sm:$0xf]
        %s1622 = scalar_lea.vmem %s6, 16
        %v1623 = vld [vmem:[%s1622] sm:$0xf]
        %v1624 = vld [vmem:[%s1622 + $0x4] sm:$0xf]
        %v1625 = vld [vmem:[%s1622 + $0x8] sm:$0xf]
        %v1626 = vld [vmem:[%s1622 + $0xc] sm:$0xf]
        %s1627 = scalar_lea.vmem %s10, 16
        %v1628 = vld [vmem:[%s1627] sm:$0xf]
        %v1629 = vld [vmem:[%s1627 + $0x4] sm:$0xf]
        %v1630 = vld [vmem:[%s1627 + $0x8] sm:$0xf]
        %v1631 = vld [vmem:[%s1627 + $0xc] sm:$0xf]
        %s1632 = scalar_lea.vmem %s12, 32
        %v1633 = vld [vmem:[%s1632] sm:$0xf]
        %v1634 = vld [vmem:[%s1632 + $0x4] sm:$0xf]
        %v1635 = vld [vmem:[%s1632 + $0x8] sm:$0xf]
        %v1636 = vld [vmem:[%s1632 + $0xc] sm:$0xf]
        %v1637 = vld [vmem:[%s1632 + $0x10] sm:$0xf]
        %v1638 = vld [vmem:[%s1632 + $0x14] sm:$0xf]
        %v1639 = vld [vmem:[%s1632 + $0x18] sm:$0xf]
        %v1640 = vld [vmem:[%s1632 + $0x1c] sm:$0xf]
        %s1641 = scalar_lea.vmem %s5, 1
        %v1642 = vld [vmem:[%s1641] sm:$0x1]
        %s1643 = scalar_lea.vmem %s7, 1
        %v1644 = vld [vmem:[%s1643] sm:$0x1]
        %s1645 = scalar_lea.vmem %s11, 1
        %v1646 = vld [vmem:[%s1645] sm:$0x1]
        %s1647 = scalar_lea.vmem %s13, 1
        %v1648 = vld [vmem:[%s1647] sm:$0x1]
        %s1649 = scalar_lea.vmem %s8, 1
        %v1650 = vld [vmem:[%s1649] sm:$0x1]
        %s1651 = scalar_lea.vmem %s9, 1
        %v1652 = vld [vmem:[%s1651] sm:$0x1]
        %s1653 = scalar_lea.vmem %s14, 1
        %v1654 = vld [vmem:[%s1653] sm:$0x1]
        %s1655 = scalar_lea.vmem %s15, 1
        %v1656 = vld [vmem:[%s1655] sm:$0x1]
        %v1657 = vpack.c.bf16 %v1616, %v1616
        %v1659 = vlaneseq
        %v1660 = vshrl.u32 %v1659, 7
        %v1661 = vsub.s32 0, %v1660
        %v1662 = vrot.slane %v1642, %v1661
        %v1668 = vunpack.c.l.b16 %v1618
        %v1669 = vunpack.c.l.b16 %v1619
        %v1670 = vunpack.c.l.b16 %v1620
        %v1671 = vunpack.c.l.b16 %v1621
        %v1672 = vpack.c.b16 %v1669, %v1668
        %v1673 = vpack.c.b16 %v1671, %v1670
        %v1677 = vsel %vm642, %v1657, 0
        %1679 = vmatprep.subr.bf16.mxu0 0
        %1680 = vmatpush1.bf16.msra.mxu0 %v1672
        %1681 = vmatprep.subr.bf16.mxu0 0
        %1682 = vmatpush1.bf16.msra.mxu0 %v1673
        %1683 = vmatprep.subr.bf16.mxu0 0
        %1684 = vmatpush1.bf16.msra.mxu0 0
        %1685 = vmatprep.subr.bf16.mxu0 0
        %1686 = vmatpush1.bf16.msra.mxu0 0
        %1687 = vmatprep.subr.bf16.mxu0 0
        %1688 = vmatpush1.bf16.msra.mxu0 0
        %1689 = vmatprep.subr.bf16.mxu0 0
        %1690 = vmatpush1.bf16.msra.mxu0 0
        %1691 = vmatprep.subr.bf16.mxu0 0
        %1692 = vmatpush1.bf16.msra.mxu0 0
        %1693 = vmatprep.subr.bf16.mxu0 0
        %1694 = vmatpush1.bf16.msra.mxu0 0
        %1695 = vmatprep.subr.bf16.mxu0 0
        %1696 = vmatpush1.bf16.msra.mxu0 0
        %1697 = vmatprep.subr.bf16.mxu0 0
        %1698 = vmatpush1.bf16.msra.mxu0 0
        %1699 = vmatprep.subr.bf16.mxu0 0
        %1700 = vmatpush1.bf16.msra.mxu0 0
        %1701 = vmatprep.subr.bf16.mxu0 0
        %1702 = vmatpush1.bf16.msra.mxu0 0
        %1703 = vmatprep.subr.bf16.mxu0 0
        %1704 = vmatpush1.bf16.msra.mxu0 0
        %1705 = vmatprep.subr.bf16.mxu0 0
        %1706 = vmatpush1.bf16.msra.mxu0 0
        %1707 = vmatprep.subr.bf16.mxu0 0
        %1708 = vmatpush1.bf16.msra.mxu0 0
        %1709 = vmatprep.subr.bf16.mxu0 0
        %1710 = vmatpush1.bf16.msra.mxu0 0
        %1711 = vmatprep.mubr.bf16.mxu0 0
        %1712 = vmatmul.mubr.bf16.gmra.mrb[0].mxu0 %v1677
        %v1713 = vpop.f32.mrb[0].mxu0
        %v1714 = vadd.f32 %v1662, %v1713
        %v1715 = vpop.f32.mrb[0].mxu0
        %v1716 = vpop.f32.mrb[0].mxu0
        %v1717 = vpop.f32.mrb[0].mxu0
        %1718 = vdwg.mxu0
        %v1719 = vpack.c.bf16 %v1714, %v1714
        %1721 = vrot.lane.b32.xlu0 %v1719, 96
        %v1722 = vpop.permute.xlu0 %1721
        %v1724 = vsel %vm772, %v1719, 0
        %v1727 = vsel %vm772, %v1722, 0
        %1729 = vmatprep.subr.bf16.mxu0 0
        %1730 = vmatpush1.bf16.xpose.msra.mxu0 %v1727
        %1731 = vmatprep.subr.bf16.mxu0 0
        %1732 = vmatpush1.bf16.xpose.msra.mxu0 0
        %1733 = vmatprep.subr.bf16.mxu0 0
        %1734 = vmatpush1.bf16.xpose.msra.mxu0 0
        %1735 = vmatprep.subr.bf16.mxu0 0
        %1736 = vmatpush1.bf16.xpose.msra.mxu0 0
        %1737 = vmatprep.subr.bf16.mxu0 0
        %1738 = vmatpush1.bf16.xpose.msra.mxu0 0
        %1739 = vmatprep.subr.bf16.mxu0 0
        %1740 = vmatpush1.bf16.xpose.msra.mxu0 0
        %1741 = vmatprep.subr.bf16.mxu0 0
        %1742 = vmatpush1.bf16.xpose.msra.mxu0 0
        %1743 = vmatprep.subr.bf16.mxu0 0
        %1744 = vmatpush1.bf16.xpose.msra.mxu0 0
        %1745 = vmatprep.subr.bf16.mxu0 0
        %1746 = vmatpush1.bf16.xpose.msra.mxu0 0
        %1747 = vmatprep.subr.bf16.mxu0 0
        %1748 = vmatpush1.bf16.xpose.msra.mxu0 0
        %1749 = vmatprep.subr.bf16.mxu0 0
        %1750 = vmatpush1.bf16.xpose.msra.mxu0 0
        %1751 = vmatprep.subr.bf16.mxu0 0
        %1752 = vmatpush1.bf16.xpose.msra.mxu0 0
        %1753 = vmatprep.subr.bf16.mxu0 0
        %1754 = vmatpush1.bf16.xpose.msra.mxu0 0
        %1755 = vmatprep.subr.bf16.mxu0 0
        %1756 = vmatpush1.bf16.xpose.msra.mxu0 0
        %1757 = vmatprep.subr.bf16.mxu0 0
        %1758 = vmatpush1.bf16.xpose.msra.mxu0 0
        %1759 = vmatprep.subr.bf16.mxu0 0
        %1760 = vmatpush1.bf16.xpose.msra.mxu0 0
        %1761 = vmatprep.mubr.bf16.mxu0 0
        %1762 = vmatmul.mubr.bf16.gmra.mrb[0].mxu0 %v1724
        %v1763 = vpop.f32.mrb[0].mxu0
        %v1764 = vadd.f32 0.0, %v1763
        %v1765 = vpop.f32.mrb[0].mxu0
        %v1766 = vpop.f32.mrb[0].mxu0
        %v1767 = vpop.f32.mrb[0].mxu0
        %1768 = vdwg.mxu0
        %v1769 = vmul.f32 %v1764, 0.35355338
        %v1770 = vadd.f32 %v1769, %v676
        %v1771 = vsel %vm772, %v1770, -inf
        %1772 = vmax.xlane.f32.xlu0 %v1771
        %v1773 = vpop.xlane.xlu0 %1772
        %v1774 = vsub.f32 %v1770, %v1773
        %v1775 = vmul.f32 %v1774, 1.442695
        %v1776 = vpow.pop %v1775
        %v1777 = vsel %vm772, %v1776, 0.0
        %1778 = vadd.xlane.f32.xlu0 %v1777
        %v1779 = vpop.xlane.xlu0 %1778
        %v1780 = vrcp.pop %v1779
        %v1781 = vmul.f32 %v1776, %v1780
        %v1782 = vpack.c.bf16 %v1781, %v1781
        %1783 = vrot.lane.b32.xlu0 %v1719, 64
        %v1784 = vpop.permute.xlu0 %1783
        %v1786 = vsel %vm772, %v1782, 0
        %v1789 = vsel %vm838, %v1784, 0
        %1791 = vmatprep.subr.bf16.mxu0 0
        %1792 = vmatpush1.bf16.msra.mxu0 %v1789
        %1793 = vmatprep.subr.bf16.mxu0 0
        %1794 = vmatpush1.bf16.msra.mxu0 0
        %1795 = vmatprep.subr.bf16.mxu0 0
        %1796 = vmatpush1.bf16.msra.mxu0 0
        %1797 = vmatprep.subr.bf16.mxu0 0
        %1798 = vmatpush1.bf16.msra.mxu0 0
        %1799 = vmatprep.subr.bf16.mxu0 0
        %1800 = vmatpush1.bf16.msra.mxu0 0
        %1801 = vmatprep.subr.bf16.mxu0 0
        %1802 = vmatpush1.bf16.msra.mxu0 0
        %1803 = vmatprep.subr.bf16.mxu0 0
        %1804 = vmatpush1.bf16.msra.mxu0 0
        %1805 = vmatprep.subr.bf16.mxu0 0
        %1806 = vmatpush1.bf16.msra.mxu0 0
        %1807 = vmatprep.subr.bf16.mxu0 0
        %1808 = vmatpush1.bf16.msra.mxu0 0
        %1809 = vmatprep.subr.bf16.mxu0 0
        %1810 = vmatpush1.bf16.msra.mxu0 0
        %1811 = vmatprep.subr.bf16.mxu0 0
        %1812 = vmatpush1.bf16.msra.mxu0 0
        %1813 = vmatprep.subr.bf16.mxu0 0
        %1814 = vmatpush1.bf16.msra.mxu0 0
        %1815 = vmatprep.subr.bf16.mxu0 0
        %1816 = vmatpush1.bf16.msra.mxu0 0
        %1817 = vmatprep.subr.bf16.mxu0 0
        %1818 = vmatpush1.bf16.msra.mxu0 0
        %1819 = vmatprep.subr.bf16.mxu0 0
        %1820 = vmatpush1.bf16.msra.mxu0 0
        %1821 = vmatprep.subr.bf16.mxu0 0
        %1822 = vmatpush1.bf16.msra.mxu0 0
        %1823 = vmatprep.mubr.bf16.mxu0 0
        %1824 = vmatmul.mubr.bf16.gmra.mrb[0].mxu0 %v1786
        %v1825 = vpop.f32.mrb[0].mxu0
        %v1826 = vadd.f32 0.0, %v1825
        %v1827 = vpop.f32.mrb[0].mxu0
        %v1828 = vpop.f32.mrb[0].mxu0
        %v1829 = vpop.f32.mrb[0].mxu0
        %1830 = vdwg.mxu0
        %v1831 = vpack.c.bf16 %v1826, %v1826
        %1832 = vrot.lane.b32.xlu0 %v1719, 120
        %v1833 = vpop.permute.xlu0 %1832
        %1834 = vrot.lane.b32.xlu0 %v1719, 88
        %v1835 = vpop.permute.xlu0 %1834
        %v1837 = vsel %vm772, %v1833, 0
        %v1840 = vsel %vm772, %v1835, 0
        %1842 = vmatprep.subr.bf16.mxu0 0
        %1843 = vmatpush1.bf16.xpose.msra.mxu0 %v1840
        %1844 = vmatprep.subr.bf16.mxu0 0
        %1845 = vmatpush1.bf16.xpose.msra.mxu0 0
        %1846 = vmatprep.subr.bf16.mxu0 0
        %1847 = vmatpush1.bf16.xpose.msra.mxu0 0
        %1848 = vmatprep.subr.bf16.mxu0 0
        %1849 = vmatpush1.bf16.xpose.msra.mxu0 0
        %1850 = vmatprep.subr.bf16.mxu0 0
        %1851 = vmatpush1.bf16.xpose.msra.mxu0 0
        %1852 = vmatprep.subr.bf16.mxu0 0
        %1853 = vmatpush1.bf16.xpose.msra.mxu0 0
        %1854 = vmatprep.subr.bf16.mxu0 0
        %1855 = vmatpush1.bf16.xpose.msra.mxu0 0
        %1856 = vmatprep.subr.bf16.mxu0 0
        %1857 = vmatpush1.bf16.xpose.msra.mxu0 0
        %1858 = vmatprep.subr.bf16.mxu0 0
        %1859 = vmatpush1.bf16.xpose.msra.mxu0 0
        %1860 = vmatprep.subr.bf16.mxu0 0
        %1861 = vmatpush1.bf16.xpose.msra.mxu0 0
        %1862 = vmatprep.subr.bf16.mxu0 0
        %1863 = vmatpush1.bf16.xpose.msra.mxu0 0
        %1864 = vmatprep.subr.bf16.mxu0 0
        %1865 = vmatpush1.bf16.xpose.msra.mxu0 0
        %1866 = vmatprep.subr.bf16.mxu0 0
        %1867 = vmatpush1.bf16.xpose.msra.mxu0 0
        %1868 = vmatprep.subr.bf16.mxu0 0
        %1869 = vmatpush1.bf16.xpose.msra.mxu0 0
        %1870 = vmatprep.subr.bf16.mxu0 0
        %1871 = vmatpush1.bf16.xpose.msra.mxu0 0
        %1872 = vmatprep.subr.bf16.mxu0 0
        %1873 = vmatpush1.bf16.xpose.msra.mxu0 0
        %1874 = vmatprep.mubr.bf16.mxu0 0
        %1875 = vmatmul.mubr.bf16.gmra.mrb[0].mxu0 %v1837
        %v1876 = vpop.f32.mrb[0].mxu0
        %v1877 = vadd.f32 0.0, %v1876
        %v1878 = vpop.f32.mrb[0].mxu0
        %v1879 = vpop.f32.mrb[0].mxu0
        %v1880 = vpop.f32.mrb[0].mxu0
        %1881 = vdwg.mxu0
        %v1882 = vmul.f32 %v1877, 0.35355338
        %v1883 = vadd.f32 %v1882, %v676
        %v1884 = vsel %vm772, %v1883, -inf
        %1885 = vmax.xlane.f32.xlu0 %v1884
        %v1886 = vpop.xlane.xlu0 %1885
        %v1887 = vsub.f32 %v1883, %v1886
        %v1888 = vmul.f32 %v1887, 1.442695
        %v1889 = vpow.pop %v1888
        %v1890 = vsel %vm772, %v1889, 0.0
        %1891 = vadd.xlane.f32.xlu0 %v1890
        %v1892 = vpop.xlane.xlu0 %1891
        %v1893 = vrcp.pop %v1892
        %v1894 = vmul.f32 %v1889, %v1893
        %v1895 = vpack.c.bf16 %v1894, %v1894
        %1896 = vrot.lane.b32.xlu0 %v1719, 56
        %v1897 = vpop.permute.xlu0 %1896
        %v1899 = vsel %vm772, %v1895, 0
        %v1902 = vsel %vm838, %v1897, 0
        %1904 = vmatprep.subr.bf16.mxu0 0
        %1905 = vmatpush1.bf16.msra.mxu0 %v1902
        %1906 = vmatprep.subr.bf16.mxu0 0
        %1907 = vmatpush1.bf16.msra.mxu0 0
        %1908 = vmatprep.subr.bf16.mxu0 0
        %1909 = vmatpush1.bf16.msra.mxu0 0
        %1910 = vmatprep.subr.bf16.mxu0 0
        %1911 = vmatpush1.bf16.msra.mxu0 0
        %1912 = vmatprep.subr.bf16.mxu0 0
        %1913 = vmatpush1.bf16.msra.mxu0 0
        %1914 = vmatprep.subr.bf16.mxu0 0
        %1915 = vmatpush1.bf16.msra.mxu0 0
        %1916 = vmatprep.subr.bf16.mxu0 0
        %1917 = vmatpush1.bf16.msra.mxu0 0
        %1918 = vmatprep.subr.bf16.mxu0 0
        %1919 = vmatpush1.bf16.msra.mxu0 0
        %1920 = vmatprep.subr.bf16.mxu0 0
        %1921 = vmatpush1.bf16.msra.mxu0 0
        %1922 = vmatprep.subr.bf16.mxu0 0
        %1923 = vmatpush1.bf16.msra.mxu0 0
        %1924 = vmatprep.subr.bf16.mxu0 0
        %1925 = vmatpush1.bf16.msra.mxu0 0
        %1926 = vmatprep.subr.bf16.mxu0 0
        %1927 = vmatpush1.bf16.msra.mxu0 0
        %1928 = vmatprep.subr.bf16.mxu0 0
        %1929 = vmatpush1.bf16.msra.mxu0 0
        %1930 = vmatprep.subr.bf16.mxu0 0
        %1931 = vmatpush1.bf16.msra.mxu0 0
        %1932 = vmatprep.subr.bf16.mxu0 0
        %1933 = vmatpush1.bf16.msra.mxu0 0
        %1934 = vmatprep.subr.bf16.mxu0 0
        %1935 = vmatpush1.bf16.msra.mxu0 0
        %1936 = vmatprep.mubr.bf16.mxu0 0
        %1937 = vmatmul.mubr.bf16.gmra.mrb[0].mxu0 %v1899
        %v1938 = vpop.f32.mrb[0].mxu0
        %v1939 = vadd.f32 0.0, %v1938
        %v1940 = vpop.f32.mrb[0].mxu0
        %v1941 = vpop.f32.mrb[0].mxu0
        %v1942 = vpop.f32.mrb[0].mxu0
        %1943 = vdwg.mxu0
        %v1944 = vpack.c.bf16 %v1939, %v1939
        %v1946 = vsel %vm772, %v1944, 0
        %v1949 = vsel %vm838, %v1624, 0
        %1951 = vmatprep.subr.bf16.mxu0 0
        %1952 = vmatpush1.bf16.msra.mxu0 %v1949
        %1953 = vmatprep.subr.bf16.mxu0 0
        %1954 = vmatpush1.bf16.msra.mxu0 0
        %1955 = vmatprep.subr.bf16.mxu0 0
        %1956 = vmatpush1.bf16.msra.mxu0 0
        %1957 = vmatprep.subr.bf16.mxu0 0
        %1958 = vmatpush1.bf16.msra.mxu0 0
        %1959 = vmatprep.subr.bf16.mxu0 0
        %1960 = vmatpush1.bf16.msra.mxu0 0
        %1961 = vmatprep.subr.bf16.mxu0 0
        %1962 = vmatpush1.bf16.msra.mxu0 0
        %1963 = vmatprep.subr.bf16.mxu0 0
        %1964 = vmatpush1.bf16.msra.mxu0 0
        %1965 = vmatprep.subr.bf16.mxu0 0
        %1966 = vmatpush1.bf16.msra.mxu0 0
        %1967 = vmatprep.subr.bf16.mxu0 0
        %1968 = vmatpush1.bf16.msra.mxu0 0
        %1969 = vmatprep.subr.bf16.mxu0 0
        %1970 = vmatpush1.bf16.msra.mxu0 0
        %1971 = vmatprep.subr.bf16.mxu0 0
        %1972 = vmatpush1.bf16.msra.mxu0 0
        %1973 = vmatprep.subr.bf16.mxu0 0
        %1974 = vmatpush1.bf16.msra.mxu0 0
        %1975 = vmatprep.subr.bf16.mxu0 0
        %1976 = vmatpush1.bf16.msra.mxu0 0
        %1977 = vmatprep.subr.bf16.mxu0 0
        %1978 = vmatpush1.bf16.msra.mxu0 0
        %1979 = vmatprep.subr.bf16.mxu0 0
        %1980 = vmatpush1.bf16.msra.mxu0 0
        %1981 = vmatprep.subr.bf16.mxu0 0
        %1982 = vmatpush1.bf16.msra.mxu0 0
        %1983 = vmatprep.mubr.bf16.mxu0 0
        %1984 = vmatmul.mubr.bf16.gmra.mrb[0].mxu0 %v1946
        %v1985 = vpop.f32.mrb[0].mxu0
        %v1986 = vadd.f32 0.0, %v1985
        %v1987 = vpop.f32.mrb[0].mxu0
        %v1988 = vpop.f32.mrb[0].mxu0
        %v1989 = vpop.f32.mrb[0].mxu0
        %1990 = vdwg.mxu0
        %v1992 = vsel %vm772, %v1831, 0
        %v1995 = vsel %vm838, %v1623, 0
        %1997 = vmatprep.subr.bf16.mxu0 0
        %1998 = vmatpush1.bf16.msra.mxu0 %v1995
        %1999 = vmatprep.subr.bf16.mxu0 0
        %2000 = vmatpush1.bf16.msra.mxu0 0
        %2001 = vmatprep.subr.bf16.mxu0 0
        %2002 = vmatpush1.bf16.msra.mxu0 0
        %2003 = vmatprep.subr.bf16.mxu0 0
        %2004 = vmatpush1.bf16.msra.mxu0 0
        %2005 = vmatprep.subr.bf16.mxu0 0
        %2006 = vmatpush1.bf16.msra.mxu0 0
        %2007 = vmatprep.subr.bf16.mxu0 0
        %2008 = vmatpush1.bf16.msra.mxu0 0
        %2009 = vmatprep.subr.bf16.mxu0 0
        %2010 = vmatpush1.bf16.msra.mxu0 0
        %2011 = vmatprep.subr.bf16.mxu0 0
        %2012 = vmatpush1.bf16.msra.mxu0 0
        %2013 = vmatprep.subr.bf16.mxu0 0
        %2014 = vmatpush1.bf16.msra.mxu0 0
        %2015 = vmatprep.subr.bf16.mxu0 0
        %2016 = vmatpush1.bf16.msra.mxu0 0
        %2017 = vmatprep.subr.bf16.mxu0 0
        %2018 = vmatpush1.bf16.msra.mxu0 0
        %2019 = vmatprep.subr.bf16.mxu0 0
        %2020 = vmatpush1.bf16.msra.mxu0 0
        %2021 = vmatprep.subr.bf16.mxu0 0
        %2022 = vmatpush1.bf16.msra.mxu0 0
        %2023 = vmatprep.subr.bf16.mxu0 0
        %2024 = vmatpush1.bf16.msra.mxu0 0
        %2025 = vmatprep.subr.bf16.mxu0 0
        %2026 = vmatpush1.bf16.msra.mxu0 0
        %2027 = vmatprep.subr.bf16.mxu0 0
        %2028 = vmatpush1.bf16.msra.mxu0 0
        %2029 = vmatprep.mubr.bf16.mxu0 0
        %2030 = vmatmul.mubr.bf16.gmra.mrb[0].mxu0 %v1992
        %v2031 = vpop.f32.mrb[0].mxu0
        %v2032 = vadd.f32 %v1986, %v2031
        %v2033 = vpop.f32.mrb[0].mxu0
        %v2034 = vpop.f32.mrb[0].mxu0
        %v2035 = vpop.f32.mrb[0].mxu0
        %2036 = vdwg.mxu0
        %2037 = vrot.lane.b32.xlu0 %v1719, 112
        %v2038 = vpop.permute.xlu0 %2037
        %2039 = vrot.lane.b32.xlu0 %v1719, 80
        %v2040 = vpop.permute.xlu0 %2039
        %v2042 = vsel %vm772, %v2038, 0
        %v2045 = vsel %vm772, %v2040, 0
        %2047 = vmatprep.subr.bf16.mxu0 0
        %2048 = vmatpush1.bf16.xpose.msra.mxu0 %v2045
        %2049 = vmatprep.subr.bf16.mxu0 0
        %2050 = vmatpush1.bf16.xpose.msra.mxu0 0
        %2051 = vmatprep.subr.bf16.mxu0 0
        %2052 = vmatpush1.bf16.xpose.msra.mxu0 0
        %2053 = vmatprep.subr.bf16.mxu0 0
        %2054 = vmatpush1.bf16.xpose.msra.mxu0 0
        %2055 = vmatprep.subr.bf16.mxu0 0
        %2056 = vmatpush1.bf16.xpose.msra.mxu0 0
        %2057 = vmatprep.subr.bf16.mxu0 0
        %2058 = vmatpush1.bf16.xpose.msra.mxu0 0
        %2059 = vmatprep.subr.bf16.mxu0 0
        %2060 = vmatpush1.bf16.xpose.msra.mxu0 0
        %2061 = vmatprep.subr.bf16.mxu0 0
        %2062 = vmatpush1.bf16.xpose.msra.mxu0 0
        %2063 = vmatprep.subr.bf16.mxu0 0
        %2064 = vmatpush1.bf16.xpose.msra.mxu0 0
        %2065 = vmatprep.subr.bf16.mxu0 0
        %2066 = vmatpush1.bf16.xpose.msra.mxu0 0
        %2067 = vmatprep.subr.bf16.mxu0 0
        %2068 = vmatpush1.bf16.xpose.msra.mxu0 0
        %2069 = vmatprep.subr.bf16.mxu0 0
        %2070 = vmatpush1.bf16.xpose.msra.mxu0 0
        %2071 = vmatprep.subr.bf16.mxu0 0
        %2072 = vmatpush1.bf16.xpose.msra.mxu0 0
        %2073 = vmatprep.subr.bf16.mxu0 0
        %2074 = vmatpush1.bf16.xpose.msra.mxu0 0
        %2075 = vmatprep.subr.bf16.mxu0 0
        %2076 = vmatpush1.bf16.xpose.msra.mxu0 0
        %2077 = vmatprep.subr.bf16.mxu0 0
        %2078 = vmatpush1.bf16.xpose.msra.mxu0 0
        %2079 = vmatprep.mubr.bf16.mxu0 0
        %2080 = vmatmul.mubr.bf16.gmra.mrb[0].mxu0 %v2042
        %v2081 = vpop.f32.mrb[0].mxu0
        %v2082 = vadd.f32 0.0, %v2081
        %v2083 = vpop.f32.mrb[0].mxu0
        %v2084 = vpop.f32.mrb[0].mxu0
        %v2085 = vpop.f32.mrb[0].mxu0
        %2086 = vdwg.mxu0
        %v2087 = vmul.f32 %v2082, 0.35355338
        %v2088 = vadd.f32 %v2087, %v676
        %v2089 = vsel %vm772, %v2088, -inf
        %2090 = vmax.xlane.f32.xlu0 %v2089
        %v2091 = vpop.xlane.xlu0 %2090
        %v2092 = vsub.f32 %v2088, %v2091
        %v2093 = vmul.f32 %v2092, 1.442695
        %v2094 = vpow.pop %v2093
        %v2095 = vsel %vm772, %v2094, 0.0
        %2096 = vadd.xlane.f32.xlu0 %v2095
        %v2097 = vpop.xlane.xlu0 %2096
        %v2098 = vrcp.pop %v2097
        %v2099 = vmul.f32 %v2094, %v2098
        %v2100 = vpack.c.bf16 %v2099, %v2099
        %2101 = vrot.lane.b32.xlu0 %v1719, 48
        %v2102 = vpop.permute.xlu0 %2101
        %v2104 = vsel %vm772, %v2100, 0
        %v2107 = vsel %vm838, %v2102, 0
        %2109 = vmatprep.subr.bf16.mxu0 0
        %2110 = vmatpush1.bf16.msra.mxu0 %v2107
        %2111 = vmatprep.subr.bf16.mxu0 0
        %2112 = vmatpush1.bf16.msra.mxu0 0
        %2113 = vmatprep.subr.bf16.mxu0 0
        %2114 = vmatpush1.bf16.msra.mxu0 0
        %2115 = vmatprep.subr.bf16.mxu0 0
        %2116 = vmatpush1.bf16.msra.mxu0 0
        %2117 = vmatprep.subr.bf16.mxu0 0
        %2118 = vmatpush1.bf16.msra.mxu0 0
        %2119 = vmatprep.subr.bf16.mxu0 0
        %2120 = vmatpush1.bf16.msra.mxu0 0
        %2121 = vmatprep.subr.bf16.mxu0 0
        %2122 = vmatpush1.bf16.msra.mxu0 0
        %2123 = vmatprep.subr.bf16.mxu0 0
        %2124 = vmatpush1.bf16.msra.mxu0 0
        %2125 = vmatprep.subr.bf16.mxu0 0
        %2126 = vmatpush1.bf16.msra.mxu0 0
        %2127 = vmatprep.subr.bf16.mxu0 0
        %2128 = vmatpush1.bf16.msra.mxu0 0
        %2129 = vmatprep.subr.bf16.mxu0 0
        %2130 = vmatpush1.bf16.msra.mxu0 0
        %2131 = vmatprep.subr.bf16.mxu0 0
        %2132 = vmatpush1.bf16.msra.mxu0 0
        %2133 = vmatprep.subr.bf16.mxu0 0
        %2134 = vmatpush1.bf16.msra.mxu0 0
        %2135 = vmatprep.subr.bf16.mxu0 0
        %2136 = vmatpush1.bf16.msra.mxu0 0
        %2137 = vmatprep.subr.bf16.mxu0 0
        %2138 = vmatpush1.bf16.msra.mxu0 0
        %2139 = vmatprep.subr.bf16.mxu0 0
        %2140 = vmatpush1.bf16.msra.mxu0 0
        %2141 = vmatprep.mubr.bf16.mxu0 0
        %2142 = vmatmul.mubr.bf16.gmra.mrb[0].mxu0 %v2104
        %v2143 = vpop.f32.mrb[0].mxu0
        %v2144 = vadd.f32 0.0, %v2143
        %v2145 = vpop.f32.mrb[0].mxu0
        %v2146 = vpop.f32.mrb[0].mxu0
        %v2147 = vpop.f32.mrb[0].mxu0
        %2148 = vdwg.mxu0
        %v2149 = vpack.c.bf16 %v2144, %v2144
        %v2151 = vsel %vm772, %v2149, 0
        %v2154 = vsel %vm838, %v1625, 0
        %2156 = vmatprep.subr.bf16.mxu0 0
        %2157 = vmatpush1.bf16.msra.mxu0 %v2154
        %2158 = vmatprep.subr.bf16.mxu0 0
        %2159 = vmatpush1.bf16.msra.mxu0 0
        %2160 = vmatprep.subr.bf16.mxu0 0
        %2161 = vmatpush1.bf16.msra.mxu0 0
        %2162 = vmatprep.subr.bf16.mxu0 0
        %2163 = vmatpush1.bf16.msra.mxu0 0
        %2164 = vmatprep.subr.bf16.mxu0 0
        %2165 = vmatpush1.bf16.msra.mxu0 0
        %2166 = vmatprep.subr.bf16.mxu0 0
        %2167 = vmatpush1.bf16.msra.mxu0 0
        %2168 = vmatprep.subr.bf16.mxu0 0
        %2169 = vmatpush1.bf16.msra.mxu0 0
        %2170 = vmatprep.subr.bf16.mxu0 0
        %2171 = vmatpush1.bf16.msra.mxu0 0
        %2172 = vmatprep.subr.bf16.mxu0 0
        %2173 = vmatpush1.bf16.msra.mxu0 0
        %2174 = vmatprep.subr.bf16.mxu0 0
        %2175 = vmatpush1.bf16.msra.mxu0 0
        %2176 = vmatprep.subr.bf16.mxu0 0
        %2177 = vmatpush1.bf16.msra.mxu0 0
        %2178 = vmatprep.subr.bf16.mxu0 0
        %2179 = vmatpush1.bf16.msra.mxu0 0
        %2180 = vmatprep.subr.bf16.mxu0 0
        %2181 = vmatpush1.bf16.msra.mxu0 0
        %2182 = vmatprep.subr.bf16.mxu0 0
        %2183 = vmatpush1.bf16.msra.mxu0 0
        %2184 = vmatprep.subr.bf16.mxu0 0
        %2185 = vmatpush1.bf16.msra.mxu0 0
        %2186 = vmatprep.subr.bf16.mxu0 0
        %2187 = vmatpush1.bf16.msra.mxu0 0
        %2188 = vmatprep.mubr.bf16.mxu0 0
        %2189 = vmatmul.mubr.bf16.gmra.mrb[0].mxu0 %v2151
        %v2190 = vpop.f32.mrb[0].mxu0
        %v2191 = vadd.f32 0.0, %v2190
        %v2192 = vpop.f32.mrb[0].mxu0
        %v2193 = vpop.f32.mrb[0].mxu0
        %v2194 = vpop.f32.mrb[0].mxu0
        %2195 = vdwg.mxu0
        %v2196 = vadd.f32 %v2032, %v2191
        %2197 = vrot.lane.b32.xlu0 %v1719, 104
        %v2198 = vpop.permute.xlu0 %2197
        %2199 = vrot.lane.b32.xlu0 %v1719, 72
        %v2200 = vpop.permute.xlu0 %2199
        %v2202 = vsel %vm772, %v2198, 0
        %v2205 = vsel %vm772, %v2200, 0
        %2207 = vmatprep.subr.bf16.mxu0 0
        %2208 = vmatpush1.bf16.xpose.msra.mxu0 %v2205
        %2209 = vmatprep.subr.bf16.mxu0 0
        %2210 = vmatpush1.bf16.xpose.msra.mxu0 0
        %2211 = vmatprep.subr.bf16.mxu0 0
        %2212 = vmatpush1.bf16.xpose.msra.mxu0 0
        %2213 = vmatprep.subr.bf16.mxu0 0
        %2214 = vmatpush1.bf16.xpose.msra.mxu0 0
        %2215 = vmatprep.subr.bf16.mxu0 0
        %2216 = vmatpush1.bf16.xpose.msra.mxu0 0
        %2217 = vmatprep.subr.bf16.mxu0 0
        %2218 = vmatpush1.bf16.xpose.msra.mxu0 0
        %2219 = vmatprep.subr.bf16.mxu0 0
        %2220 = vmatpush1.bf16.xpose.msra.mxu0 0
        %2221 = vmatprep.subr.bf16.mxu0 0
        %2222 = vmatpush1.bf16.xpose.msra.mxu0 0
        %2223 = vmatprep.subr.bf16.mxu0 0
        %2224 = vmatpush1.bf16.xpose.msra.mxu0 0
        %2225 = vmatprep.subr.bf16.mxu0 0
        %2226 = vmatpush1.bf16.xpose.msra.mxu0 0
        %2227 = vmatprep.subr.bf16.mxu0 0
        %2228 = vmatpush1.bf16.xpose.msra.mxu0 0
        %2229 = vmatprep.subr.bf16.mxu0 0
        %2230 = vmatpush1.bf16.xpose.msra.mxu0 0
        %2231 = vmatprep.subr.bf16.mxu0 0
        %2232 = vmatpush1.bf16.xpose.msra.mxu0 0
        %2233 = vmatprep.subr.bf16.mxu0 0
        %2234 = vmatpush1.bf16.xpose.msra.mxu0 0
        %2235 = vmatprep.subr.bf16.mxu0 0
        %2236 = vmatpush1.bf16.xpose.msra.mxu0 0
        %2237 = vmatprep.subr.bf16.mxu0 0
        %2238 = vmatpush1.bf16.xpose.msra.mxu0 0
        %2239 = vmatprep.mubr.bf16.mxu0 0
        %2240 = vmatmul.mubr.bf16.gmra.mrb[0].mxu0 %v2202
        %v2241 = vpop.f32.mrb[0].mxu0
        %v2242 = vadd.f32 0.0, %v2241
        %v2243 = vpop.f32.mrb[0].mxu0
        %v2244 = vpop.f32.mrb[0].mxu0
        %v2245 = vpop.f32.mrb[0].mxu0
        %2246 = vdwg.mxu0
        %v2247 = vmul.f32 %v2242, 0.35355338
        %v2248 = vadd.f32 %v2247, %v676
        %v2249 = vsel %vm772, %v2248, -inf
        %2250 = vmax.xlane.f32.xlu0 %v2249
        %v2251 = vpop.xlane.xlu0 %2250
        %v2252 = vsub.f32 %v2248, %v2251
        %v2253 = vmul.f32 %v2252, 1.442695
        %v2254 = vpow.pop %v2253
        %v2255 = vsel %vm772, %v2254, 0.0
        %2256 = vadd.xlane.f32.xlu0 %v2255
        %v2257 = vpop.xlane.xlu0 %2256
        %v2258 = vrcp.pop %v2257
        %v2259 = vmul.f32 %v2254, %v2258
        %v2260 = vpack.c.bf16 %v2259, %v2259
        %2261 = vrot.lane.b32.xlu0 %v1719, 40
        %v2262 = vpop.permute.xlu0 %2261
        %v2264 = vsel %vm772, %v2260, 0
        %v2267 = vsel %vm838, %v2262, 0
        %2269 = vmatprep.subr.bf16.mxu0 0
        %2270 = vmatpush1.bf16.msra.mxu0 %v2267
        %2271 = vmatprep.subr.bf16.mxu0 0
        %2272 = vmatpush1.bf16.msra.mxu0 0
        %2273 = vmatprep.subr.bf16.mxu0 0
        %2274 = vmatpush1.bf16.msra.mxu0 0
        %2275 = vmatprep.subr.bf16.mxu0 0
        %2276 = vmatpush1.bf16.msra.mxu0 0
        %2277 = vmatprep.subr.bf16.mxu0 0
        %2278 = vmatpush1.bf16.msra.mxu0 0
        %2279 = vmatprep.subr.bf16.mxu0 0
        %2280 = vmatpush1.bf16.msra.mxu0 0
        %2281 = vmatprep.subr.bf16.mxu0 0
        %2282 = vmatpush1.bf16.msra.mxu0 0
        %2283 = vmatprep.subr.bf16.mxu0 0
        %2284 = vmatpush1.bf16.msra.mxu0 0
        %2285 = vmatprep.subr.bf16.mxu0 0
        %2286 = vmatpush1.bf16.msra.mxu0 0
        %2287 = vmatprep.subr.bf16.mxu0 0
        %2288 = vmatpush1.bf16.msra.mxu0 0
        %2289 = vmatprep.subr.bf16.mxu0 0
        %2290 = vmatpush1.bf16.msra.mxu0 0
        %2291 = vmatprep.subr.bf16.mxu0 0
        %2292 = vmatpush1.bf16.msra.mxu0 0
        %2293 = vmatprep.subr.bf16.mxu0 0
        %2294 = vmatpush1.bf16.msra.mxu0 0
        %2295 = vmatprep.subr.bf16.mxu0 0
        %2296 = vmatpush1.bf16.msra.mxu0 0
        %2297 = vmatprep.subr.bf16.mxu0 0
        %2298 = vmatpush1.bf16.msra.mxu0 0
        %2299 = vmatprep.subr.bf16.mxu0 0
        %2300 = vmatpush1.bf16.msra.mxu0 0
        %2301 = vmatprep.mubr.bf16.mxu0 0
        %2302 = vmatmul.mubr.bf16.gmra.mrb[0].mxu0 %v2264
        %v2303 = vpop.f32.mrb[0].mxu0
        %v2304 = vadd.f32 0.0, %v2303
        %v2305 = vpop.f32.mrb[0].mxu0
        %v2306 = vpop.f32.mrb[0].mxu0
        %v2307 = vpop.f32.mrb[0].mxu0
        %2308 = vdwg.mxu0
        %v2309 = vpack.c.bf16 %v2304, %v2304
        %v2311 = vsel %vm772, %v2309, 0
        %v2314 = vsel %vm838, %v1626, 0
        %2316 = vmatprep.subr.bf16.mxu0 0
        %2317 = vmatpush1.bf16.msra.mxu0 %v2314
        %2318 = vmatprep.subr.bf16.mxu0 0
        %2319 = vmatpush1.bf16.msra.mxu0 0
        %2320 = vmatprep.subr.bf16.mxu0 0
        %2321 = vmatpush1.bf16.msra.mxu0 0
        %2322 = vmatprep.subr.bf16.mxu0 0
        %2323 = vmatpush1.bf16.msra.mxu0 0
        %2324 = vmatprep.subr.bf16.mxu0 0
        %2325 = vmatpush1.bf16.msra.mxu0 0
        %2326 = vmatprep.subr.bf16.mxu0 0
        %2327 = vmatpush1.bf16.msra.mxu0 0
        %2328 = vmatprep.subr.bf16.mxu0 0
        %2329 = vmatpush1.bf16.msra.mxu0 0
        %2330 = vmatprep.subr.bf16.mxu0 0
        %2331 = vmatpush1.bf16.msra.mxu0 0
        %2332 = vmatprep.subr.bf16.mxu0 0
        %2333 = vmatpush1.bf16.msra.mxu0 0
        %2334 = vmatprep.subr.bf16.mxu0 0
        %2335 = vmatpush1.bf16.msra.mxu0 0
        %2336 = vmatprep.subr.bf16.mxu0 0
        %2337 = vmatpush1.bf16.msra.mxu0 0
        %2338 = vmatprep.subr.bf16.mxu0 0
        %2339 = vmatpush1.bf16.msra.mxu0 0
        %2340 = vmatprep.subr.bf16.mxu0 0
        %2341 = vmatpush1.bf16.msra.mxu0 0
        %2342 = vmatprep.subr.bf16.mxu0 0
        %2343 = vmatpush1.bf16.msra.mxu0 0
        %2344 = vmatprep.subr.bf16.mxu0 0
        %2345 = vmatpush1.bf16.msra.mxu0 0
        %2346 = vmatprep.subr.bf16.mxu0 0
        %2347 = vmatpush1.bf16.msra.mxu0 0
        %2348 = vmatprep.mubr.bf16.mxu0 0
        %2349 = vmatmul.mubr.bf16.gmra.mrb[0].mxu0 %v2311
        %v2350 = vpop.f32.mrb[0].mxu0
        %v2351 = vadd.f32 0.0, %v2350
        %v2352 = vpop.f32.mrb[0].mxu0
        %v2353 = vpop.f32.mrb[0].mxu0
        %v2354 = vpop.f32.mrb[0].mxu0
        %2355 = vdwg.mxu0
        %v2356 = vadd.f32 %v2196, %v2351
        %v2358 = vlaneseq
        %v2359 = vshrl.u32 %v2358, 7
        %v2360 = vsub.s32 0, %v2359
        %v2361 = vrot.slane %v1644, %v2360
        %v2363 = vadd.f32 %v2356, %v2361
        %v2364 = vadd.f32 %v2363, %v1616
        %v2365 = vsel %vm642, %v2364, 0.0
        %2366 = vadd.xlane.f32.xlu0 %v2365
        %v2367 = vpop.xlane.xlu0 %2366
        %v2368 = vmul.f32 %v2367, %v646
        %v2369 = vsub.f32 %v2364, %v2368
        %v2370 = vmul.f32 %v2369, %v2369
        %v2371 = vsel %vm642, %v2370, 0.0
        %2372 = vadd.xlane.f32.xlu0 %v2371
        %v2373 = vpop.xlane.xlu0 %2372
        %v2374 = vmul.f32 %v2373, %v646
        %v2375 = vadd.f32 %v2374, 1e-12
        %v2376 = vrsqrt.pop %v2375
        %v2377 = vmul.f32 %v2369, %v2376
        %v2379 = vlaneseq
        %v2380 = vshrl.u32 %v2379, 7
        %v2381 = vsub.s32 0, %v2380
        %v2382 = vrot.slane %v1650, %v2381
        %v2384 = vmul.f32 %v2377, %v2382
        %v2386 = vlaneseq
        %v2387 = vshrl.u32 %v2386, 7
        %v2388 = vsub.s32 0, %v2387
        %v2389 = vrot.slane %v1652, %v2388
        %v2391 = vadd.f32 %v2384, %v2389
        %v2392 = vpack.c.bf16 %v2391, %v2391
        %v2394 = vlaneseq
        %v2395 = vshrl.u32 %v2394, 7
        %v2396 = vsub.s32 0, %v2395
        %v2397 = vrot.slane %v1646, %v2396
        %v2403 = vunpack.c.l.b16 %v1628
        %v2404 = vunpack.c.l.b16 %v1629
        %v2405 = vunpack.c.l.b16 %v1630
        %v2406 = vunpack.c.l.b16 %v1631
        %v2407 = vpack.c.b16 %v2404, %v2403
        %v2408 = vpack.c.b16 %v2406, %v2405
        %v2412 = vsel %vm642, %v2392, 0
        %2414 = vmatprep.subr.bf16.mxu0 0
        %2415 = vmatpush1.bf16.msra.mxu0 %v2407
        %2416 = vmatprep.subr.bf16.mxu0 0
        %2417 = vmatpush1.bf16.msra.mxu0 %v2408
        %2418 = vmatprep.subr.bf16.mxu0 0
        %2419 = vmatpush1.bf16.msra.mxu0 0
        %2420 = vmatprep.subr.bf16.mxu0 0
        %2421 = vmatpush1.bf16.msra.mxu0 0
        %2422 = vmatprep.subr.bf16.mxu0 0
        %2423 = vmatpush1.bf16.msra.mxu0 0
        %2424 = vmatprep.subr.bf16.mxu0 0
        %2425 = vmatpush1.bf16.msra.mxu0 0
        %2426 = vmatprep.subr.bf16.mxu0 0
        %2427 = vmatpush1.bf16.msra.mxu0 0
        %2428 = vmatprep.subr.bf16.mxu0 0
        %2429 = vmatpush1.bf16.msra.mxu0 0
        %2430 = vmatprep.subr.bf16.mxu0 0
        %2431 = vmatpush1.bf16.msra.mxu0 0
        %2432 = vmatprep.subr.bf16.mxu0 0
        %2433 = vmatpush1.bf16.msra.mxu0 0
        %2434 = vmatprep.subr.bf16.mxu0 0
        %2435 = vmatpush1.bf16.msra.mxu0 0
        %2436 = vmatprep.subr.bf16.mxu0 0
        %2437 = vmatpush1.bf16.msra.mxu0 0
        %2438 = vmatprep.subr.bf16.mxu0 0
        %2439 = vmatpush1.bf16.msra.mxu0 0
        %2440 = vmatprep.subr.bf16.mxu0 0
        %2441 = vmatpush1.bf16.msra.mxu0 0
        %2442 = vmatprep.subr.bf16.mxu0 0
        %2443 = vmatpush1.bf16.msra.mxu0 0
        %2444 = vmatprep.subr.bf16.mxu0 0
        %2445 = vmatpush1.bf16.msra.mxu0 0
        %2446 = vmatprep.mubr.bf16.mxu0 0
        %2447 = vmatmul.mubr.bf16.gmra.mrb[0].mxu0 %v2412
        %v2448 = vpop.f32.mrb[0].mxu0
        %v2449 = vadd.f32 %v2397, %v2448
        %v2450 = vpop.f32.mrb[0].mxu0
        %v2451 = vpop.f32.mrb[0].mxu0
        %v2452 = vpop.f32.mrb[0].mxu0
        %2453 = vdwg.mxu0
        %v2454 = vmul.f32 %v2449, 0.5
        %v2455 = vmul.f32 %v2449, 0.044715
        %v2456 = vmul.f32 %v2455, %v2449
        %v2457 = vmul.f32 %v2456, %v2449
        %v2458 = vadd.f32 %v2449, %v2457
        %v2459 = vmul.f32 %v2458, 0.7978846
        %v2460 = vtanh.pop %v2459
        %v2461 = vadd.f32 %v2460, 1.0
        %v2462 = vmul.f32 %v2454, %v2461
        %v2463 = vpack.c.bf16 %v2462, %v2462
        %v2465 = vlaneseq
        %v2466 = vshrl.u32 %v2465, 7
        %v2467 = vsub.s32 0, %v2466
        %v2468 = vrot.slane %v1648, %v2467
        %v2478 = vunpack.c.l.b16 %v1633
        %v2479 = vunpack.c.l.b16 %v1634
        %v2480 = vunpack.c.l.b16 %v1635
        %v2481 = vunpack.c.l.b16 %v1636
        %v2482 = vunpack.c.l.b16 %v1637
        %v2483 = vunpack.c.l.b16 %v1638
        %v2484 = vunpack.c.l.b16 %v1639
        %v2485 = vunpack.c.l.b16 %v1640
        %v2486 = vpack.c.b16 %v2479, %v2478
        %v2487 = vpack.c.b16 %v2481, %v2480
        %v2488 = vpack.c.b16 %v2483, %v2482
        %v2489 = vpack.c.b16 %v2485, %v2484
        %v2495 = vsel %vm1545, %v2463, 0
        %2497 = vmatprep.subr.bf16.mxu0 0
        %2498 = vmatpush1.bf16.msra.mxu0 %v2486
        %2499 = vmatprep.subr.bf16.mxu0 0
        %2500 = vmatpush1.bf16.msra.mxu0 %v2487
        %2501 = vmatprep.subr.bf16.mxu0 0
        %2502 = vmatpush1.bf16.msra.mxu0 %v2488
        %2503 = vmatprep.subr.bf16.mxu0 0
        %2504 = vmatpush1.bf16.msra.mxu0 %v2489
        %2505 = vmatprep.subr.bf16.mxu0 0
        %2506 = vmatpush1.bf16.msra.mxu0 0
        %2507 = vmatprep.subr.bf16.mxu0 0
        %2508 = vmatpush1.bf16.msra.mxu0 0
        %2509 = vmatprep.subr.bf16.mxu0 0
        %2510 = vmatpush1.bf16.msra.mxu0 0
        %2511 = vmatprep.subr.bf16.mxu0 0
        %2512 = vmatpush1.bf16.msra.mxu0 0
        %2513 = vmatprep.subr.bf16.mxu0 0
        %2514 = vmatpush1.bf16.msra.mxu0 0
        %2515 = vmatprep.subr.bf16.mxu0 0
        %2516 = vmatpush1.bf16.msra.mxu0 0
        %2517 = vmatprep.subr.bf16.mxu0 0
        %2518 = vmatpush1.bf16.msra.mxu0 0
        %2519 = vmatprep.subr.bf16.mxu0 0
        %2520 = vmatpush1.bf16.msra.mxu0 0
        %2521 = vmatprep.subr.bf16.mxu0 0
        %2522 = vmatpush1.bf16.msra.mxu0 0
        %2523 = vmatprep.subr.bf16.mxu0 0
        %2524 = vmatpush1.bf16.msra.mxu0 0
        %2525 = vmatprep.subr.bf16.mxu0 0
        %2526 = vmatpush1.bf16.msra.mxu0 0
        %2527 = vmatprep.subr.bf16.mxu0 0
        %2528 = vmatpush1.bf16.msra.mxu0 0
        %2529 = vmatprep.mubr.bf16.mxu0 0
        %2530 = vmatmul.mubr.bf16.gmra.mrb[0].mxu0 %v2495
        %v2531 = vpop.f32.mrb[0].mxu0
        %v2532 = vadd.f32 %v2468, %v2531
        %v2533 = vpop.f32.mrb[0].mxu0
        %v2534 = vpop.f32.mrb[0].mxu0
        %v2535 = vpop.f32.mrb[0].mxu0
        %2536 = vdwg.mxu0
        %v2537 = vadd.f32 %v2532, %v2391
        %v2538 = vsel %vm642, %v2537, 0.0
        %2539 = vadd.xlane.f32.xlu0 %v2538
        %v2540 = vpop.xlane.xlu0 %2539
        %v2541 = vmul.f32 %v2540, %v646
        %v2542 = vsub.f32 %v2537, %v2541
        %v2543 = vmul.f32 %v2542, %v2542
        %v2544 = vsel %vm642, %v2543, 0.0
        %2545 = vadd.xlane.f32.xlu0 %v2544
        %v2546 = vpop.xlane.xlu0 %2545
        %v2547 = vmul.f32 %v2546, %v646
        %v2548 = vadd.f32 %v2547, 1e-12
        %v2549 = vrsqrt.pop %v2548
        %v2550 = vmul.f32 %v2542, %v2549
        %v2552 = vlaneseq
        %v2553 = vshrl.u32 %v2552, 7
        %v2554 = vsub.s32 0, %v2553
        %v2555 = vrot.slane %v1654, %v2554
        %v2557 = vmul.f32 %v2550, %v2555
        %v2559 = vlaneseq
        %v2560 = vshrl.u32 %v2559, 7
        %v2561 = vsub.s32 0, %v2560
        %v2562 = vrot.slane %v1656, %v2561
        %v2564 = vadd.f32 %v2557, %v2562
        %v2565 = vpack.c.bf16 %v2564, %v2564
        %v2566 = vld [vmem:[%s16] sm:$0xf]
        %v2567 = vld [vmem:[%s16 + $0x4] sm:$0xf]
        %v2568 = vld [vmem:[%s16 + $0x8] sm:$0xf]
        %v2569 = vld [vmem:[%s16 + $0xc] sm:$0xf]
        %v2570 = vld [vmem:[%s17] sm:$0x1]
        %v2575 = vunpack.c.l.b16 %v2566
        %v2576 = vunpack.c.l.b16 %v2567
        %v2577 = vunpack.c.l.b16 %v2568
        %v2578 = vunpack.c.l.b16 %v2569
        %v2579 = vpack.c.b16 %v2576, %v2575
        %v2580 = vpack.c.b16 %v2578, %v2577
        %v2584 = vsel %vm642, %v2565, 0
        %2586 = vmatprep.subr.bf16.mxu0 0
        %2587 = vmatpush1.bf16.msra.mxu0 %v2579
        %2588 = vmatprep.subr.bf16.mxu0 0
        %2589 = vmatpush1.bf16.msra.mxu0 %v2580
        %2590 = vmatprep.subr.bf16.mxu0 0
        %2591 = vmatpush1.bf16.msra.mxu0 0
        %2592 = vmatprep.subr.bf16.mxu0 0
        %2593 = vmatpush1.bf16.msra.mxu0 0
        %2594 = vmatprep.subr.bf16.mxu0 0
        %2595 = vmatpush1.bf16.msra.mxu0 0
        %2596 = vmatprep.subr.bf16.mxu0 0
        %2597 = vmatpush1.bf16.msra.mxu0 0
        %2598 = vmatprep.subr.bf16.mxu0 0
        %2599 = vmatpush1.bf16.msra.mxu0 0
        %2600 = vmatprep.subr.bf16.mxu0 0
        %2601 = vmatpush1.bf16.msra.mxu0 0
        %2602 = vmatprep.subr.bf16.mxu0 0
        %2603 = vmatpush1.bf16.msra.mxu0 0
        %2604 = vmatprep.subr.bf16.mxu0 0
        %2605 = vmatpush1.bf16.msra.mxu0 0
        %2606 = vmatprep.subr.bf16.mxu0 0
        %2607 = vmatpush1.bf16.msra.mxu0 0
        %2608 = vmatprep.subr.bf16.mxu0 0
        %2609 = vmatpush1.bf16.msra.mxu0 0
        %2610 = vmatprep.subr.bf16.mxu0 0
        %2611 = vmatpush1.bf16.msra.mxu0 0
        %2612 = vmatprep.subr.bf16.mxu0 0
        %2613 = vmatpush1.bf16.msra.mxu0 0
        %2614 = vmatprep.subr.bf16.mxu0 0
        %2615 = vmatpush1.bf16.msra.mxu0 0
        %2616 = vmatprep.subr.bf16.mxu0 0
        %2617 = vmatpush1.bf16.msra.mxu0 0
        %2618 = vmatprep.mubr.bf16.mxu0 0
        %2619 = vmatmul.mubr.bf16.gmra.mrb[0].mxu0 %v2584
        %v2620 = vpop.f32.mrb[0].mxu0
        %v2621 = vadd.f32 %v2570, %v2620
        %v2622 = vpop.f32.mrb[0].mxu0
        %v2623 = vpop.f32.mrb[0].mxu0
        %v2624 = vpop.f32.mrb[0].mxu0
        %2625 = vdwg.mxu0
        %v2626 = vtanh.pop %v2621
        %v2627 = vpack.c.bf16 %v2626, %v2626
        %v2628 = vld [vmem:[%s18] sm:$0xf]
        %v2629 = vld [vmem:[%s18 + $0x4] sm:$0xf]
        %v2630 = vld [vmem:[%s18 + $0x8] sm:$0xf]
        %v2631 = vld [vmem:[%s18 + $0xc] sm:$0xf]
        %v2632 = vld [vmem:[%s19] sm:$0x1]
        %v2637 = vunpack.c.l.b16 %v2628
        %v2638 = vunpack.c.l.b16 %v2629
        %v2639 = vunpack.c.l.b16 %v2630
        %v2640 = vunpack.c.l.b16 %v2631
        %v2641 = vpack.c.b16 %v2638, %v2637
        %v2642 = vpack.c.b16 %v2640, %v2639
        %v2646 = vsel %vm642, %v2627, 0
        %2648 = vmatprep.subr.bf16.mxu0 0
        %2649 = vmatpush1.bf16.msra.mxu0 %v2641
        %2650 = vmatprep.subr.bf16.mxu0 0
        %2651 = vmatpush1.bf16.msra.mxu0 %v2642
        %2652 = vmatprep.subr.bf16.mxu0 0
        %2653 = vmatpush1.bf16.msra.mxu0 0
        %2654 = vmatprep.subr.bf16.mxu0 0
        %2655 = vmatpush1.bf16.msra.mxu0 0
        %2656 = vmatprep.subr.bf16.mxu0 0
        %2657 = vmatpush1.bf16.msra.mxu0 0
        %2658 = vmatprep.subr.bf16.mxu0 0
        %2659 = vmatpush1.bf16.msra.mxu0 0
        %2660 = vmatprep.subr.bf16.mxu0 0
        %2661 = vmatpush1.bf16.msra.mxu0 0
        %2662 = vmatprep.subr.bf16.mxu0 0
        %2663 = vmatpush1.bf16.msra.mxu0 0
        %2664 = vmatprep.subr.bf16.mxu0 0
        %2665 = vmatpush1.bf16.msra.mxu0 0
        %2666 = vmatprep.subr.bf16.mxu0 0
        %2667 = vmatpush1.bf16.msra.mxu0 0
        %2668 = vmatprep.subr.bf16.mxu0 0
        %2669 = vmatpush1.bf16.msra.mxu0 0
        %2670 = vmatprep.subr.bf16.mxu0 0
        %2671 = vmatpush1.bf16.msra.mxu0 0
        %2672 = vmatprep.subr.bf16.mxu0 0
        %2673 = vmatpush1.bf16.msra.mxu0 0
        %2674 = vmatprep.subr.bf16.mxu0 0
        %2675 = vmatpush1.bf16.msra.mxu0 0
        %2676 = vmatprep.subr.bf16.mxu0 0
        %2677 = vmatpush1.bf16.msra.mxu0 0
        %2678 = vmatprep.subr.bf16.mxu0 0
        %2679 = vmatpush1.bf16.msra.mxu0 0
        %2680 = vmatprep.mubr.bf16.mxu0 0
        %2681 = vmatmul.mubr.bf16.gmra.mrb[0].mxu0 %v2646
        %v2682 = vpop.f32.mrb[0].mxu0
        %v2683 = vadd.f32 %v2632, %v2682
        %v2684 = vpop.f32.mrb[0].mxu0
        %v2685 = vpop.f32.mrb[0].mxu0
        %v2686 = vpop.f32.mrb[0].mxu0
        %2687 = vdwg.mxu0
        %2688 = vst [vmem:[%s630] sm:$0x1] %v2683
        %s2689 = sand.u32 %s472, 1
        %s2690 = scalar_lea.sflag [#allocation3], %s2689
        %s2691 = sand.u32 %s472, 1
        %s2692 = scalar_lea.vmem [#allocation2], %s2691
        // Predicated region
        $region101: #{encoder_model_forward.1} parent=99 // pred_check
          %p2693 = pneg %p482
        $region102: #{encoder_model_forward.1} parent=99 // pred_check_branch
          %2695 = sbr.rel (%p2693) target = $region104
        $region103: #{encoder_model_forward.1} parent=99 // pred_region
          %s2697 = ssub.s32 16, 16
          %2698 = vsyncadd %s2690, %s2697
          %s2699 = smul.addr %s34, 16
          %s2700 = scalar_lea.hbm %s20, %s2699
          %s2702 = sshll.u32 %s2692, 4
          %s2703 = int_to_ptr.vmem [resolvable:$true] %s2702
          %2705 = dma.vmem_to_hbm [thread:$0]  %s2703, 16, %s2700, %s2690
        $region104: #{encoder_model_forward.1} parent=99 // pred_fallthru
          _
      $region100: #{encoder_model_forward.1} parent=5 // pred_fallthru
        _
      %p2706 = scmp.le.s32.totalorder 2, %s29
      // Predicated region
      $region105: #{encoder_model_forward.1} parent=5 // pred_check
        %p2707 = pneg %p2706
      $region106: #{encoder_model_forward.1} parent=5 // pred_check_branch
        %2709 = sbr.rel (%p2707) target = $region108
      $region107: #{encoder_model_forward.1} parent=5 // pred_region
        %s2710 = ssub.s32 %s29, 2
        // Predicated region
        $region109: #{encoder_model_forward.1} parent=107 // pred_check
          %p2711 = pneg %p488
        $region110: #{encoder_model_forward.1} parent=107 // pred_check_branch
          %2713 = sbr.rel (%p2711) target = $region112
        $region111: #{encoder_model_forward.1} parent=107 // pred_region
          %s2714 = sand.u32 %s473, 1
          %s2715 = scalar_lea.sflag [#allocation3], %s2714
          %s2716 = sand.u32 %s473, 1
          %s2717 = scalar_lea.vmem [#allocation2], %s2716
          %2718 = dma.done %s2715, 16
        $region112: #{encoder_model_forward.1} parent=107 // pred_fallthru
          _
      $region108: #{encoder_model_forward.1} parent=5 // pred_fallthru
        _
    $region6: #{encoder_model_forward.1} parent=1 // loop_footer
      %s33 = sadd.s32 1, %s29
    $region7: #{encoder_model_forward.1} parent=1 // loop_footer_branch
      %28 = sbr.rel target = $region3
    $region8: #{encoder_model_forward.1} parent=1 // loop_exit
      _
    %2719 = vsyncpa [#allocation3], 1
    %s2720 = scalar_lea.sflag [#allocation3], 1
    %2721 = vsyncpa %s2720, 1

</llo_original>
